<compile_context>
chip_gen: v5e
topology: v5e:2x2
jax: 0.10.0
libtpu: 0.0.40
codegen_flags: <defaults>
</compile_context>

<pallas_src>
import jax
import jax.numpy as jnp
from jax.experimental import pallas as pl
from jax.experimental.pallas import tpu as pltpu


def _round_up(x: int, m: int) -> int:
    return (x + m - 1) // m * m


def _matmul_bias_relu_kernel(p_ref, w_ref, b_ref, o32_ref, o16_ref):
    # p_ref: (tm, Kp) bf16 im2col patches; w_ref: (Kp, tn) bf16 (BN scale folded in);
    # b_ref: (1, tn) f32 folded bias; o32_ref: (tm, tn) f32; o16_ref: (tm, tn) bf16.
    acc = jnp.dot(p_ref[...], w_ref[...], preferred_element_type=jnp.float32)
    y = jnp.maximum(acc + b_ref[...], 0.0)
    o32_ref[...] = y
    o16_ref[...] = y.astype(jnp.bfloat16)


def basic_conv3x3(x_nhwc, w_hwio, scale, bias, stride=2, padding=1):
    """Conv2d(3x3, stride=2, pad=1, bias=False) + folded BN + ReLU, NHWC in/out.

    Returns (y_f32, y_bf16): f32 for the module output dict, bf16 for chaining
    straight into the next stage's im2col without an extra cast pass.
    """
    N, H, W, Cin = x_nhwc.shape
    KH, KW, _, Cout = w_hwio.shape
    OH = (H + 2 * padding - KH) // stride + 1
    OW = (W + 2 * padding - KW) // stride + 1

    # ---- im2col (glue, plain JAX) on bf16 activations: (N,OH,OW,9,Cin) -> (M,K) ----
    x16 = x_nhwc.astype(jnp.bfloat16)
    x_pad = jnp.pad(x16, ((0, 0), (padding, padding), (padding, padding), (0, 0)))
    cols = []
    for kh in range(KH):
        for kw in range(KW):
            cols.append(
                x_pad[:, kh:kh + stride * (OH - 1) + 1:stride,
                         kw:kw + stride * (OW - 1) + 1:stride, :]
            )
    patches = jnp.stack(cols, axis=3).reshape(N * OH * OW, KH * KW * Cin)
    M, K = patches.shape

    # Fold BN scale into the weights (host-side, once per layer); bias stays f32.
    w_mat = w_hwio.reshape(K, Cout).astype(jnp.float32) * scale.reshape(1, Cout)
    b_vec = bias.reshape(1, Cout).astype(jnp.float32)

    # ---- MXU / lane alignment and tile selection ----
    Kp = _round_up(K, 16)                    # bf16 sublane pack (often already aligned)
    Coutp = _round_up(Cout, 128)             # lane-dense output stores
    if Coutp <= 512:
        tn = Coutp                           # single lane-dense column tile; weights stay resident
    elif Coutp % 256 == 0:
        tn = 256                             # 2x256 MXU on v6e/v7x
    else:
        tn = 128
    if M >= 512:
        tm = 512
    elif M >= 256:
        tm = 256
    else:
        tm = _round_up(M, 8)                 # tiny tail stages: single small tile
    Mp = _round_up(M, tm)

    # Zero-pad operands to the tile grid only when actually required.
    if (Mp, Kp) != (M, K):
        patches = jnp.pad(patches, ((0, Mp - M), (0, Kp - K)))
    w_p = jnp.pad(w_mat, ((0, Kp - K), (0, Coutp - Cout))).astype(jnp.bfloat16)
    b_p = jnp.pad(b_vec, ((0, 0), (0, Coutp - Cout)))

    y32, y16 = pl.pallas_call(
        _matmul_bias_relu_kernel,
        out_shape=(
            jax.ShapeDtypeStruct((Mp, Coutp), jnp.float32),
            jax.ShapeDtypeStruct((Mp, Coutp), jnp.bfloat16),
        ),
        grid=(Mp // tm, Coutp // tn),
        in_specs=[
            pl.BlockSpec((tm, Kp), lambda i, j: (i, 0)),
            pl.BlockSpec((Kp, tn), lambda i, j: (0, j)),
            pl.BlockSpec((1, tn), lambda i, j: (0, j)),
        ],
        out_specs=[
            pl.BlockSpec((tm, tn), lambda i, j: (i, j)),
            pl.BlockSpec((tm, tn), lambda i, j: (i, j)),
        ],
        compiler_params=pltpu.CompilerParams(
            dimension_semantics=("parallel", "parallel"),
            vmem_limit_bytes=32 * 1024 * 1024,
        ),
    )(patches, w_p, b_p)

    y32 = y32[:M, :Cout].reshape(N, OH, OW, Cout)
    y16 = y16[:M, :Cout].reshape(N, OH, OW, Cout)
    return y32, y16


def init_conv_stream(key, in_channels=4, out_channels=(48, 96, 192, 384), eps=1e-5):
    """Deterministic synthetic parameters mirroring the PyTorch module shapes."""
    chans = [in_channels] + list(out_channels)
    params = []
    for i in range(len(chans) - 1):
        cin, cout = chans[i], chans[i + 1]
        key, k1, k2, k3, k4, k5 = jax.random.split(key, 6)
        # Conv2d weight (Cout, Cin, 3, 3) in torch -> stored here as HWIO (3,3,Cin,Cout)
        w = jax.random.normal(k1, (3, 3, cin, cout), jnp.float32) / jnp.sqrt(9.0 * cin)
        gamma = 1.0 + 0.1 * jax.random.normal(k2, (cout,), jnp.float32)
        beta = 0.1 * jax.random.normal(k3, (cout,), jnp.float32)
        running_mean = 0.1 * jax.random.normal(k4, (cout,), jnp.float32)
        running_var = 1.0 + 0.1 * jnp.abs(jax.random.normal(k5, (cout,), jnp.float32))
        # Fold BN (inference) into per-channel scale/bias.
        scale = gamma / jnp.sqrt(running_var + eps)
        bias = beta - running_mean * scale
        params.append((w, scale, bias))
    return params


def conv_stream_forward(params, x_nchw):
    """Matches ConvStream.forward: returns {'D0': x, 'D1': ..., 'D4': ...} in NCHW."""
    out = {"D0": x_nchw}
    x16 = jnp.transpose(x_nchw, (0, 2, 3, 1)).astype(jnp.bfloat16)  # NCHW -> NHWC, bf16 chain
    for i, (w, s, b) in enumerate(params):
        y32, x16 = basic_conv3x3(x16, w, s, b)
        out[f"D{i + 1}"] = jnp.transpose(y32, (0, 3, 1, 2))  # NHWC -> NCHW, f32
    return out


def _conv_stream_ref(params, x_nchw):
    """Pure-JAX f32 reference (lax conv) for correctness checking."""
    x = jnp.transpose(x_nchw, (0, 2, 3, 1))
    outs = {"D0": x_nchw}
    for i, (w, s, b) in enumerate(params):
        y = jax.lax.conv_general_dilated(
            x, w, window_strides=(2, 2), padding=[(1, 1), (1, 1)],
            dimension_numbers=("NHWC", "HWIO", "NHWC"),
        )
        x = jnp.maximum(y * s + b, 0.0)
        outs[f"D{i + 1}"] = jnp.transpose(x, (0, 3, 1, 2))
    return outs


if __name__ == "__main__":
    key = jax.random.PRNGKey(0)
    key, kx = jax.random.split(key)
    # ConvStream default: in_channels=4 (RGB + trimap-style extra channel)
    x = jax.random.normal(kx, (2, 4, 16, 16), jnp.float32)  # NCHW, small spatial

    params = init_conv_stream(key)

    fwd = jax.jit(conv_stream_forward)
    out = fwd(params, x)
    out = jax.tree_util.tree_map(jax.block_until_ready, out)

    # sanity: shapes match PyTorch semantics (stride-2 halving each stage)
    expected_shapes = {
        "D0": (2, 4, 16, 16),
        "D1": (2, 48, 8, 8),
        "D2": (2, 96, 4, 4),
        "D3": (2, 192, 2, 2),
        "D4": (2, 384, 1, 1),
    }
    for k, shp in expected_shapes.items():
        assert out[k].shape == shp, (k, out[k].shape, shp)

    # bf16 operands / f32 accumulation: compare against the f32 lax reference with
    # a bf16-appropriate tolerance (max-abs-normalized error).
    ref = _conv_stream_ref(params, x)
    for k in expected_shapes:
        denom = jnp.maximum(jnp.max(jnp.abs(ref[k])), 1e-6)
        rel_err = jnp.max(jnp.abs(out[k] - ref[k])) / denom
        assert float(rel_err) < 5e-2, f"mismatch at {k}: rel_err={float(rel_err)}"

    print("KERNEL_OK")
</pallas_src>

<mosaic_0001>
module attributes {stable_mosaic.version = 11 : i64} {
  func.func @_matmul_bias_relu_kernel(%arg0: i32, %arg1: i32, %arg2: memref<128x48xbf16, #tpu.memory_space<vmem>>, %arg3: memref<48x128xbf16, #tpu.memory_space<vmem>>, %arg4: memref<1x128xf32, #tpu.memory_space<vmem>>, %arg5: memref<128x128xf32, #tpu.memory_space<vmem>>, %arg6: memref<128x128xbf16, #tpu.memory_space<vmem>>) attributes {dimension_semantics = [#tpu.dimension_semantics<parallel>, #tpu.dimension_semantics<parallel>], iteration_bounds = array<i64: 1, 1>, scalar_prefetch = 0 : i64, scratch_operands = 0 : i64, tpu.core_type = #tpu.core_type<tc>, window_params = [{transform_indices = @transform_0, window_bounds = array<i64: 128, 48>}, {transform_indices = @transform_1, window_bounds = array<i64: 48, 128>}, {transform_indices = @transform_2, window_bounds = array<i64: 1, 128>}, {transform_indices = @transform_3, window_bounds = array<i64: 128, 128>}, {transform_indices = @transform_4, window_bounds = array<i64: 128, 128>}]} {
    %c0 = arith.constant 0 : index
    %c0_0 = arith.constant 0 : index
    %0 = vector.load %arg2[%c0, %c0_0] : memref<128x48xbf16, #tpu.memory_space<vmem>>, vector<128x48xbf16>
    %c0_1 = arith.constant 0 : index
    %c0_2 = arith.constant 0 : index
    %1 = vector.load %arg3[%c0_1, %c0_2] : memref<48x128xbf16, #tpu.memory_space<vmem>>, vector<48x128xbf16>
    %cst = arith.constant dense<0.000000e+00> : vector<128x128xf32>
    %2 = tpu.matmul %0, %1, %cst {dimension_numbers = #tpu.dot_dimension_numbers<[1], [0], [0], [1], [0, 0, 1, 1], [], []>} : vector<128x48xbf16>, vector<48x128xbf16>, vector<128x128xf32> -> vector<128x128xf32>
    %c0_3 = arith.constant 0 : index
    %c0_4 = arith.constant 0 : index
    %3 = vector.load %arg4[%c0_3, %c0_4] : memref<1x128xf32, #tpu.memory_space<vmem>>, vector<1x128xf32>
    %4 = vector.broadcast %3 : vector<1x128xf32> to vector<128x128xf32>
    %5 = arith.addf %2, %4 : vector<128x128xf32>
    %cst_5 = arith.constant 0.000000e+00 : f32
    %6 = vector.broadcast %cst_5 : f32 to vector<128x128xf32>
    %7 = arith.maximumf %5, %6 : vector<128x128xf32>
    %c0_6 = arith.constant 0 : index
    %c0_7 = arith.constant 0 : index
    %8 = vector.load %arg5[%c0_6, %c0_7] : memref<128x128xf32, #tpu.memory_space<vmem>>, vector<128x128xf32>
    tpu.vector_store %arg5[%c0_6, %c0_7], %7 {strides = array<i32>} : memref<128x128xf32, #tpu.memory_space<vmem>>, vector<128x128xf32>,
    %9 = arith.truncf %7 : vector<128x128xf32> to vector<128x128xbf16>
    %c0_8 = arith.constant 0 : index
    %c0_9 = arith.constant 0 : index
    %10 = vector.load %arg6[%c0_8, %c0_9] : memref<128x128xbf16, #tpu.memory_space<vmem>>, vector<128x128xbf16>
    tpu.vector_store %arg6[%c0_8, %c0_9], %9 {strides = array<i32>} : memref<128x128xbf16, #tpu.memory_space<vmem>>, vector<128x128xbf16>,
    return
  }
  func.func @transform_0(%arg0: i32, %arg1: i32) -> (i32, i32) {
    %c0_i32 = arith.constant 0 : i32
    %c0_i32_0 = arith.constant 0 : i32
    return %arg0, %c0_i32 : i32, i32
  }
  func.func @transform_1(%arg0: i32, %arg1: i32) -> (i32, i32) {
    %c0_i32 = arith.constant 0 : i32
    %c0_i32_0 = arith.constant 0 : i32
    return %c0_i32, %arg1 : i32, i32
  }
  func.func @transform_2(%arg0: i32, %arg1: i32) -> (i32, i32) {
    %c0_i32 = arith.constant 0 : i32
    %c0_i32_0 = arith.constant 0 : i32
    return %c0_i32, %arg1 : i32, i32
  }
  func.func @transform_3(%arg0: i32, %arg1: i32) -> (i32, i32) {
    %c0_i32 = arith.constant 0 : i32
    return %arg0, %arg1 : i32, i32
  }
  func.func @transform_4(%arg0: i32, %arg1: i32) -> (i32, i32) {
    %c0_i32 = arith.constant 0 : i32
    return %arg0, %arg1 : i32, i32
  }
}

module attributes {stable_mosaic.version = 11 : i64} {
  func.func @_matmul_bias_relu_kernel(%arg0: i32, %arg1: i32, %arg2: memref<32x432xbf16, #tpu.memory_space<vmem>>, %arg3: memref<432x128xbf16, #tpu.memory_space<vmem>>, %arg4: memref<1x128xf32, #tpu.memory_space<vmem>>, %arg5: memref<32x128xf32, #tpu.memory_space<vmem>>, %arg6: memref<32x128xbf16, #tpu.memory_space<vmem>>) attributes {dimension_semantics = [#tpu.dimension_semantics<parallel>, #tpu.dimension_semantics<parallel>], iteration_bounds = array<i64: 1, 1>, scalar_prefetch = 0 : i64, scratch_operands = 0 : i64, tpu.core_type = #tpu.core_type<tc>, window_params = [{transform_indices = @transform_0, window_bounds = array<i64: 32, 432>}, {transform_indices = @transform_1, window_bounds = array<i64: 432, 128>}, {transform_indices = @transform_2, window_bounds = array<i64: 1, 128>}, {transform_indices = @transform_3, window_bounds = array<i64: 32, 128>}, {transform_indices = @transform_4, window_bounds = array<i64: 32, 128>}]} {
    %c0 = arith.constant 0 : index
    %c0_0 = arith.constant 0 : index
    %0 = vector.load %arg2[%c0, %c0_0] : memref<32x432xbf16, #tpu.memory_space<vmem>>, vector<32x432xbf16>
    %c0_1 = arith.constant 0 : index
    %c0_2 = arith.constant 0 : index
    %1 = vector.load %arg3[%c0_1, %c0_2] : memref<432x128xbf16, #tpu.memory_space<vmem>>, vector<432x128xbf16>
    %cst = arith.constant dense<0.000000e+00> : vector<32x128xf32>
    %2 = tpu.matmul %0, %1, %cst {dimension_numbers = #tpu.dot_dimension_numbers<[1], [0], [0], [1], [0, 0, 1, 1], [], []>} : vector<32x432xbf16>, vector<432x128xbf16>, vector<32x128xf32> -> vector<32x128xf32>
    %c0_3 = arith.constant 0 : index
    %c0_4 = arith.constant 0 : index
    %3 = vector.load %arg4[%c0_3, %c0_4] : memref<1x128xf32, #tpu.memory_space<vmem>>, vector<1x128xf32>
    %4 = vector.broadcast %3 : vector<1x128xf32> to vector<32x128xf32>
    %5 = arith.addf %2, %4 : vector<32x128xf32>
    %cst_5 = arith.constant 0.000000e+00 : f32
    %6 = vector.broadcast %cst_5 : f32 to vector<32x128xf32>
    %7 = arith.maximumf %5, %6 : vector<32x128xf32>
    %c0_6 = arith.constant 0 : index
    %c0_7 = arith.constant 0 : index
    %8 = vector.load %arg5[%c0_6, %c0_7] : memref<32x128xf32, #tpu.memory_space<vmem>>, vector<32x128xf32>
    tpu.vector_store %arg5[%c0_6, %c0_7], %7 {strides = array<i32>} : memref<32x128xf32, #tpu.memory_space<vmem>>, vector<32x128xf32>,
    %9 = arith.truncf %7 : vector<32x128xf32> to vector<32x128xbf16>
    %c0_8 = arith.constant 0 : index
    %c0_9 = arith.constant 0 : index
    %10 = vector.load %arg6[%c0_8, %c0_9] : memref<32x128xbf16, #tpu.memory_space<vmem>>, vector<32x128xbf16>
    tpu.vector_store %arg6[%c0_8, %c0_9], %9 {strides = array<i32>} : memref<32x128xbf16, #tpu.memory_space<vmem>>, vector<32x128xbf16>,
    return
  }
  func.func @transform_0(%arg0: i32, %arg1: i32) -> (i32, i32) {
    %c0_i32 = arith.constant 0 : i32
    %c0_i32_0 = arith.constant 0 : i32
    return %arg0, %c0_i32 : i32, i32
  }
  func.func @transform_1(%arg0: i32, %arg1: i32) -> (i32, i32) {
    %c0_i32 = arith.constant 0 : i32
    %c0_i32_0 = arith.constant 0 : i32
    return %c0_i32, %arg1 : i32, i32
  }
  func.func @transform_2(%arg0: i32, %arg1: i32) -> (i32, i32) {
    %c0_i32 = arith.constant 0 : i32
    %c0_i32_0 = arith.constant 0 : i32
    return %c0_i32, %arg1 : i32, i32
  }
  func.func @transform_3(%arg0: i32, %arg1: i32) -> (i32, i32) {
    %c0_i32 = arith.constant 0 : i32
    return %arg0, %arg1 : i32, i32
  }
  func.func @transform_4(%arg0: i32, %arg1: i32) -> (i32, i32) {
    %c0_i32 = arith.constant 0 : i32
    return %arg0, %arg1 : i32, i32
  }
}

module attributes {stable_mosaic.version = 11 : i64} {
  func.func @_matmul_bias_relu_kernel(%arg0: i32, %arg1: i32, %arg2: memref<8x864xbf16, #tpu.memory_space<vmem>>, %arg3: memref<864x256xbf16, #tpu.memory_space<vmem>>, %arg4: memref<1x256xf32, #tpu.memory_space<vmem>>, %arg5: memref<8x256xf32, #tpu.memory_space<vmem>>, %arg6: memref<8x256xbf16, #tpu.memory_space<vmem>>) attributes {dimension_semantics = [#tpu.dimension_semantics<parallel>, #tpu.dimension_semantics<parallel>], iteration_bounds = array<i64: 1, 1>, scalar_prefetch = 0 : i64, scratch_operands = 0 : i64, tpu.core_type = #tpu.core_type<tc>, window_params = [{transform_indices = @transform_0, window_bounds = array<i64: 8, 864>}, {transform_indices = @transform_1, window_bounds = array<i64: 864, 256>}, {transform_indices = @transform_2, window_bounds = array<i64: 1, 256>}, {transform_indices = @transform_3, window_bounds = array<i64: 8, 256>}, {transform_indices = @transform_4, window_bounds = array<i64: 8, 256>}]} {
    %c0 = arith.constant 0 : index
    %c0_0 = arith.constant 0 : index
    %0 = vector.load %arg2[%c0, %c0_0] : memref<8x864xbf16, #tpu.memory_space<vmem>>, vector<8x864xbf16>
    %c0_1 = arith.constant 0 : index
    %c0_2 = arith.constant 0 : index
    %1 = vector.load %arg3[%c0_1, %c0_2] : memref<864x256xbf16, #tpu.memory_space<vmem>>, vector<864x256xbf16>
    %cst = arith.constant dense<0.000000e+00> : vector<8x256xf32>
    %2 = tpu.matmul %0, %1, %cst {dimension_numbers = #tpu.dot_dimension_numbers<[1], [0], [0], [1], [0, 0, 1, 1], [], []>} : vector<8x864xbf16>, vector<864x256xbf16>, vector<8x256xf32> -> vector<8x256xf32>
    %c0_3 = arith.constant 0 : index
    %c0_4 = arith.constant 0 : index
    %3 = vector.load %arg4[%c0_3, %c0_4] : memref<1x256xf32, #tpu.memory_space<vmem>>, vector<1x256xf32>
    %4 = vector.broadcast %3 : vector<1x256xf32> to vector<8x256xf32>
    %5 = arith.addf %2, %4 : vector<8x256xf32>
    %cst_5 = arith.constant 0.000000e+00 : f32
    %6 = vector.broadcast %cst_5 : f32 to vector<8x256xf32>
    %7 = arith.maximumf %5, %6 : vector<8x256xf32>
    %c0_6 = arith.constant 0 : index
    %c0_7 = arith.constant 0 : index
    %8 = vector.load %arg5[%c0_6, %c0_7] : memref<8x256xf32, #tpu.memory_space<vmem>>, vector<8x256xf32>
    tpu.vector_store %arg5[%c0_6, %c0_7], %7 {strides = array<i32>} : memref<8x256xf32, #tpu.memory_space<vmem>>, vector<8x256xf32>,
    %9 = arith.truncf %7 : vector<8x256xf32> to vector<8x256xbf16>
    %c0_8 = arith.constant 0 : index
    %c0_9 = arith.constant 0 : index
    %10 = vector.load %arg6[%c0_8, %c0_9] : memref<8x256xbf16, #tpu.memory_space<vmem>>, vector<8x256xbf16>
    tpu.vector_store %arg6[%c0_8, %c0_9], %9 {strides = array<i32>} : memref<8x256xbf16, #tpu.memory_space<vmem>>, vector<8x256xbf16>,
    return
  }
  func.func @transform_0(%arg0: i32, %arg1: i32) -> (i32, i32) {
    %c0_i32 = arith.constant 0 : i32
    %c0_i32_0 = arith.constant 0 : i32
    return %arg0, %c0_i32 : i32, i32
  }
  func.func @transform_1(%arg0: i32, %arg1: i32) -> (i32, i32) {
    %c0_i32 = arith.constant 0 : i32
    %c0_i32_0 = arith.constant 0 : i32
    return %c0_i32, %arg1 : i32, i32
  }
  func.func @transform_2(%arg0: i32, %arg1: i32) -> (i32, i32) {
    %c0_i32 = arith.constant 0 : i32
    %c0_i32_0 = arith.constant 0 : i32
    return %c0_i32, %arg1 : i32, i32
  }
  func.func @transform_3(%arg0: i32, %arg1: i32) -> (i32, i32) {
    %c0_i32 = arith.constant 0 : i32
    return %arg0, %arg1 : i32, i32
  }
  func.func @transform_4(%arg0: i32, %arg1: i32) -> (i32, i32) {
    %c0_i32 = arith.constant 0 : i32
    return %arg0, %arg1 : i32, i32
  }
}

module attributes {stable_mosaic.version = 11 : i64} {
  func.func @_matmul_bias_relu_kernel(%arg0: i32, %arg1: i32, %arg2: memref<8x1728xbf16, #tpu.memory_space<vmem>>, %arg3: memref<1728x384xbf16, #tpu.memory_space<vmem>>, %arg4: memref<1x384xf32, #tpu.memory_space<vmem>>, %arg5: memref<8x384xf32, #tpu.memory_space<vmem>>, %arg6: memref<8x384xbf16, #tpu.memory_space<vmem>>) attributes {dimension_semantics = [#tpu.dimension_semantics<parallel>, #tpu.dimension_semantics<parallel>], iteration_bounds = array<i64: 1, 1>, scalar_prefetch = 0 : i64, scratch_operands = 0 : i64, tpu.core_type = #tpu.core_type<tc>, window_params = [{transform_indices = @transform_0, window_bounds = array<i64: 8, 1728>}, {transform_indices = @transform_1, window_bounds = array<i64: 1728, 384>}, {transform_indices = @transform_2, window_bounds = array<i64: 1, 384>}, {transform_indices = @transform_3, window_bounds = array<i64: 8, 384>}, {transform_indices = @transform_4, window_bounds = array<i64: 8, 384>}]} {
    %c0 = arith.constant 0 : index
    %c0_0 = arith.constant 0 : index
    %0 = vector.load %arg2[%c0, %c0_0] : memref<8x1728xbf16, #tpu.memory_space<vmem>>, vector<8x1728xbf16>
    %c0_1 = arith.constant 0 : index
    %c0_2 = arith.constant 0 : index
    %1 = vector.load %arg3[%c0_1, %c0_2] : memref<1728x384xbf16, #tpu.memory_space<vmem>>, vector<1728x384xbf16>
    %cst = arith.constant dense<0.000000e+00> : vector<8x384xf32>
    %2 = tpu.matmul %0, %1, %cst {dimension_numbers = #tpu.dot_dimension_numbers<[1], [0], [0], [1], [0, 0, 1, 1], [], []>} : vector<8x1728xbf16>, vector<1728x384xbf16>, vector<8x384xf32> -> vector<8x384xf32>
    %c0_3 = arith.constant 0 : index
    %c0_4 = arith.constant 0 : index
    %3 = vector.load %arg4[%c0_3, %c0_4] : memref<1x384xf32, #tpu.memory_space<vmem>>, vector<1x384xf32>
    %4 = vector.broadcast %3 : vector<1x384xf32> to vector<8x384xf32>
    %5 = arith.addf %2, %4 : vector<8x384xf32>
    %cst_5 = arith.constant 0.000000e+00 : f32
    %6 = vector.broadcast %cst_5 : f32 to vector<8x384xf32>
    %7 = arith.maximumf %5, %6 : vector<8x384xf32>
    %c0_6 = arith.constant 0 : index
    %c0_7 = arith.constant 0 : index
    %8 = vector.load %arg5[%c0_6, %c0_7] : memref<8x384xf32, #tpu.memory_space<vmem>>, vector<8x384xf32>
    tpu.vector_store %arg5[%c0_6, %c0_7], %7 {strides = array<i32>} : memref<8x384xf32, #tpu.memory_space<vmem>>, vector<8x384xf32>,
    %9 = arith.truncf %7 : vector<8x384xf32> to vector<8x384xbf16>
    %c0_8 = arith.constant 0 : index
    %c0_9 = arith.constant 0 : index
    %10 = vector.load %arg6[%c0_8, %c0_9] : memref<8x384xbf16, #tpu.memory_space<vmem>>, vector<8x384xbf16>
    tpu.vector_store %arg6[%c0_8, %c0_9], %9 {strides = array<i32>} : memref<8x384xbf16, #tpu.memory_space<vmem>>, vector<8x384xbf16>,
    return
  }
  func.func @transform_0(%arg0: i32, %arg1: i32) -> (i32, i32) {
    %c0_i32 = arith.constant 0 : i32
    %c0_i32_0 = arith.constant 0 : i32
    return %arg0, %c0_i32 : i32, i32
  }
  func.func @transform_1(%arg0: i32, %arg1: i32) -> (i32, i32) {
    %c0_i32 = arith.constant 0 : i32
    %c0_i32_0 = arith.constant 0 : i32
    return %c0_i32, %arg1 : i32, i32
  }
  func.func @transform_2(%arg0: i32, %arg1: i32) -> (i32, i32) {
    %c0_i32 = arith.constant 0 : i32
    %c0_i32_0 = arith.constant 0 : i32
    return %c0_i32, %arg1 : i32, i32
  }
  func.func @transform_3(%arg0: i32, %arg1: i32) -> (i32, i32) {
    %c0_i32 = arith.constant 0 : i32
    return %arg0, %arg1 : i32, i32
  }
  func.func @transform_4(%arg0: i32, %arg1: i32) -> (i32, i32) {
    %c0_i32 = arith.constant 0 : i32
    return %arg0, %arg1 : i32, i32
  }
}

</mosaic_0001>

<llo_original>
// kernel: conv_stream_forward.4
$region0: #{conv_stream_forward.4}
  #allocation0 [shape = 'u32[]', space=smem, size = 0x4, offset = 0x4, fixed_abs, tag = 'smem constant byte address 0x4 - core index']
  #allocation1 [shape = 'u32[72,128]{1,0:T(1,128)}', space=vmem, size = 0x9000, scoped, tag = 'internal scratch']
  %s0 = inlined_call_operand.vmem [shape: bf16[128,48], index: 0, kind: input, shape index: {}]
  %s1 = inlined_call_operand.vmem [shape: bf16[48,128], index: 1, kind: input, shape index: {}]
  %s2 = inlined_call_operand.vmem [shape: f32[1,128], index: 2, kind: input, shape index: {}]
  %s3 = inlined_call_operand.hbm [shape: f32[128,128], index: 3, kind: output, shape index: {0}]
  %s4 = inlined_call_operand.vmem [shape: bf16[128,128], index: 4, kind: output, shape index: {1}]
  %5 = xla_tuple %s3, %s4
  %s6 = sld [smem:[#allocation0]]
  $region30: #{conv_stream_forward.4} parent=0
    _
  %s8 = ssub.s32 1, %s6
  %s9 = scalar_select 0, %s8, %s6
  $region1: #{conv_stream_forward.4} parent=0
    #allocation2 [shape = 'u8[65536]{0}', space=vmem, size = 0x10000, scoped, tag = 'output window, operand 0, single buffered']
    #allocation3 [shape = 's32[1]{0}', space=sflag, size = 0x4, scoped, tag = 'scoped memory for conv_stream_forward.4']
    %10 = vsyncpa [#allocation3], 0
    // Predicated region
    $region2: #{conv_stream_forward.4} parent=1 // pred_check
      _
    $region3: #{conv_stream_forward.4} parent=1 // pred_check_branch
      %12 = sbr.rel (0) target = $region5
    $region4: #{conv_stream_forward.4} parent=1 // pred_region
      _
    $region5: #{conv_stream_forward.4} parent=1 // pred_fallthru
      _
    // Predicated region
    $region6: #{conv_stream_forward.4} parent=1 // pred_check
      _
    $region7: #{conv_stream_forward.4} parent=1 // pred_check_branch
      %14 = sbr.rel (0) target = $region9
    $region8: #{conv_stream_forward.4} parent=1 // pred_region
      _
    $region9: #{conv_stream_forward.4} parent=1 // pred_fallthru
      _
    // Predicated region
    $region10: #{conv_stream_forward.4} parent=1 // pred_check
      _
    $region11: #{conv_stream_forward.4} parent=1 // pred_check_branch
      %16 = sbr.rel (0) target = $region13
    $region12: #{conv_stream_forward.4} parent=1 // pred_region
      _
    $region13: #{conv_stream_forward.4} parent=1 // pred_fallthru
      _
    %v18 = vld [vmem:[%s0] sm:$0xf]
    %v19 = vld [vmem:[%s0 + $0x4] sm:$0xf]
    %v20 = vld [vmem:[%s0 + $0x8] sm:$0xf]
    %v21 = vld [vmem:[%s0 + $0xc] sm:$0xf]
    %v22 = vld [vmem:[%s0 + $0x10] sm:$0xf]
    %v23 = vld [vmem:[%s0 + $0x14] sm:$0xf]
    %v24 = vld [vmem:[%s0 + $0x18] sm:$0xf]
    %v25 = vld [vmem:[%s0 + $0x1c] sm:$0xf]
    %v26 = vld [vmem:[%s0 + $0x20] sm:$0xf]
    %v27 = vld [vmem:[%s0 + $0x24] sm:$0xf]
    %v28 = vld [vmem:[%s0 + $0x28] sm:$0xf]
    %v29 = vld [vmem:[%s0 + $0x2c] sm:$0xf]
    %v30 = vld [vmem:[%s0 + $0x30] sm:$0xf]
    %v31 = vld [vmem:[%s0 + $0x34] sm:$0xf]
    %v32 = vld [vmem:[%s0 + $0x38] sm:$0xf]
    %v33 = vld [vmem:[%s0 + $0x3c] sm:$0xf]
    %v34 = vld [vmem:[%s1] sm:$0xf]
    %v35 = vld [vmem:[%s1 + $0x4] sm:$0xf]
    %v36 = vld [vmem:[%s1 + $0x8] sm:$0xf]
    %v37 = vld [vmem:[%s1 + $0xc] sm:$0xf]
    %v38 = vld [vmem:[%s1 + $0x10] sm:$0xf]
    %v39 = vld [vmem:[%s1 + $0x14] sm:$0xf]
    %v40 = vld [vmem:[%s2] sm:$0x1]
    %v42 = vperm.slane %v40, 0
    %v60 = vunpack.c.l.b16 %v18
    %v61 = vunpack.c.l.b16 %v19
    %v62 = vunpack.c.l.b16 %v20
    %v63 = vunpack.c.l.b16 %v21
    %v64 = vunpack.c.l.b16 %v22
    %v65 = vunpack.c.l.b16 %v23
    %v66 = vunpack.c.l.b16 %v24
    %v67 = vunpack.c.l.b16 %v25
    %v68 = vunpack.c.l.b16 %v26
    %v69 = vunpack.c.l.b16 %v27
    %v70 = vunpack.c.l.b16 %v28
    %v71 = vunpack.c.l.b16 %v29
    %v72 = vunpack.c.l.b16 %v30
    %v73 = vunpack.c.l.b16 %v31
    %v74 = vunpack.c.l.b16 %v32
    %v75 = vunpack.c.l.b16 %v33
    %v76 = vpack.c.b16 %v61, %v60
    %v77 = vpack.c.b16 %v63, %v62
    %v78 = vpack.c.b16 %v65, %v64
    %v79 = vpack.c.b16 %v67, %v66
    %v80 = vpack.c.b16 %v69, %v68
    %v81 = vpack.c.b16 %v71, %v70
    %v82 = vpack.c.b16 %v73, %v72
    %v83 = vpack.c.b16 %v75, %v74
    %v90 = vunpack.c.l.b16 %v34
    %v91 = vunpack.c.l.b16 %v35
    %v92 = vunpack.c.l.b16 %v36
    %v93 = vunpack.c.l.b16 %v37
    %v94 = vunpack.c.l.b16 %v38
    %v95 = vunpack.c.l.b16 %v39
    %v96 = vpack.c.b16 %v91, %v90
    %v97 = vpack.c.b16 %v93, %v92
    %v98 = vpack.c.b16 %v95, %v94
    %vm102 = vcmask 392192
    %v104 = vsel %vm102, %v76, 0
    %v107 = vsel %vm102, %v77, 0
    %v110 = vsel %vm102, %v78, 0
    %v113 = vsel %vm102, %v79, 0
    %v116 = vsel %vm102, %v80, 0
    %v119 = vsel %vm102, %v81, 0
    %v122 = vsel %vm102, %v82, 0
    %v125 = vsel %vm102, %v83, 0
    %127 = vmatpush.bf16.msra.mxu0 0
    %128 = vmatpush.bf16.msra.mxu0 0
    %129 = vmatpush.bf16.msra.mxu0 0
    %130 = vmatpush.bf16.msra.mxu0 0
    %131 = vmatpush.bf16.msra.mxu0 0
    %132 = vmatpush.bf16.msra.mxu0 %v98
    %133 = vmatpush.bf16.msra.mxu0 %v97
    %134 = vmatpush.bf16.msra.mxu0 %v96
    %135 = vmatmul.bf16.gmra.mxu0 %v104
    %v136 = vpop.f32.mrf.mxu0
    %v137 = vadd.f32 %v42, %v136
    %v138 = vpop.f32.mrf.mxu0
    %v139 = vadd.f32 %v42, %v138
    %140 = vmatmul.bf16.gmra.mxu0 %v107
    %v141 = vpop.f32.mrf.mxu0
    %v142 = vadd.f32 %v42, %v141
    %v143 = vpop.f32.mrf.mxu0
    %v144 = vadd.f32 %v42, %v143
    %145 = vmatmul.bf16.gmra.mxu0 %v110
    %v146 = vpop.f32.mrf.mxu0
    %v147 = vadd.f32 %v42, %v146
    %v148 = vpop.f32.mrf.mxu0
    %v149 = vadd.f32 %v42, %v148
    %150 = vmatmul.bf16.gmra.mxu0 %v113
    %v151 = vpop.f32.mrf.mxu0
    %v152 = vadd.f32 %v42, %v151
    %v153 = vpop.f32.mrf.mxu0
    %v154 = vadd.f32 %v42, %v153
    %155 = vmatmul.bf16.gmra.mxu0 %v116
    %v156 = vpop.f32.mrf.mxu0
    %v157 = vadd.f32 %v42, %v156
    %v158 = vpop.f32.mrf.mxu0
    %v159 = vadd.f32 %v42, %v158
    %160 = vmatmul.bf16.gmra.mxu0 %v119
    %v161 = vpop.f32.mrf.mxu0
    %v162 = vadd.f32 %v42, %v161
    %v163 = vpop.f32.mrf.mxu0
    %v164 = vadd.f32 %v42, %v163
    %165 = vmatmul.bf16.gmra.mxu0 %v122
    %v166 = vpop.f32.mrf.mxu0
    %v167 = vadd.f32 %v42, %v166
    %v168 = vpop.f32.mrf.mxu0
    %v169 = vadd.f32 %v42, %v168
    %170 = vmatmul.bf16.gmra.mxu0 %v125
    %v171 = vpop.f32.mrf.mxu0
    %v172 = vadd.f32 %v42, %v171
    %v173 = vpop.f32.mrf.mxu0
    %v174 = vadd.f32 %v42, %v173
    %175 = vdwg.mxu0
    %v176 = vmax.f32 %v137, 0.0
    %v177 = vmax.f32 %v139, 0.0
    %v178 = vmax.f32 %v142, 0.0
    %v179 = vmax.f32 %v144, 0.0
    %v180 = vmax.f32 %v147, 0.0
    %v181 = vmax.f32 %v149, 0.0
    %v182 = vmax.f32 %v152, 0.0
    %v183 = vmax.f32 %v154, 0.0
    %v184 = vmax.f32 %v157, 0.0
    %v185 = vmax.f32 %v159, 0.0
    %v186 = vmax.f32 %v162, 0.0
    %v187 = vmax.f32 %v164, 0.0
    %v188 = vmax.f32 %v167, 0.0
    %v189 = vmax.f32 %v169, 0.0
    %v190 = vmax.f32 %v172, 0.0
    %v191 = vmax.f32 %v174, 0.0
    %192 = vst [vmem:[#allocation2] sm:$0xff] %v176
    %193 = vst [vmem:[#allocation2 + $0x8] sm:$0xff] %v177
    %194 = vst [vmem:[#allocation2 + $0x10] sm:$0xff] %v178
    %195 = vst [vmem:[#allocation2 + $0x18] sm:$0xff] %v179
    %196 = vst [vmem:[#allocation2 + $0x20] sm:$0xff] %v180
    %197 = vst [vmem:[#allocation2 + $0x28] sm:$0xff] %v181
    %198 = vst [vmem:[#allocation2 + $0x30] sm:$0xff] %v182
    %199 = vst [vmem:[#allocation2 + $0x38] sm:$0xff] %v183
    %200 = vst [vmem:[#allocation2 + $0x40] sm:$0xff] %v184
    %201 = vst [vmem:[#allocation2 + $0x48] sm:$0xff] %v185
    %202 = vst [vmem:[#allocation2 + $0x50] sm:$0xff] %v186
    %203 = vst [vmem:[#allocation2 + $0x58] sm:$0xff] %v187
    %204 = vst [vmem:[#allocation2 + $0x60] sm:$0xff] %v188
    %205 = vst [vmem:[#allocation2 + $0x68] sm:$0xff] %v189
    %206 = vst [vmem:[#allocation2 + $0x70] sm:$0xff] %v190
    %207 = vst [vmem:[#allocation2 + $0x78] sm:$0xff] %v191
    %v208 = vpack.c.bf16 %v176, %v176
    %v209 = vpack.c.bf16 %v177, %v177
    %v210 = vpack.c.bf16 %v178, %v178
    %v211 = vpack.c.bf16 %v179, %v179
    %v212 = vpack.c.bf16 %v180, %v180
    %v213 = vpack.c.bf16 %v181, %v181
    %v214 = vpack.c.bf16 %v182, %v182
    %v215 = vpack.c.bf16 %v183, %v183
    %v216 = vpack.c.bf16 %v184, %v184
    %v217 = vpack.c.bf16 %v185, %v185
    %v218 = vpack.c.bf16 %v186, %v186
    %v219 = vpack.c.bf16 %v187, %v187
    %v220 = vpack.c.bf16 %v188, %v188
    %v221 = vpack.c.bf16 %v189, %v189
    %v222 = vpack.c.bf16 %v190, %v190
    %v223 = vpack.c.bf16 %v191, %v191
    %224 = vst [vmem:[%s4] sm:$0xf] %v208
    %225 = vst [vmem:[%s4 + $0x4] sm:$0xf] %v209
    %226 = vst [vmem:[%s4 + $0x8] sm:$0xf] %v210
    %227 = vst [vmem:[%s4 + $0xc] sm:$0xf] %v211
    %228 = vst [vmem:[%s4 + $0x10] sm:$0xf] %v212
    %229 = vst [vmem:[%s4 + $0x14] sm:$0xf] %v213
    %230 = vst [vmem:[%s4 + $0x18] sm:$0xf] %v214
    %231 = vst [vmem:[%s4 + $0x1c] sm:$0xf] %v215
    %232 = vst [vmem:[%s4 + $0x20] sm:$0xf] %v216
    %233 = vst [vmem:[%s4 + $0x24] sm:$0xf] %v217
    %234 = vst [vmem:[%s4 + $0x28] sm:$0xf] %v218
    %235 = vst [vmem:[%s4 + $0x2c] sm:$0xf] %v219
    %236 = vst [vmem:[%s4 + $0x30] sm:$0xf] %v220
    %237 = vst [vmem:[%s4 + $0x34] sm:$0xf] %v221
    %238 = vst [vmem:[%s4 + $0x38] sm:$0xf] %v222
    %239 = vst [vmem:[%s4 + $0x3c] sm:$0xf] %v223
    // Predicated region
    $region14: #{conv_stream_forward.4} parent=1 // pred_check
      _
    $region15: #{conv_stream_forward.4} parent=1 // pred_check_branch
      %241 = sbr.rel (0) target = $region17
    $region16: #{conv_stream_forward.4} parent=1 // pred_region
      %243 = vsyncadd [#allocation3], 0
      %s244 = sshll.u32 [#allocation2], 4
      %s245 = int_to_ptr.vmem [resolvable:$true] %s244
      %s246 = sshll.u32 %s3, 4
      %s247 = int_to_ptr.hbm [resolvable:$true] %s246
      %252 = dma.vmem_to_hbm [thread:$0]  %s245, 2048, %s247, [#allocation3], 128, 128, 8
    $region17: #{conv_stream_forward.4} parent=1 // pred_fallthru
      _
    // Predicated region
    $region18: #{conv_stream_forward.4} parent=1 // pred_check
      _
    $region19: #{conv_stream_forward.4} parent=1 // pred_check_branch
      %254 = sbr.rel (0) target = $region21
    $region20: #{conv_stream_forward.4} parent=1 // pred_region
      _
    $region21: #{conv_stream_forward.4} parent=1 // pred_fallthru
      _
    // Predicated region
    $region22: #{conv_stream_forward.4} parent=1 // pred_check
      _
    $region23: #{conv_stream_forward.4} parent=1 // pred_check_branch
      %256 = sbr.rel (0) target = $region25
    $region24: #{conv_stream_forward.4} parent=1 // pred_region
      %258 = dma.done [#allocation3], 2048
    $region25: #{conv_stream_forward.4} parent=1 // pred_fallthru
      _
    // Predicated region
    $region26: #{conv_stream_forward.4} parent=1 // pred_check
      _
    $region27: #{conv_stream_forward.4} parent=1 // pred_check_branch
      %260 = sbr.rel (0) target = $region29
    $region28: #{conv_stream_forward.4} parent=1 // pred_region
      _
    $region29: #{conv_stream_forward.4} parent=1 // pred_fallthru
      _
    %261 = vsyncpa [#allocation3], 1

// kernel: conv_stream_forward.5
$region0: #{conv_stream_forward.5}
  #allocation0 [shape = 'u32[]', space=smem, size = 0x4, offset = 0x4, fixed_abs, tag = 'smem constant byte address 0x4 - core index']
  #allocation1 [shape = 'u32[72,128]{1,0:T(1,128)}', space=vmem, size = 0x9000, scoped, tag = 'internal scratch']
  %s0 = inlined_call_operand.vmem [shape: bf16[32,432], index: 0, kind: input, shape index: {}]
  %s1 = inlined_call_operand.vmem [shape: bf16[432,128], index: 1, kind: input, shape index: {}]
  %s2 = inlined_call_operand.vmem [shape: f32[1,128], index: 2, kind: input, shape index: {}]
  %s3 = inlined_call_operand.hbm [shape: f32[32,128], index: 3, kind: output, shape index: {0}]
  %s4 = inlined_call_operand.vmem [shape: bf16[32,128], index: 4, kind: output, shape index: {1}]
  %5 = xla_tuple %s3, %s4
  %s6 = sld [smem:[#allocation0]]
  $region30: #{conv_stream_forward.5} parent=0
    _
  %s8 = ssub.s32 1, %s6
  %s9 = scalar_select 0, %s8, %s6
  $region1: #{conv_stream_forward.5} parent=0
    #allocation2 [shape = 'u8[16384]{0}', space=vmem, size = 0x4000, scoped, tag = 'output window, operand 0, single buffered']
    #allocation3 [shape = 's32[1]{0}', space=sflag, size = 0x4, scoped, tag = 'scoped memory for conv_stream_forward.5']
    %10 = vsyncpa [#allocation3], 0
    // Predicated region
    $region2: #{conv_stream_forward.5} parent=1 // pred_check
      _
    $region3: #{conv_stream_forward.5} parent=1 // pred_check_branch
      %12 = sbr.rel (0) target = $region5
    $region4: #{conv_stream_forward.5} parent=1 // pred_region
      _
    $region5: #{conv_stream_forward.5} parent=1 // pred_fallthru
      _
    // Predicated region
    $region6: #{conv_stream_forward.5} parent=1 // pred_check
      _
    $region7: #{conv_stream_forward.5} parent=1 // pred_check_branch
      %14 = sbr.rel (0) target = $region9
    $region8: #{conv_stream_forward.5} parent=1 // pred_region
      _
    $region9: #{conv_stream_forward.5} parent=1 // pred_fallthru
      _
    // Predicated region
    $region10: #{conv_stream_forward.5} parent=1 // pred_check
      _
    $region11: #{conv_stream_forward.5} parent=1 // pred_check_branch
      %16 = sbr.rel (0) target = $region13
    $region12: #{conv_stream_forward.5} parent=1 // pred_region
      _
    $region13: #{conv_stream_forward.5} parent=1 // pred_fallthru
      _
    %v18 = vld [vmem:[%s0] sm:$0xff]
    %v19 = vld [vmem:[%s0 + $0x8] sm:$0xff]
    %v20 = vld [vmem:[%s0 + $0x10] sm:$0xff]
    %v21 = vld [vmem:[%s0 + $0x18] sm:$0xff]
    %v22 = vld [vmem:[%s0 + $0x20] sm:$0xff]
    %v23 = vld [vmem:[%s0 + $0x28] sm:$0xff]
    %v24 = vld [vmem:[%s0 + $0x30] sm:$0xff]
    %v25 = vld [vmem:[%s0 + $0x38] sm:$0xff]
    %v26 = vld [vmem:[%s1] sm:$0xf]
    %v27 = vld [vmem:[%s1 + $0x4] sm:$0xf]
    %v28 = vld [vmem:[%s1 + $0x8] sm:$0xf]
    %v29 = vld [vmem:[%s1 + $0xc] sm:$0xf]
    %v30 = vld [vmem:[%s1 + $0x10] sm:$0xf]
    %v31 = vld [vmem:[%s1 + $0x14] sm:$0xf]
    %v32 = vld [vmem:[%s1 + $0x18] sm:$0xf]
    %v33 = vld [vmem:[%s1 + $0x1c] sm:$0xf]
    %v34 = vld [vmem:[%s1 + $0x20] sm:$0xf]
    %v35 = vld [vmem:[%s1 + $0x24] sm:$0xf]
    %v36 = vld [vmem:[%s1 + $0x28] sm:$0xf]
    %v37 = vld [vmem:[%s1 + $0x2c] sm:$0xf]
    %v38 = vld [vmem:[%s1 + $0x30] sm:$0xf]
    %v39 = vld [vmem:[%s1 + $0x34] sm:$0xf]
    %v40 = vld [vmem:[%s1 + $0x38] sm:$0xf]
    %v41 = vld [vmem:[%s1 + $0x3c] sm:$0xf]
    %v42 = vld [vmem:[%s1 + $0x40] sm:$0xf]
    %v43 = vld [vmem:[%s1 + $0x44] sm:$0xf]
    %v44 = vld [vmem:[%s1 + $0x48] sm:$0xf]
    %v45 = vld [vmem:[%s1 + $0x4c] sm:$0xf]
    %v46 = vld [vmem:[%s1 + $0x50] sm:$0xf]
    %v47 = vld [vmem:[%s1 + $0x54] sm:$0xf]
    %v48 = vld [vmem:[%s1 + $0x58] sm:$0xf]
    %v49 = vld [vmem:[%s1 + $0x5c] sm:$0xf]
    %v50 = vld [vmem:[%s1 + $0x60] sm:$0xf]
    %v51 = vld [vmem:[%s1 + $0x64] sm:$0xf]
    %v52 = vld [vmem:[%s1 + $0x68] sm:$0xf]
    %v53 = vld [vmem:[%s1 + $0x6c] sm:$0xf]
    %v54 = vld [vmem:[%s1 + $0x70] sm:$0xf]
    %v55 = vld [vmem:[%s1 + $0x74] sm:$0xf]
    %v56 = vld [vmem:[%s1 + $0x78] sm:$0xf]
    %v57 = vld [vmem:[%s1 + $0x7c] sm:$0xf]
    %v58 = vld [vmem:[%s1 + $0x80] sm:$0xf]
    %v59 = vld [vmem:[%s1 + $0x84] sm:$0xf]
    %v60 = vld [vmem:[%s1 + $0x88] sm:$0xf]
    %v61 = vld [vmem:[%s1 + $0x8c] sm:$0xf]
    %v62 = vld [vmem:[%s1 + $0x90] sm:$0xf]
    %v63 = vld [vmem:[%s1 + $0x94] sm:$0xf]
    %v64 = vld [vmem:[%s1 + $0x98] sm:$0xf]
    %v65 = vld [vmem:[%s1 + $0x9c] sm:$0xf]
    %v66 = vld [vmem:[%s1 + $0xa0] sm:$0xf]
    %v67 = vld [vmem:[%s1 + $0xa4] sm:$0xf]
    %v68 = vld [vmem:[%s1 + $0xa8] sm:$0xf]
    %v69 = vld [vmem:[%s1 + $0xac] sm:$0xf]
    %v70 = vld [vmem:[%s1 + $0xb0] sm:$0xf]
    %v71 = vld [vmem:[%s1 + $0xb4] sm:$0xf]
    %v72 = vld [vmem:[%s1 + $0xb8] sm:$0xf]
    %v73 = vld [vmem:[%s1 + $0xbc] sm:$0xf]
    %v74 = vld [vmem:[%s1 + $0xc0] sm:$0xf]
    %v75 = vld [vmem:[%s1 + $0xc4] sm:$0xf]
    %v76 = vld [vmem:[%s1 + $0xc8] sm:$0xf]
    %v77 = vld [vmem:[%s1 + $0xcc] sm:$0xf]
    %v78 = vld [vmem:[%s1 + $0xd0] sm:$0xf]
    %v79 = vld [vmem:[%s1 + $0xd4] sm:$0xf]
    %v80 = vld [vmem:[%s2] sm:$0x1]
    %v82 = vperm.slane %v80, 0
    %v92 = vunpack.c.l.b16 %v18
    %v93 = vunpack.c.h.b16 %v18
    %v94 = vunpack.c.l.b16 %v19
    %v95 = vunpack.c.h.b16 %v19
    %v96 = vunpack.c.l.b16 %v20
    %v97 = vunpack.c.h.b16 %v20
    %v98 = vunpack.c.l.b16 %v21
    %v99 = vunpack.c.h.b16 %v21
    %v100 = vunpack.c.l.b16 %v22
    %v101 = vunpack.c.h.b16 %v22
    %v102 = vunpack.c.l.b16 %v23
    %v103 = vunpack.c.h.b16 %v23
    %v104 = vunpack.c.l.b16 %v24
    %v105 = vunpack.c.h.b16 %v24
    %v106 = vunpack.c.l.b16 %v25
    %v107 = vunpack.c.h.b16 %v25
    %v108 = vpack.c.b16 %v96, %v92
    %v109 = vpack.c.b16 %v97, %v93
    %v110 = vpack.c.b16 %v98, %v94
    %v111 = vpack.c.b16 %v99, %v95
    %v112 = vpack.c.b16 %v104, %v100
    %v113 = vpack.c.b16 %v105, %v101
    %v114 = vpack.c.b16 %v106, %v102
    %v115 = vpack.c.b16 %v107, %v103
    %v176 = vunpack.c.l.b16 %v26
    %v177 = vunpack.c.l.b16 %v27
    %v178 = vunpack.c.l.b16 %v28
    %v179 = vunpack.c.l.b16 %v29
    %v180 = vunpack.c.l.b16 %v30
    %v181 = vunpack.c.l.b16 %v31
    %v182 = vunpack.c.l.b16 %v32
    %v183 = vunpack.c.l.b16 %v33
    %v184 = vunpack.c.l.b16 %v34
    %v185 = vunpack.c.l.b16 %v35
    %v186 = vunpack.c.l.b16 %v36
    %v187 = vunpack.c.l.b16 %v37
    %v188 = vunpack.c.l.b16 %v38
    %v189 = vunpack.c.l.b16 %v39
    %v190 = vunpack.c.l.b16 %v40
    %v191 = vunpack.c.l.b16 %v41
    %v192 = vunpack.c.l.b16 %v42
    %v193 = vunpack.c.l.b16 %v43
    %v194 = vunpack.c.l.b16 %v44
    %v195 = vunpack.c.l.b16 %v45
    %v196 = vunpack.c.l.b16 %v46
    %v197 = vunpack.c.l.b16 %v47
    %v198 = vunpack.c.l.b16 %v48
    %v199 = vunpack.c.l.b16 %v49
    %v200 = vunpack.c.l.b16 %v50
    %v201 = vunpack.c.l.b16 %v51
    %v202 = vunpack.c.l.b16 %v52
    %v203 = vunpack.c.l.b16 %v53
    %v204 = vunpack.c.l.b16 %v54
    %v205 = vunpack.c.l.b16 %v55
    %v206 = vunpack.c.l.b16 %v56
    %v207 = vunpack.c.l.b16 %v57
    %v208 = vunpack.c.l.b16 %v58
    %v209 = vunpack.c.l.b16 %v59
    %v210 = vunpack.c.l.b16 %v60
    %v211 = vunpack.c.l.b16 %v61
    %v212 = vunpack.c.l.b16 %v62
    %v213 = vunpack.c.l.b16 %v63
    %v214 = vunpack.c.l.b16 %v64
    %v215 = vunpack.c.l.b16 %v65
    %v216 = vunpack.c.l.b16 %v66
    %v217 = vunpack.c.l.b16 %v67
    %v218 = vunpack.c.l.b16 %v68
    %v219 = vunpack.c.l.b16 %v69
    %v220 = vunpack.c.l.b16 %v70
    %v221 = vunpack.c.l.b16 %v71
    %v222 = vunpack.c.l.b16 %v72
    %v223 = vunpack.c.l.b16 %v73
    %v224 = vunpack.c.l.b16 %v74
    %v225 = vunpack.c.l.b16 %v75
    %v226 = vunpack.c.l.b16 %v76
    %v227 = vunpack.c.l.b16 %v77
    %v228 = vunpack.c.l.b16 %v78
    %v229 = vunpack.c.l.b16 %v79
    %v230 = vpack.c.b16 %v177, %v176
    %v231 = vpack.c.b16 %v179, %v178
    %v232 = vpack.c.b16 %v181, %v180
    %v233 = vpack.c.b16 %v183, %v182
    %v234 = vpack.c.b16 %v185, %v184
    %v235 = vpack.c.b16 %v187, %v186
    %v236 = vpack.c.b16 %v189, %v188
    %v237 = vpack.c.b16 %v191, %v190
    %v238 = vpack.c.b16 %v193, %v192
    %v239 = vpack.c.b16 %v195, %v194
    %v240 = vpack.c.b16 %v197, %v196
    %v241 = vpack.c.b16 %v199, %v198
    %v242 = vpack.c.b16 %v201, %v200
    %v243 = vpack.c.b16 %v203, %v202
    %v244 = vpack.c.b16 %v205, %v204
    %v245 = vpack.c.b16 %v207, %v206
    %v246 = vpack.c.b16 %v209, %v208
    %v247 = vpack.c.b16 %v211, %v210
    %v248 = vpack.c.b16 %v213, %v212
    %v249 = vpack.c.b16 %v215, %v214
    %v250 = vpack.c.b16 %v217, %v216
    %v251 = vpack.c.b16 %v219, %v218
    %v252 = vpack.c.b16 %v221, %v220
    %v253 = vpack.c.b16 %v223, %v222
    %v254 = vpack.c.b16 %v225, %v224
    %v255 = vpack.c.b16 %v227, %v226
    %v256 = vpack.c.b16 %v229, %v228
    %vm284 = vcmask 392192
    %v286 = vsel %vm284, %v111, 0
    %v289 = vsel %vm284, %v115, 0
    %291 = vmatpush.bf16.msra.mxu0 %v237
    %292 = vmatpush.bf16.msra.mxu0 %v236
    %293 = vmatpush.bf16.msra.mxu0 %v235
    %294 = vmatpush.bf16.msra.mxu0 %v234
    %295 = vmatpush.bf16.msra.mxu0 %v233
    %296 = vmatpush.bf16.msra.mxu0 %v232
    %297 = vmatpush.bf16.msra.mxu0 %v231
    %298 = vmatpush.bf16.msra.mxu0 %v230
    %299 = vmatmul.bf16.gmra.mxu0 %v108
    %v300 = vpop.f32.mrf.mxu0
    %v301 = vadd.f32 %v82, %v300
    %v302 = vpop.f32.mrf.mxu0
    %v303 = vadd.f32 %v82, %v302
    %304 = vmatmul.bf16.gmra.mxu0 %v112
    %v305 = vpop.f32.mrf.mxu0
    %v306 = vadd.f32 %v82, %v305
    %v307 = vpop.f32.mrf.mxu0
    %v308 = vadd.f32 %v82, %v307
    %309 = vdwg.mxu0
    %310 = vmatpush.bf16.msra.mxu0 %v245
    %311 = vmatpush.bf16.msra.mxu0 %v244
    %312 = vmatpush.bf16.msra.mxu0 %v243
    %313 = vmatpush.bf16.msra.mxu0 %v242
    %314 = vmatpush.bf16.msra.mxu0 %v241
    %315 = vmatpush.bf16.msra.mxu0 %v240
    %316 = vmatpush.bf16.msra.mxu0 %v239
    %317 = vmatpush.bf16.msra.mxu0 %v238
    %318 = vmatmul.bf16.gmra.mxu0 %v109
    %v319 = vpop.f32.mrf.mxu0
    %v320 = vadd.f32 %v301, %v319
    %v321 = vpop.f32.mrf.mxu0
    %v322 = vadd.f32 %v303, %v321
    %323 = vmatmul.bf16.gmra.mxu0 %v113
    %v324 = vpop.f32.mrf.mxu0
    %v325 = vadd.f32 %v306, %v324
    %v326 = vpop.f32.mrf.mxu0
    %v327 = vadd.f32 %v308, %v326
    %328 = vdwg.mxu0
    %329 = vmatpush.bf16.msra.mxu0 %v253
    %330 = vmatpush.bf16.msra.mxu0 %v252
    %331 = vmatpush.bf16.msra.mxu0 %v251
    %332 = vmatpush.bf16.msra.mxu0 %v250
    %333 = vmatpush.bf16.msra.mxu0 %v249
    %334 = vmatpush.bf16.msra.mxu0 %v248
    %335 = vmatpush.bf16.msra.mxu0 %v247
    %336 = vmatpush.bf16.msra.mxu0 %v246
    %337 = vmatmul.bf16.gmra.mxu0 %v110
    %v338 = vpop.f32.mrf.mxu0
    %v339 = vadd.f32 %v320, %v338
    %v340 = vpop.f32.mrf.mxu0
    %v341 = vadd.f32 %v322, %v340
    %342 = vmatmul.bf16.gmra.mxu0 %v114
    %v343 = vpop.f32.mrf.mxu0
    %v344 = vadd.f32 %v325, %v343
    %v345 = vpop.f32.mrf.mxu0
    %v346 = vadd.f32 %v327, %v345
    %347 = vdwg.mxu0
    %348 = vmatpush.bf16.msra.mxu0 0
    %349 = vmatpush.bf16.msra.mxu0 0
    %350 = vmatpush.bf16.msra.mxu0 0
    %351 = vmatpush.bf16.msra.mxu0 0
    %352 = vmatpush.bf16.msra.mxu0 0
    %353 = vmatpush.bf16.msra.mxu0 %v256
    %354 = vmatpush.bf16.msra.mxu0 %v255
    %355 = vmatpush.bf16.msra.mxu0 %v254
    %356 = vmatmul.bf16.gmra.mxu0 %v286
    %v357 = vpop.f32.mrf.mxu0
    %v358 = vadd.f32 %v339, %v357
    %v359 = vpop.f32.mrf.mxu0
    %v360 = vadd.f32 %v341, %v359
    %361 = vmatmul.bf16.gmra.mxu0 %v289
    %v362 = vpop.f32.mrf.mxu0
    %v363 = vadd.f32 %v344, %v362
    %v364 = vpop.f32.mrf.mxu0
    %v365 = vadd.f32 %v346, %v364
    %366 = vdwg.mxu0
    %v367 = vmax.f32 %v358, 0.0
    %v368 = vmax.f32 %v360, 0.0
    %v369 = vmax.f32 %v363, 0.0
    %v370 = vmax.f32 %v365, 0.0
    %371 = vst [vmem:[#allocation2] sm:$0xff] %v367
    %372 = vst [vmem:[#allocation2 + $0x8] sm:$0xff] %v368
    %373 = vst [vmem:[#allocation2 + $0x10] sm:$0xff] %v369
    %374 = vst [vmem:[#allocation2 + $0x18] sm:$0xff] %v370
    %v375 = vpack.c.bf16 %v367, %v367
    %v376 = vpack.c.bf16 %v368, %v368
    %v377 = vpack.c.bf16 %v369, %v369
    %v378 = vpack.c.bf16 %v370, %v370
    %379 = vst [vmem:[%s4] sm:$0xf] %v375
    %380 = vst [vmem:[%s4 + $0x4] sm:$0xf] %v376
    %381 = vst [vmem:[%s4 + $0x8] sm:$0xf] %v377
    %382 = vst [vmem:[%s4 + $0xc] sm:$0xf] %v378
    // Predicated region
    $region14: #{conv_stream_forward.5} parent=1 // pred_check
      _
    $region15: #{conv_stream_forward.5} parent=1 // pred_check_branch
      %384 = sbr.rel (0) target = $region17
    $region16: #{conv_stream_forward.5} parent=1 // pred_region
      %386 = vsyncadd [#allocation3], 0
      %s387 = sshll.u32 [#allocation2], 4
      %s388 = int_to_ptr.vmem [resolvable:$true] %s387
      %s389 = sshll.u32 %s3, 4
      %s390 = int_to_ptr.hbm [resolvable:$true] %s389
      %395 = dma.vmem_to_hbm [thread:$0]  %s388, 512, %s390, [#allocation3], 128, 128, 8
    $region17: #{conv_stream_forward.5} parent=1 // pred_fallthru
      _
    // Predicated region
    $region18: #{conv_stream_forward.5} parent=1 // pred_check
      _
    $region19: #{conv_stream_forward.5} parent=1 // pred_check_branch
      %397 = sbr.rel (0) target = $region21
    $region20: #{conv_stream_forward.5} parent=1 // pred_region
      _
    $region21: #{conv_stream_forward.5} parent=1 // pred_fallthru
      _
    // Predicated region
    $region22: #{conv_stream_forward.5} parent=1 // pred_check
      _
    $region23: #{conv_stream_forward.5} parent=1 // pred_check_branch
      %399 = sbr.rel (0) target = $region25
    $region24: #{conv_stream_forward.5} parent=1 // pred_region
      %401 = dma.done [#allocation3], 512
    $region25: #{conv_stream_forward.5} parent=1 // pred_fallthru
      _
    // Predicated region
    $region26: #{conv_stream_forward.5} parent=1 // pred_check
      _
    $region27: #{conv_stream_forward.5} parent=1 // pred_check_branch
      %403 = sbr.rel (0) target = $region29
    $region28: #{conv_stream_forward.5} parent=1 // pred_region
      _
    $region29: #{conv_stream_forward.5} parent=1 // pred_fallthru
      _
    %404 = vsyncpa [#allocation3], 1

// kernel: conv_stream_forward.6
$region0: #{conv_stream_forward.6}
  #allocation0 [shape = 'u32[]', space=smem, size = 0x4, offset = 0x4, fixed_abs, tag = 'smem constant byte address 0x4 - core index']
  #allocation1 [shape = 'u32[72,128]{1,0:T(1,128)}', space=vmem, size = 0x9000, scoped, tag = 'internal scratch']
  %s0 = inlined_call_operand.vmem [shape: bf16[8,864], index: 0, kind: input, shape index: {}]
  %s1 = inlined_call_operand.vmem [shape: bf16[864,256], index: 1, kind: input, shape index: {}]
  %s2 = inlined_call_operand.vmem [shape: f32[1,256], index: 2, kind: input, shape index: {}]
  %s3 = inlined_call_operand.vmem [shape: f32[8,256], index: 3, kind: output, shape index: {0}]
  %s4 = inlined_call_operand.vmem [shape: bf16[8,256], index: 4, kind: output, shape index: {1}]
  %5 = xla_tuple %s3, %s4
  %s6 = sld [smem:[#allocation0]]
  $region30: #{conv_stream_forward.6} parent=0
    _
  %s8 = ssub.s32 1, %s6
  %s9 = scalar_select 0, %s8, %s6
  // Predicated region
  $region2: #{conv_stream_forward.6} parent=0 // pred_check
    _
  $region3: #{conv_stream_forward.6} parent=0 // pred_check_branch
    %11 = sbr.rel (0) target = $region5
  $region4: #{conv_stream_forward.6} parent=0 // pred_region
    _
  $region5: #{conv_stream_forward.6} parent=0 // pred_fallthru
    _
  // Predicated region
  $region6: #{conv_stream_forward.6} parent=0 // pred_check
    _
  $region7: #{conv_stream_forward.6} parent=0 // pred_check_branch
    %13 = sbr.rel (0) target = $region9
  $region8: #{conv_stream_forward.6} parent=0 // pred_region
    _
  $region9: #{conv_stream_forward.6} parent=0 // pred_fallthru
    _
  // Predicated region
  $region10: #{conv_stream_forward.6} parent=0 // pred_check
    _
  $region11: #{conv_stream_forward.6} parent=0 // pred_check_branch
    %15 = sbr.rel (0) target = $region13
  $region12: #{conv_stream_forward.6} parent=0 // pred_region
    _
  $region13: #{conv_stream_forward.6} parent=0 // pred_fallthru
    _
  %v17 = vld [vmem:[%s0] sm:$0xff]
  %v18 = vld [vmem:[%s0 + $0x8] sm:$0xff]
  %v19 = vld [vmem:[%s0 + $0x10] sm:$0xff]
  %v20 = vld [vmem:[%s0 + $0x18] sm:$0xf]
  %v21 = vld [vmem:[%s1] sm:$0xff]
  %v22 = vld [vmem:[%s1 + $0x8] sm:$0xff]
  %v23 = vld [vmem:[%s1 + $0x10] sm:$0xff]
  %v24 = vld [vmem:[%s1 + $0x18] sm:$0xff]
  %v25 = vld [vmem:[%s1 + $0x20] sm:$0xff]
  %v26 = vld [vmem:[%s1 + $0x28] sm:$0xff]
  %v27 = vld [vmem:[%s1 + $0x30] sm:$0xff]
  %v28 = vld [vmem:[%s1 + $0x38] sm:$0xff]
  %v29 = vld [vmem:[%s1 + $0x40] sm:$0xff]
  %v30 = vld [vmem:[%s1 + $0x48] sm:$0xff]
  %v31 = vld [vmem:[%s1 + $0x50] sm:$0xff]
  %v32 = vld [vmem:[%s1 + $0x58] sm:$0xff]
  %v33 = vld [vmem:[%s1 + $0x60] sm:$0xff]
  %v34 = vld [vmem:[%s1 + $0x68] sm:$0xff]
  %v35 = vld [vmem:[%s1 + $0x70] sm:$0xff]
  %v36 = vld [vmem:[%s1 + $0x78] sm:$0xff]
  %v37 = vld [vmem:[%s1 + $0x80] sm:$0xff]
  %v38 = vld [vmem:[%s1 + $0x88] sm:$0xff]
  %v39 = vld [vmem:[%s1 + $0x90] sm:$0xff]
  %v40 = vld [vmem:[%s1 + $0x98] sm:$0xff]
  %v41 = vld [vmem:[%s1 + $0xa0] sm:$0xff]
  %v42 = vld [vmem:[%s1 + $0xa8] sm:$0xff]
  %v43 = vld [vmem:[%s1 + $0xb0] sm:$0xff]
  %v44 = vld [vmem:[%s1 + $0xb8] sm:$0xff]
  %v45 = vld [vmem:[%s1 + $0xc0] sm:$0xff]
  %v46 = vld [vmem:[%s1 + $0xc8] sm:$0xff]
  %v47 = vld [vmem:[%s1 + $0xd0] sm:$0xff]
  %v48 = vld [vmem:[%s1 + $0xd8] sm:$0xff]
  %v49 = vld [vmem:[%s1 + $0xe0] sm:$0xff]
  %v50 = vld [vmem:[%s1 + $0xe8] sm:$0xff]
  %v51 = vld [vmem:[%s1 + $0xf0] sm:$0xff]
  %v52 = vld [vmem:[%s1 + $0xf8] sm:$0xff]
  %v53 = vld [vmem:[%s1 + $0x100] sm:$0xff]
  %v54 = vld [vmem:[%s1 + $0x108] sm:$0xff]
  %v55 = vld [vmem:[%s1 + $0x110] sm:$0xff]
  %v56 = vld [vmem:[%s1 + $0x118] sm:$0xff]
  %v57 = vld [vmem:[%s1 + $0x120] sm:$0xff]
  %v58 = vld [vmem:[%s1 + $0x128] sm:$0xff]
  %v59 = vld [vmem:[%s1 + $0x130] sm:$0xff]
  %v60 = vld [vmem:[%s1 + $0x138] sm:$0xff]
  %v61 = vld [vmem:[%s1 + $0x140] sm:$0xff]
  %v62 = vld [vmem:[%s1 + $0x148] sm:$0xff]
  %v63 = vld [vmem:[%s1 + $0x150] sm:$0xff]
  %v64 = vld [vmem:[%s1 + $0x158] sm:$0xff]
  %v65 = vld [vmem:[%s1 + $0x160] sm:$0xff]
  %v66 = vld [vmem:[%s1 + $0x168] sm:$0xff]
  %v67 = vld [vmem:[%s1 + $0x170] sm:$0xff]
  %v68 = vld [vmem:[%s1 + $0x178] sm:$0xff]
  %v69 = vld [vmem:[%s1 + $0x180] sm:$0xff]
  %v70 = vld [vmem:[%s1 + $0x188] sm:$0xff]
  %v71 = vld [vmem:[%s1 + $0x190] sm:$0xff]
  %v72 = vld [vmem:[%s1 + $0x198] sm:$0xff]
  %v73 = vld [vmem:[%s1 + $0x1a0] sm:$0xff]
  %v74 = vld [vmem:[%s1 + $0x1a8] sm:$0xff]
  %v75 = vld [vmem:[%s1 + $0x1b0] sm:$0xff]
  %v76 = vld [vmem:[%s1 + $0x1b8] sm:$0xff]
  %v77 = vld [vmem:[%s1 + $0x1c0] sm:$0xff]
  %v78 = vld [vmem:[%s1 + $0x1c8] sm:$0xff]
  %v79 = vld [vmem:[%s1 + $0x1d0] sm:$0xff]
  %v80 = vld [vmem:[%s1 + $0x1d8] sm:$0xff]
  %v81 = vld [vmem:[%s1 + $0x1e0] sm:$0xff]
  %v82 = vld [vmem:[%s1 + $0x1e8] sm:$0xff]
  %v83 = vld [vmem:[%s1 + $0x1f0] sm:$0xff]
  %v84 = vld [vmem:[%s1 + $0x1f8] sm:$0xff]
  %v85 = vld [vmem:[%s1 + $0x200] sm:$0xff]
  %v86 = vld [vmem:[%s1 + $0x208] sm:$0xff]
  %v87 = vld [vmem:[%s1 + $0x210] sm:$0xff]
  %v88 = vld [vmem:[%s1 + $0x218] sm:$0xff]
  %v89 = vld [vmem:[%s1 + $0x220] sm:$0xff]
  %v90 = vld [vmem:[%s1 + $0x228] sm:$0xff]
  %v91 = vld [vmem:[%s1 + $0x230] sm:$0xff]
  %v92 = vld [vmem:[%s1 + $0x238] sm:$0xff]
  %v93 = vld [vmem:[%s1 + $0x240] sm:$0xff]
  %v94 = vld [vmem:[%s1 + $0x248] sm:$0xff]
  %v95 = vld [vmem:[%s1 + $0x250] sm:$0xff]
  %v96 = vld [vmem:[%s1 + $0x258] sm:$0xff]
  %v97 = vld [vmem:[%s1 + $0x260] sm:$0xff]
  %v98 = vld [vmem:[%s1 + $0x268] sm:$0xff]
  %v99 = vld [vmem:[%s1 + $0x270] sm:$0xff]
  %v100 = vld [vmem:[%s1 + $0x278] sm:$0xff]
  %v101 = vld [vmem:[%s1 + $0x280] sm:$0xff]
  %v102 = vld [vmem:[%s1 + $0x288] sm:$0xff]
  %v103 = vld [vmem:[%s1 + $0x290] sm:$0xff]
  %v104 = vld [vmem:[%s1 + $0x298] sm:$0xff]
  %v105 = vld [vmem:[%s1 + $0x2a0] sm:$0xff]
  %v106 = vld [vmem:[%s1 + $0x2a8] sm:$0xff]
  %v107 = vld [vmem:[%s1 + $0x2b0] sm:$0xff]
  %v108 = vld [vmem:[%s1 + $0x2b8] sm:$0xff]
  %v109 = vld [vmem:[%s1 + $0x2c0] sm:$0xff]
  %v110 = vld [vmem:[%s1 + $0x2c8] sm:$0xff]
  %v111 = vld [vmem:[%s1 + $0x2d0] sm:$0xff]
  %v112 = vld [vmem:[%s1 + $0x2d8] sm:$0xff]
  %v113 = vld [vmem:[%s1 + $0x2e0] sm:$0xff]
  %v114 = vld [vmem:[%s1 + $0x2e8] sm:$0xff]
  %v115 = vld [vmem:[%s1 + $0x2f0] sm:$0xff]
  %v116 = vld [vmem:[%s1 + $0x2f8] sm:$0xff]
  %v117 = vld [vmem:[%s1 + $0x300] sm:$0xff]
  %v118 = vld [vmem:[%s1 + $0x308] sm:$0xff]
  %v119 = vld [vmem:[%s1 + $0x310] sm:$0xff]
  %v120 = vld [vmem:[%s1 + $0x318] sm:$0xff]
  %v121 = vld [vmem:[%s1 + $0x320] sm:$0xff]
  %v122 = vld [vmem:[%s1 + $0x328] sm:$0xff]
  %v123 = vld [vmem:[%s1 + $0x330] sm:$0xff]
  %v124 = vld [vmem:[%s1 + $0x338] sm:$0xff]
  %v125 = vld [vmem:[%s1 + $0x340] sm:$0xff]
  %v126 = vld [vmem:[%s1 + $0x348] sm:$0xff]
  %v127 = vld [vmem:[%s1 + $0x350] sm:$0xff]
  %v128 = vld [vmem:[%s1 + $0x358] sm:$0xff]
  %v129 = vld [vmem:[%s2] sm:$0x3]
  %v131 = vperm.slane %v129, 0
  %v132 = vperm.slane %v129, 1
  %v139 = vunpack.c.l.b16 %v17
  %v140 = vunpack.c.h.b16 %v17
  %v141 = vunpack.c.l.b16 %v18
  %v142 = vunpack.c.h.b16 %v18
  %v143 = vunpack.c.l.b16 %v19
  %v144 = vunpack.c.h.b16 %v19
  %v145 = vunpack.c.l.b16 %v20
  %v146 = vpack.c.b16 %v139, %v139
  %v147 = vpack.c.b16 %v140, %v140
  %v148 = vpack.c.b16 %v141, %v141
  %v149 = vpack.c.b16 %v142, %v142
  %v150 = vpack.c.b16 %v143, %v143
  %v151 = vpack.c.b16 %v144, %v144
  %v152 = vpack.c.b16 %v145, %v145
  %v267 = vunpack.c.l.b16 %v21
  %v268 = vunpack.c.h.b16 %v21
  %v269 = vunpack.c.l.b16 %v22
  %v270 = vunpack.c.h.b16 %v22
  %v271 = vunpack.c.l.b16 %v23
  %v272 = vunpack.c.h.b16 %v23
  %v273 = vunpack.c.l.b16 %v24
  %v274 = vunpack.c.h.b16 %v24
  %v275 = vunpack.c.l.b16 %v25
  %v276 = vunpack.c.h.b16 %v25
  %v277 = vunpack.c.l.b16 %v26
  %v278 = vunpack.c.h.b16 %v26
  %v279 = vunpack.c.l.b16 %v27
  %v280 = vunpack.c.h.b16 %v27
  %v281 = vunpack.c.l.b16 %v28
  %v282 = vunpack.c.h.b16 %v28
  %v283 = vunpack.c.l.b16 %v29
  %v284 = vunpack.c.h.b16 %v29
  %v285 = vunpack.c.l.b16 %v30
  %v286 = vunpack.c.h.b16 %v30
  %v287 = vunpack.c.l.b16 %v31
  %v288 = vunpack.c.h.b16 %v31
  %v289 = vunpack.c.l.b16 %v32
  %v290 = vunpack.c.h.b16 %v32
  %v291 = vunpack.c.l.b16 %v33
  %v292 = vunpack.c.h.b16 %v33
  %v293 = vunpack.c.l.b16 %v34
  %v294 = vunpack.c.h.b16 %v34
  %v295 = vunpack.c.l.b16 %v35
  %v296 = vunpack.c.h.b16 %v35
  %v297 = vunpack.c.l.b16 %v36
  %v298 = vunpack.c.h.b16 %v36
  %v299 = vunpack.c.l.b16 %v37
  %v300 = vunpack.c.h.b16 %v37
  %v301 = vunpack.c.l.b16 %v38
  %v302 = vunpack.c.h.b16 %v38
  %v303 = vunpack.c.l.b16 %v39
  %v304 = vunpack.c.h.b16 %v39
  %v305 = vunpack.c.l.b16 %v40
  %v306 = vunpack.c.h.b16 %v40
  %v307 = vunpack.c.l.b16 %v41
  %v308 = vunpack.c.h.b16 %v41
  %v309 = vunpack.c.l.b16 %v42
  %v310 = vunpack.c.h.b16 %v42
  %v311 = vunpack.c.l.b16 %v43
  %v312 = vunpack.c.h.b16 %v43
  %v313 = vunpack.c.l.b16 %v44
  %v314 = vunpack.c.h.b16 %v44
  %v315 = vunpack.c.l.b16 %v45
  %v316 = vunpack.c.h.b16 %v45
  %v317 = vunpack.c.l.b16 %v46
  %v318 = vunpack.c.h.b16 %v46
  %v319 = vunpack.c.l.b16 %v47
  %v320 = vunpack.c.h.b16 %v47
  %v321 = vunpack.c.l.b16 %v48
  %v322 = vunpack.c.h.b16 %v48
  %v323 = vunpack.c.l.b16 %v49
  %v324 = vunpack.c.h.b16 %v49
  %v325 = vunpack.c.l.b16 %v50
  %v326 = vunpack.c.h.b16 %v50
  %v327 = vunpack.c.l.b16 %v51
  %v328 = vunpack.c.h.b16 %v51
  %v329 = vunpack.c.l.b16 %v52
  %v330 = vunpack.c.h.b16 %v52
  %v331 = vunpack.c.l.b16 %v53
  %v332 = vunpack.c.h.b16 %v53
  %v333 = vunpack.c.l.b16 %v54
  %v334 = vunpack.c.h.b16 %v54
  %v335 = vunpack.c.l.b16 %v55
  %v336 = vunpack.c.h.b16 %v55
  %v337 = vunpack.c.l.b16 %v56
  %v338 = vunpack.c.h.b16 %v56
  %v339 = vunpack.c.l.b16 %v57
  %v340 = vunpack.c.h.b16 %v57
  %v341 = vunpack.c.l.b16 %v58
  %v342 = vunpack.c.h.b16 %v58
  %v343 = vunpack.c.l.b16 %v59
  %v344 = vunpack.c.h.b16 %v59
  %v345 = vunpack.c.l.b16 %v60
  %v346 = vunpack.c.h.b16 %v60
  %v347 = vunpack.c.l.b16 %v61
  %v348 = vunpack.c.h.b16 %v61
  %v349 = vunpack.c.l.b16 %v62
  %v350 = vunpack.c.h.b16 %v62
  %v351 = vunpack.c.l.b16 %v63
  %v352 = vunpack.c.h.b16 %v63
  %v353 = vunpack.c.l.b16 %v64
  %v354 = vunpack.c.h.b16 %v64
  %v355 = vunpack.c.l.b16 %v65
  %v356 = vunpack.c.h.b16 %v65
  %v357 = vunpack.c.l.b16 %v66
  %v358 = vunpack.c.h.b16 %v66
  %v359 = vunpack.c.l.b16 %v67
  %v360 = vunpack.c.h.b16 %v67
  %v361 = vunpack.c.l.b16 %v68
  %v362 = vunpack.c.h.b16 %v68
  %v363 = vunpack.c.l.b16 %v69
  %v364 = vunpack.c.h.b16 %v69
  %v365 = vunpack.c.l.b16 %v70
  %v366 = vunpack.c.h.b16 %v70
  %v367 = vunpack.c.l.b16 %v71
  %v368 = vunpack.c.h.b16 %v71
  %v369 = vunpack.c.l.b16 %v72
  %v370 = vunpack.c.h.b16 %v72
  %v371 = vunpack.c.l.b16 %v73
  %v372 = vunpack.c.h.b16 %v73
  %v373 = vunpack.c.l.b16 %v74
  %v374 = vunpack.c.h.b16 %v74
  %v375 = vunpack.c.l.b16 %v75
  %v376 = vunpack.c.h.b16 %v75
  %v377 = vunpack.c.l.b16 %v76
  %v378 = vunpack.c.h.b16 %v76
  %v379 = vunpack.c.l.b16 %v77
  %v380 = vunpack.c.h.b16 %v77
  %v381 = vunpack.c.l.b16 %v78
  %v382 = vunpack.c.h.b16 %v78
  %v383 = vunpack.c.l.b16 %v79
  %v384 = vunpack.c.h.b16 %v79
  %v385 = vunpack.c.l.b16 %v80
  %v386 = vunpack.c.h.b16 %v80
  %v387 = vunpack.c.l.b16 %v81
  %v388 = vunpack.c.h.b16 %v81
  %v389 = vunpack.c.l.b16 %v82
  %v390 = vunpack.c.h.b16 %v82
  %v391 = vunpack.c.l.b16 %v83
  %v392 = vunpack.c.h.b16 %v83
  %v393 = vunpack.c.l.b16 %v84
  %v394 = vunpack.c.h.b16 %v84
  %v395 = vunpack.c.l.b16 %v85
  %v396 = vunpack.c.h.b16 %v85
  %v397 = vunpack.c.l.b16 %v86
  %v398 = vunpack.c.h.b16 %v86
  %v399 = vunpack.c.l.b16 %v87
  %v400 = vunpack.c.h.b16 %v87
  %v401 = vunpack.c.l.b16 %v88
  %v402 = vunpack.c.h.b16 %v88
  %v403 = vunpack.c.l.b16 %v89
  %v404 = vunpack.c.h.b16 %v89
  %v405 = vunpack.c.l.b16 %v90
  %v406 = vunpack.c.h.b16 %v90
  %v407 = vunpack.c.l.b16 %v91
  %v408 = vunpack.c.h.b16 %v91
  %v409 = vunpack.c.l.b16 %v92
  %v410 = vunpack.c.h.b16 %v92
  %v411 = vunpack.c.l.b16 %v93
  %v412 = vunpack.c.h.b16 %v93
  %v413 = vunpack.c.l.b16 %v94
  %v414 = vunpack.c.h.b16 %v94
  %v415 = vunpack.c.l.b16 %v95
  %v416 = vunpack.c.h.b16 %v95
  %v417 = vunpack.c.l.b16 %v96
  %v418 = vunpack.c.h.b16 %v96
  %v419 = vunpack.c.l.b16 %v97
  %v420 = vunpack.c.h.b16 %v97
  %v421 = vunpack.c.l.b16 %v98
  %v422 = vunpack.c.h.b16 %v98
  %v423 = vunpack.c.l.b16 %v99
  %v424 = vunpack.c.h.b16 %v99
  %v425 = vunpack.c.l.b16 %v100
  %v426 = vunpack.c.h.b16 %v100
  %v427 = vunpack.c.l.b16 %v101
  %v428 = vunpack.c.h.b16 %v101
  %v429 = vunpack.c.l.b16 %v102
  %v430 = vunpack.c.h.b16 %v102
  %v431 = vunpack.c.l.b16 %v103
  %v432 = vunpack.c.h.b16 %v103
  %v433 = vunpack.c.l.b16 %v104
  %v434 = vunpack.c.h.b16 %v104
  %v435 = vunpack.c.l.b16 %v105
  %v436 = vunpack.c.h.b16 %v105
  %v437 = vunpack.c.l.b16 %v106
  %v438 = vunpack.c.h.b16 %v106
  %v439 = vunpack.c.l.b16 %v107
  %v440 = vunpack.c.h.b16 %v107
  %v441 = vunpack.c.l.b16 %v108
  %v442 = vunpack.c.h.b16 %v108
  %v443 = vunpack.c.l.b16 %v109
  %v444 = vunpack.c.h.b16 %v109
  %v445 = vunpack.c.l.b16 %v110
  %v446 = vunpack.c.h.b16 %v110
  %v447 = vunpack.c.l.b16 %v111
  %v448 = vunpack.c.h.b16 %v111
  %v449 = vunpack.c.l.b16 %v112
  %v450 = vunpack.c.h.b16 %v112
  %v451 = vunpack.c.l.b16 %v113
  %v452 = vunpack.c.h.b16 %v113
  %v453 = vunpack.c.l.b16 %v114
  %v454 = vunpack.c.h.b16 %v114
  %v455 = vunpack.c.l.b16 %v115
  %v456 = vunpack.c.h.b16 %v115
  %v457 = vunpack.c.l.b16 %v116
  %v458 = vunpack.c.h.b16 %v116
  %v459 = vunpack.c.l.b16 %v117
  %v460 = vunpack.c.h.b16 %v117
  %v461 = vunpack.c.l.b16 %v118
  %v462 = vunpack.c.h.b16 %v118
  %v463 = vunpack.c.l.b16 %v119
  %v464 = vunpack.c.h.b16 %v119
  %v465 = vunpack.c.l.b16 %v120
  %v466 = vunpack.c.h.b16 %v120
  %v467 = vunpack.c.l.b16 %v121
  %v468 = vunpack.c.h.b16 %v121
  %v469 = vunpack.c.l.b16 %v122
  %v470 = vunpack.c.h.b16 %v122
  %v471 = vunpack.c.l.b16 %v123
  %v472 = vunpack.c.h.b16 %v123
  %v473 = vunpack.c.l.b16 %v124
  %v474 = vunpack.c.h.b16 %v124
  %v475 = vunpack.c.l.b16 %v125
  %v476 = vunpack.c.h.b16 %v125
  %v477 = vunpack.c.l.b16 %v126
  %v478 = vunpack.c.h.b16 %v126
  %v479 = vunpack.c.l.b16 %v127
  %v480 = vunpack.c.h.b16 %v127
  %v481 = vunpack.c.l.b16 %v128
  %v482 = vunpack.c.h.b16 %v128
  %v483 = vpack.c.b16 %v269, %v267
  %v484 = vpack.c.b16 %v270, %v268
  %v485 = vpack.c.b16 %v273, %v271
  %v486 = vpack.c.b16 %v274, %v272
  %v487 = vpack.c.b16 %v277, %v275
  %v488 = vpack.c.b16 %v278, %v276
  %v489 = vpack.c.b16 %v281, %v279
  %v490 = vpack.c.b16 %v282, %v280
  %v491 = vpack.c.b16 %v285, %v283
  %v492 = vpack.c.b16 %v286, %v284
  %v493 = vpack.c.b16 %v289, %v287
  %v494 = vpack.c.b16 %v290, %v288
  %v495 = vpack.c.b16 %v293, %v291
  %v496 = vpack.c.b16 %v294, %v292
  %v497 = vpack.c.b16 %v297, %v295
  %v498 = vpack.c.b16 %v298, %v296
  %v499 = vpack.c.b16 %v301, %v299
  %v500 = vpack.c.b16 %v302, %v300
  %v501 = vpack.c.b16 %v305, %v303
  %v502 = vpack.c.b16 %v306, %v304
  %v503 = vpack.c.b16 %v309, %v307
  %v504 = vpack.c.b16 %v310, %v308
  %v505 = vpack.c.b16 %v313, %v311
  %v506 = vpack.c.b16 %v314, %v312
  %v507 = vpack.c.b16 %v317, %v315
  %v508 = vpack.c.b16 %v318, %v316
  %v509 = vpack.c.b16 %v321, %v319
  %v510 = vpack.c.b16 %v322, %v320
  %v511 = vpack.c.b16 %v325, %v323
  %v512 = vpack.c.b16 %v326, %v324
  %v513 = vpack.c.b16 %v329, %v327
  %v514 = vpack.c.b16 %v330, %v328
  %v515 = vpack.c.b16 %v333, %v331
  %v516 = vpack.c.b16 %v334, %v332
  %v517 = vpack.c.b16 %v337, %v335
  %v518 = vpack.c.b16 %v338, %v336
  %v519 = vpack.c.b16 %v341, %v339
  %v520 = vpack.c.b16 %v342, %v340
  %v521 = vpack.c.b16 %v345, %v343
  %v522 = vpack.c.b16 %v346, %v344
  %v523 = vpack.c.b16 %v349, %v347
  %v524 = vpack.c.b16 %v350, %v348
  %v525 = vpack.c.b16 %v353, %v351
  %v526 = vpack.c.b16 %v354, %v352
  %v527 = vpack.c.b16 %v357, %v355
  %v528 = vpack.c.b16 %v358, %v356
  %v529 = vpack.c.b16 %v361, %v359
  %v530 = vpack.c.b16 %v362, %v360
  %v531 = vpack.c.b16 %v365, %v363
  %v532 = vpack.c.b16 %v366, %v364
  %v533 = vpack.c.b16 %v369, %v367
  %v534 = vpack.c.b16 %v370, %v368
  %v535 = vpack.c.b16 %v373, %v371
  %v536 = vpack.c.b16 %v374, %v372
  %v537 = vpack.c.b16 %v377, %v375
  %v538 = vpack.c.b16 %v378, %v376
  %v539 = vpack.c.b16 %v381, %v379
  %v540 = vpack.c.b16 %v382, %v380
  %v541 = vpack.c.b16 %v385, %v383
  %v542 = vpack.c.b16 %v386, %v384
  %v543 = vpack.c.b16 %v389, %v387
  %v544 = vpack.c.b16 %v390, %v388
  %v545 = vpack.c.b16 %v393, %v391
  %v546 = vpack.c.b16 %v394, %v392
  %v547 = vpack.c.b16 %v397, %v395
  %v548 = vpack.c.b16 %v398, %v396
  %v549 = vpack.c.b16 %v401, %v399
  %v550 = vpack.c.b16 %v402, %v400
  %v551 = vpack.c.b16 %v405, %v403
  %v552 = vpack.c.b16 %v406, %v404
  %v553 = vpack.c.b16 %v409, %v407
  %v554 = vpack.c.b16 %v410, %v408
  %v555 = vpack.c.b16 %v413, %v411
  %v556 = vpack.c.b16 %v414, %v412
  %v557 = vpack.c.b16 %v417, %v415
  %v558 = vpack.c.b16 %v418, %v416
  %v559 = vpack.c.b16 %v421, %v419
  %v560 = vpack.c.b16 %v422, %v420
  %v561 = vpack.c.b16 %v425, %v423
  %v562 = vpack.c.b16 %v426, %v424
  %v563 = vpack.c.b16 %v429, %v427
  %v564 = vpack.c.b16 %v430, %v428
  %v565 = vpack.c.b16 %v433, %v431
  %v566 = vpack.c.b16 %v434, %v432
  %v567 = vpack.c.b16 %v437, %v435
  %v568 = vpack.c.b16 %v438, %v436
  %v569 = vpack.c.b16 %v441, %v439
  %v570 = vpack.c.b16 %v442, %v440
  %v571 = vpack.c.b16 %v445, %v443
  %v572 = vpack.c.b16 %v446, %v444
  %v573 = vpack.c.b16 %v449, %v447
  %v574 = vpack.c.b16 %v450, %v448
  %v575 = vpack.c.b16 %v453, %v451
  %v576 = vpack.c.b16 %v454, %v452
  %v577 = vpack.c.b16 %v457, %v455
  %v578 = vpack.c.b16 %v458, %v456
  %v579 = vpack.c.b16 %v461, %v459
  %v580 = vpack.c.b16 %v462, %v460
  %v581 = vpack.c.b16 %v465, %v463
  %v582 = vpack.c.b16 %v466, %v464
  %v583 = vpack.c.b16 %v469, %v467
  %v584 = vpack.c.b16 %v470, %v468
  %v585 = vpack.c.b16 %v473, %v471
  %v586 = vpack.c.b16 %v474, %v472
  %v587 = vpack.c.b16 %v477, %v475
  %v588 = vpack.c.b16 %v478, %v476
  %v589 = vpack.c.b16 %v481, %v479
  %v590 = vpack.c.b16 %v482, %v480
  %vm699 = vcmask 785408
  %v701 = vsel %vm699, %v152, 0
  %703 = vmatpush.bf16.msra.mxu0 %v497
  %704 = vmatpush.bf16.msra.mxu0 %v495
  %705 = vmatpush.bf16.msra.mxu0 %v493
  %706 = vmatpush.bf16.msra.mxu0 %v491
  %707 = vmatpush.bf16.msra.mxu0 %v489
  %708 = vmatpush.bf16.msra.mxu0 %v487
  %709 = vmatpush.bf16.msra.mxu0 %v485
  %710 = vmatpush.bf16.msra.mxu0 %v483
  %711 = vmatmul.bf16.gmra.mxu0 %v146
  %v712 = vpop.f32.mrf.mxu0
  %v713 = vadd.f32 %v131, %v712
  %v714 = vpop.f32.mrf.mxu0
  %715 = vdwg.mxu0
  %716 = vmatpush.bf16.msra.mxu0 %v513
  %717 = vmatpush.bf16.msra.mxu0 %v511
  %718 = vmatpush.bf16.msra.mxu0 %v509
  %719 = vmatpush.bf16.msra.mxu0 %v507
  %720 = vmatpush.bf16.msra.mxu0 %v505
  %721 = vmatpush.bf16.msra.mxu0 %v503
  %722 = vmatpush.bf16.msra.mxu0 %v501
  %723 = vmatpush.bf16.msra.mxu0 %v499
  %724 = vmatmul.bf16.gmra.mxu0 %v147
  %v725 = vpop.f32.mrf.mxu0
  %v726 = vadd.f32 %v713, %v725
  %v727 = vpop.f32.mrf.mxu0
  %728 = vdwg.mxu0
  %729 = vmatpush.bf16.msra.mxu0 %v529
  %730 = vmatpush.bf16.msra.mxu0 %v527
  %731 = vmatpush.bf16.msra.mxu0 %v525
  %732 = vmatpush.bf16.msra.mxu0 %v523
  %733 = vmatpush.bf16.msra.mxu0 %v521
  %734 = vmatpush.bf16.msra.mxu0 %v519
  %735 = vmatpush.bf16.msra.mxu0 %v517
  %736 = vmatpush.bf16.msra.mxu0 %v515
  %737 = vmatmul.bf16.gmra.mxu0 %v148
  %v738 = vpop.f32.mrf.mxu0
  %v739 = vadd.f32 %v726, %v738
  %v740 = vpop.f32.mrf.mxu0
  %741 = vdwg.mxu0
  %742 = vmatpush.bf16.msra.mxu0 %v545
  %743 = vmatpush.bf16.msra.mxu0 %v543
  %744 = vmatpush.bf16.msra.mxu0 %v541
  %745 = vmatpush.bf16.msra.mxu0 %v539
  %746 = vmatpush.bf16.msra.mxu0 %v537
  %747 = vmatpush.bf16.msra.mxu0 %v535
  %748 = vmatpush.bf16.msra.mxu0 %v533
  %749 = vmatpush.bf16.msra.mxu0 %v531
  %750 = vmatmul.bf16.gmra.mxu0 %v149
  %v751 = vpop.f32.mrf.mxu0
  %v752 = vadd.f32 %v739, %v751
  %v753 = vpop.f32.mrf.mxu0
  %754 = vdwg.mxu0
  %755 = vmatpush.bf16.msra.mxu0 %v561
  %756 = vmatpush.bf16.msra.mxu0 %v559
  %757 = vmatpush.bf16.msra.mxu0 %v557
  %758 = vmatpush.bf16.msra.mxu0 %v555
  %759 = vmatpush.bf16.msra.mxu0 %v553
  %760 = vmatpush.bf16.msra.mxu0 %v551
  %761 = vmatpush.bf16.msra.mxu0 %v549
  %762 = vmatpush.bf16.msra.mxu0 %v547
  %763 = vmatmul.bf16.gmra.mxu0 %v150
  %v764 = vpop.f32.mrf.mxu0
  %v765 = vadd.f32 %v752, %v764
  %v766 = vpop.f32.mrf.mxu0
  %767 = vdwg.mxu0
  %768 = vmatpush.bf16.msra.mxu0 %v577
  %769 = vmatpush.bf16.msra.mxu0 %v575
  %770 = vmatpush.bf16.msra.mxu0 %v573
  %771 = vmatpush.bf16.msra.mxu0 %v571
  %772 = vmatpush.bf16.msra.mxu0 %v569
  %773 = vmatpush.bf16.msra.mxu0 %v567
  %774 = vmatpush.bf16.msra.mxu0 %v565
  %775 = vmatpush.bf16.msra.mxu0 %v563
  %776 = vmatmul.bf16.gmra.mxu0 %v151
  %v777 = vpop.f32.mrf.mxu0
  %v778 = vadd.f32 %v765, %v777
  %v779 = vpop.f32.mrf.mxu0
  %780 = vdwg.mxu0
  %781 = vmatpush.bf16.msra.mxu0 0
  %782 = vmatpush.bf16.msra.mxu0 0
  %783 = vmatpush.bf16.msra.mxu0 %v589
  %784 = vmatpush.bf16.msra.mxu0 %v587
  %785 = vmatpush.bf16.msra.mxu0 %v585
  %786 = vmatpush.bf16.msra.mxu0 %v583
  %787 = vmatpush.bf16.msra.mxu0 %v581
  %788 = vmatpush.bf16.msra.mxu0 %v579
  %789 = vmatmul.bf16.gmra.mxu0 %v701
  %v790 = vpop.f32.mrf.mxu0
  %v791 = vadd.f32 %v778, %v790
  %v792 = vpop.f32.mrf.mxu0
  %793 = vdwg.mxu0
  %794 = vmatpush.bf16.msra.mxu0 %v498
  %795 = vmatpush.bf16.msra.mxu0 %v496
  %796 = vmatpush.bf16.msra.mxu0 %v494
  %797 = vmatpush.bf16.msra.mxu0 %v492
  %798 = vmatpush.bf16.msra.mxu0 %v490
  %799 = vmatpush.bf16.msra.mxu0 %v488
  %800 = vmatpush.bf16.msra.mxu0 %v486
  %801 = vmatpush.bf16.msra.mxu0 %v484
  %802 = vmatmul.bf16.gmra.mxu0 %v146
  %v803 = vpop.f32.mrf.mxu0
  %v804 = vadd.f32 %v132, %v803
  %v805 = vpop.f32.mrf.mxu0
  %806 = vdwg.mxu0
  %807 = vmatpush.bf16.msra.mxu0 %v514
  %808 = vmatpush.bf16.msra.mxu0 %v512
  %809 = vmatpush.bf16.msra.mxu0 %v510
  %810 = vmatpush.bf16.msra.mxu0 %v508
  %811 = vmatpush.bf16.msra.mxu0 %v506
  %812 = vmatpush.bf16.msra.mxu0 %v504
  %813 = vmatpush.bf16.msra.mxu0 %v502
  %814 = vmatpush.bf16.msra.mxu0 %v500
  %815 = vmatmul.bf16.gmra.mxu0 %v147
  %v816 = vpop.f32.mrf.mxu0
  %v817 = vadd.f32 %v804, %v816
  %v818 = vpop.f32.mrf.mxu0
  %819 = vdwg.mxu0
  %820 = vmatpush.bf16.msra.mxu0 %v530
  %821 = vmatpush.bf16.msra.mxu0 %v528
  %822 = vmatpush.bf16.msra.mxu0 %v526
  %823 = vmatpush.bf16.msra.mxu0 %v524
  %824 = vmatpush.bf16.msra.mxu0 %v522
  %825 = vmatpush.bf16.msra.mxu0 %v520
  %826 = vmatpush.bf16.msra.mxu0 %v518
  %827 = vmatpush.bf16.msra.mxu0 %v516
  %828 = vmatmul.bf16.gmra.mxu0 %v148
  %v829 = vpop.f32.mrf.mxu0
  %v830 = vadd.f32 %v817, %v829
  %v831 = vpop.f32.mrf.mxu0
  %832 = vdwg.mxu0
  %833 = vmatpush.bf16.msra.mxu0 %v546
  %834 = vmatpush.bf16.msra.mxu0 %v544
  %835 = vmatpush.bf16.msra.mxu0 %v542
  %836 = vmatpush.bf16.msra.mxu0 %v540
  %837 = vmatpush.bf16.msra.mxu0 %v538
  %838 = vmatpush.bf16.msra.mxu0 %v536
  %839 = vmatpush.bf16.msra.mxu0 %v534
  %840 = vmatpush.bf16.msra.mxu0 %v532
  %841 = vmatmul.bf16.gmra.mxu0 %v149
  %v842 = vpop.f32.mrf.mxu0
  %v843 = vadd.f32 %v830, %v842
  %v844 = vpop.f32.mrf.mxu0
  %845 = vdwg.mxu0
  %846 = vmatpush.bf16.msra.mxu0 %v562
  %847 = vmatpush.bf16.msra.mxu0 %v560
  %848 = vmatpush.bf16.msra.mxu0 %v558
  %849 = vmatpush.bf16.msra.mxu0 %v556
  %850 = vmatpush.bf16.msra.mxu0 %v554
  %851 = vmatpush.bf16.msra.mxu0 %v552
  %852 = vmatpush.bf16.msra.mxu0 %v550
  %853 = vmatpush.bf16.msra.mxu0 %v548
  %854 = vmatmul.bf16.gmra.mxu0 %v150
  %v855 = vpop.f32.mrf.mxu0
  %v856 = vadd.f32 %v843, %v855
  %v857 = vpop.f32.mrf.mxu0
  %858 = vdwg.mxu0
  %859 = vmatpush.bf16.msra.mxu0 %v578
  %860 = vmatpush.bf16.msra.mxu0 %v576
  %861 = vmatpush.bf16.msra.mxu0 %v574
  %862 = vmatpush.bf16.msra.mxu0 %v572
  %863 = vmatpush.bf16.msra.mxu0 %v570
  %864 = vmatpush.bf16.msra.mxu0 %v568
  %865 = vmatpush.bf16.msra.mxu0 %v566
  %866 = vmatpush.bf16.msra.mxu0 %v564
  %867 = vmatmul.bf16.gmra.mxu0 %v151
  %v868 = vpop.f32.mrf.mxu0
  %v869 = vadd.f32 %v856, %v868
  %v870 = vpop.f32.mrf.mxu0
  %871 = vdwg.mxu0
  %872 = vmatpush.bf16.msra.mxu0 0
  %873 = vmatpush.bf16.msra.mxu0 0
  %874 = vmatpush.bf16.msra.mxu0 %v590
  %875 = vmatpush.bf16.msra.mxu0 %v588
  %876 = vmatpush.bf16.msra.mxu0 %v586
  %877 = vmatpush.bf16.msra.mxu0 %v584
  %878 = vmatpush.bf16.msra.mxu0 %v582
  %879 = vmatpush.bf16.msra.mxu0 %v580
  %880 = vmatmul.bf16.gmra.mxu0 %v701
  %v881 = vpop.f32.mrf.mxu0
  %v882 = vadd.f32 %v869, %v881
  %v883 = vpop.f32.mrf.mxu0
  %884 = vdwg.mxu0
  %v885 = vmax.f32 %v791, 0.0
  %v886 = vmax.f32 %v882, 0.0
  %887 = vst [vmem:[%s3] sm:$0xff] %v885
  %888 = vst [vmem:[%s3 + $0x8] sm:$0xff] %v886
  %v889 = vpack.c.bf16 %v886, %v885
  %890 = vst [vmem:[%s4] sm:$0xff] %v889
  // Predicated region
  $region14: #{conv_stream_forward.6} parent=0 // pred_check
    _
  $region15: #{conv_stream_forward.6} parent=0 // pred_check_branch
    %892 = sbr.rel (0) target = $region17
  $region16: #{conv_stream_forward.6} parent=0 // pred_region
    _
  $region17: #{conv_stream_forward.6} parent=0 // pred_fallthru
    _
  // Predicated region
  $region18: #{conv_stream_forward.6} parent=0 // pred_check
    _
  $region19: #{conv_stream_forward.6} parent=0 // pred_check_branch
    %894 = sbr.rel (0) target = $region21
  $region20: #{conv_stream_forward.6} parent=0 // pred_region
    _
  $region21: #{conv_stream_forward.6} parent=0 // pred_fallthru
    _
  // Predicated region
  $region22: #{conv_stream_forward.6} parent=0 // pred_check
    _
  $region23: #{conv_stream_forward.6} parent=0 // pred_check_branch
    %896 = sbr.rel (0) target = $region25
  $region24: #{conv_stream_forward.6} parent=0 // pred_region
    _
  $region25: #{conv_stream_forward.6} parent=0 // pred_fallthru
    _
  // Predicated region
  $region26: #{conv_stream_forward.6} parent=0 // pred_check
    _
  $region27: #{conv_stream_forward.6} parent=0 // pred_check_branch
    %898 = sbr.rel (0) target = $region29
  $region28: #{conv_stream_forward.6} parent=0 // pred_region
    _
  $region29: #{conv_stream_forward.6} parent=0 // pred_fallthru
    _

// kernel: conv_stream_forward.7
$region0: #{conv_stream_forward.7}
  #allocation0 [shape = 'u32[]', space=smem, size = 0x4, offset = 0x4, fixed_abs, tag = 'smem constant byte address 0x4 - core index']
  #allocation1 [shape = 'u32[72,128]{1,0:T(1,128)}', space=vmem, size = 0x9000, scoped, tag = 'internal scratch']
  %s0 = inlined_call_operand.vmem [shape: bf16[8,1728], index: 0, kind: input, shape index: {}]
  %s1 = inlined_call_operand.vmem [shape: bf16[1728,384], index: 1, kind: input, shape index: {}]
  %s2 = inlined_call_operand.vmem [shape: f32[1,384], index: 2, kind: input, shape index: {}]
  %s3 = inlined_call_operand.vmem [shape: f32[8,384], index: 3, kind: output, shape index: {0}]
  %s4 = inlined_call_operand.hbm [shape: bf16[8,384], index: 4, kind: output, shape index: {1}]
  %5 = xla_tuple %s3, %s4
  %s6 = sld [smem:[#allocation0]]
  $region30: #{conv_stream_forward.7} parent=0
    _
  %s8 = ssub.s32 1, %s6
  %s9 = scalar_select 0, %s8, %s6
  $region1: #{conv_stream_forward.7} parent=0
    #allocation2 [shape = 'u8[6144]{0}', space=vmem, size = 0x1800, scoped, tag = 'output window, operand 1, single buffered']
    #allocation3 [shape = 's32[1]{0}', space=sflag, size = 0x4, scoped, tag = 'scoped memory for conv_stream_forward.7']
    %10 = vsyncpa [#allocation3], 0
    // Predicated region
    $region2: #{conv_stream_forward.7} parent=1 // pred_check
      _
    $region3: #{conv_stream_forward.7} parent=1 // pred_check_branch
      %12 = sbr.rel (0) target = $region5
    $region4: #{conv_stream_forward.7} parent=1 // pred_region
      _
    $region5: #{conv_stream_forward.7} parent=1 // pred_fallthru
      _
    // Predicated region
    $region6: #{conv_stream_forward.7} parent=1 // pred_check
      _
    $region7: #{conv_stream_forward.7} parent=1 // pred_check_branch
      %14 = sbr.rel (0) target = $region9
    $region8: #{conv_stream_forward.7} parent=1 // pred_region
      _
    $region9: #{conv_stream_forward.7} parent=1 // pred_fallthru
      _
    // Predicated region
    $region10: #{conv_stream_forward.7} parent=1 // pred_check
      _
    $region11: #{conv_stream_forward.7} parent=1 // pred_check_branch
      %16 = sbr.rel (0) target = $region13
    $region12: #{conv_stream_forward.7} parent=1 // pred_region
      _
    $region13: #{conv_stream_forward.7} parent=1 // pred_fallthru
      _
    %v18 = vld [vmem:[%s0] sm:$0xff]
    %v19 = vld [vmem:[%s0 + $0x8] sm:$0xff]
    %v20 = vld [vmem:[%s0 + $0x10] sm:$0xff]
    %v21 = vld [vmem:[%s0 + $0x18] sm:$0xff]
    %v22 = vld [vmem:[%s0 + $0x20] sm:$0xff]
    %v23 = vld [vmem:[%s0 + $0x28] sm:$0xff]
    %v24 = vld [vmem:[%s0 + $0x30] sm:$0xff]
    %v25 = vld [vmem:[%s1] sm:$0xff]
    %v26 = vld [vmem:[%s1 + $0x8] sm:$0xf]
    %v27 = vld [vmem:[%s1 + $0xc] sm:$0xff]
    %v28 = vld [vmem:[%s1 + $0x14] sm:$0xf]
    %v29 = vld [vmem:[%s1 + $0x18] sm:$0xff]
    %v30 = vld [vmem:[%s1 + $0x20] sm:$0xf]
    %v31 = vld [vmem:[%s1 + $0x24] sm:$0xff]
    %v32 = vld [vmem:[%s1 + $0x2c] sm:$0xf]
    %v33 = vld [vmem:[%s1 + $0x30] sm:$0xff]
    %v34 = vld [vmem:[%s1 + $0x38] sm:$0xf]
    %v35 = vld [vmem:[%s1 + $0x3c] sm:$0xff]
    %v36 = vld [vmem:[%s1 + $0x44] sm:$0xf]
    %v37 = vld [vmem:[%s1 + $0x48] sm:$0xff]
    %v38 = vld [vmem:[%s1 + $0x50] sm:$0xf]
    %v39 = vld [vmem:[%s1 + $0x54] sm:$0xff]
    %v40 = vld [vmem:[%s1 + $0x5c] sm:$0xf]
    %v41 = vld [vmem:[%s1 + $0x60] sm:$0xff]
    %v42 = vld [vmem:[%s1 + $0x68] sm:$0xf]
    %v43 = vld [vmem:[%s1 + $0x6c] sm:$0xff]
    %v44 = vld [vmem:[%s1 + $0x74] sm:$0xf]
    %v45 = vld [vmem:[%s1 + $0x78] sm:$0xff]
    %v46 = vld [vmem:[%s1 + $0x80] sm:$0xf]
    %v47 = vld [vmem:[%s1 + $0x84] sm:$0xff]
    %v48 = vld [vmem:[%s1 + $0x8c] sm:$0xf]
    %v49 = vld [vmem:[%s1 + $0x90] sm:$0xff]
    %v50 = vld [vmem:[%s1 + $0x98] sm:$0xf]
    %v51 = vld [vmem:[%s1 + $0x9c] sm:$0xff]
    %v52 = vld [vmem:[%s1 + $0xa4] sm:$0xf]
    %v53 = vld [vmem:[%s1 + $0xa8] sm:$0xff]
    %v54 = vld [vmem:[%s1 + $0xb0] sm:$0xf]
    %v55 = vld [vmem:[%s1 + $0xb4] sm:$0xff]
    %v56 = vld [vmem:[%s1 + $0xbc] sm:$0xf]
    %v57 = vld [vmem:[%s1 + $0xc0] sm:$0xff]
    %v58 = vld [vmem:[%s1 + $0xc8] sm:$0xf]
    %v59 = vld [vmem:[%s1 + $0xcc] sm:$0xff]
    %v60 = vld [vmem:[%s1 + $0xd4] sm:$0xf]
    %v61 = vld [vmem:[%s1 + $0xd8] sm:$0xff]
    %v62 = vld [vmem:[%s1 + $0xe0] sm:$0xf]
    %v63 = vld [vmem:[%s1 + $0xe4] sm:$0xff]
    %v64 = vld [vmem:[%s1 + $0xec] sm:$0xf]
    %v65 = vld [vmem:[%s1 + $0xf0] sm:$0xff]
    %v66 = vld [vmem:[%s1 + $0xf8] sm:$0xf]
    %v67 = vld [vmem:[%s1 + $0xfc] sm:$0xff]
    %v68 = vld [vmem:[%s1 + $0x104] sm:$0xf]
    %v69 = vld [vmem:[%s1 + $0x108] sm:$0xff]
    %v70 = vld [vmem:[%s1 + $0x110] sm:$0xf]
    %v71 = vld [vmem:[%s1 + $0x114] sm:$0xff]
    %v72 = vld [vmem:[%s1 + $0x11c] sm:$0xf]
    %v73 = vld [vmem:[%s1 + $0x120] sm:$0xff]
    %v74 = vld [vmem:[%s1 + $0x128] sm:$0xf]
    %v75 = vld [vmem:[%s1 + $0x12c] sm:$0xff]
    %v76 = vld [vmem:[%s1 + $0x134] sm:$0xf]
    %v77 = vld [vmem:[%s1 + $0x138] sm:$0xff]
    %v78 = vld [vmem:[%s1 + $0x140] sm:$0xf]
    %v79 = vld [vmem:[%s1 + $0x144] sm:$0xff]
    %v80 = vld [vmem:[%s1 + $0x14c] sm:$0xf]
    %v81 = vld [vmem:[%s1 + $0x150] sm:$0xff]
    %v82 = vld [vmem:[%s1 + $0x158] sm:$0xf]
    %v83 = vld [vmem:[%s1 + $0x15c] sm:$0xff]
    %v84 = vld [vmem:[%s1 + $0x164] sm:$0xf]
    %v85 = vld [vmem:[%s1 + $0x168] sm:$0xff]
    %v86 = vld [vmem:[%s1 + $0x170] sm:$0xf]
    %v87 = vld [vmem:[%s1 + $0x174] sm:$0xff]
    %v88 = vld [vmem:[%s1 + $0x17c] sm:$0xf]
    %v89 = vld [vmem:[%s1 + $0x180] sm:$0xff]
    %v90 = vld [vmem:[%s1 + $0x188] sm:$0xf]
    %v91 = vld [vmem:[%s1 + $0x18c] sm:$0xff]
    %v92 = vld [vmem:[%s1 + $0x194] sm:$0xf]
    %v93 = vld [vmem:[%s1 + $0x198] sm:$0xff]
    %v94 = vld [vmem:[%s1 + $0x1a0] sm:$0xf]
    %v95 = vld [vmem:[%s1 + $0x1a4] sm:$0xff]
    %v96 = vld [vmem:[%s1 + $0x1ac] sm:$0xf]
    %v97 = vld [vmem:[%s1 + $0x1b0] sm:$0xff]
    %v98 = vld [vmem:[%s1 + $0x1b8] sm:$0xf]
    %v99 = vld [vmem:[%s1 + $0x1bc] sm:$0xff]
    %v100 = vld [vmem:[%s1 + $0x1c4] sm:$0xf]
    %v101 = vld [vmem:[%s1 + $0x1c8] sm:$0xff]
    %v102 = vld [vmem:[%s1 + $0x1d0] sm:$0xf]
    %v103 = vld [vmem:[%s1 + $0x1d4] sm:$0xff]
    %v104 = vld [vmem:[%s1 + $0x1dc] sm:$0xf]
    %v105 = vld [vmem:[%s1 + $0x1e0] sm:$0xff]
    %v106 = vld [vmem:[%s1 + $0x1e8] sm:$0xf]
    %v107 = vld [vmem:[%s1 + $0x1ec] sm:$0xff]
    %v108 = vld [vmem:[%s1 + $0x1f4] sm:$0xf]
    %v109 = vld [vmem:[%s1 + $0x1f8] sm:$0xff]
    %v110 = vld [vmem:[%s1 + $0x200] sm:$0xf]
    %v111 = vld [vmem:[%s1 + $0x204] sm:$0xff]
    %v112 = vld [vmem:[%s1 + $0x20c] sm:$0xf]
    %v113 = vld [vmem:[%s1 + $0x210] sm:$0xff]
    %v114 = vld [vmem:[%s1 + $0x218] sm:$0xf]
    %v115 = vld [vmem:[%s1 + $0x21c] sm:$0xff]
    %v116 = vld [vmem:[%s1 + $0x224] sm:$0xf]
    %v117 = vld [vmem:[%s1 + $0x228] sm:$0xff]
    %v118 = vld [vmem:[%s1 + $0x230] sm:$0xf]
    %v119 = vld [vmem:[%s1 + $0x234] sm:$0xff]
    %v120 = vld [vmem:[%s1 + $0x23c] sm:$0xf]
    %v121 = vld [vmem:[%s1 + $0x240] sm:$0xff]
    %v122 = vld [vmem:[%s1 + $0x248] sm:$0xf]
    %v123 = vld [vmem:[%s1 + $0x24c] sm:$0xff]
    %v124 = vld [vmem:[%s1 + $0x254] sm:$0xf]
    %v125 = vld [vmem:[%s1 + $0x258] sm:$0xff]
    %v126 = vld [vmem:[%s1 + $0x260] sm:$0xf]
    %v127 = vld [vmem:[%s1 + $0x264] sm:$0xff]
    %v128 = vld [vmem:[%s1 + $0x26c] sm:$0xf]
    %v129 = vld [vmem:[%s1 + $0x270] sm:$0xff]
    %v130 = vld [vmem:[%s1 + $0x278] sm:$0xf]
    %v131 = vld [vmem:[%s1 + $0x27c] sm:$0xff]
    %v132 = vld [vmem:[%s1 + $0x284] sm:$0xf]
    %v133 = vld [vmem:[%s1 + $0x288] sm:$0xff]
    %v134 = vld [vmem:[%s1 + $0x290] sm:$0xf]
    %v135 = vld [vmem:[%s1 + $0x294] sm:$0xff]
    %v136 = vld [vmem:[%s1 + $0x29c] sm:$0xf]
    %v137 = vld [vmem:[%s1 + $0x2a0] sm:$0xff]
    %v138 = vld [vmem:[%s1 + $0x2a8] sm:$0xf]
    %v139 = vld [vmem:[%s1 + $0x2ac] sm:$0xff]
    %v140 = vld [vmem:[%s1 + $0x2b4] sm:$0xf]
    %v141 = vld [vmem:[%s1 + $0x2b8] sm:$0xff]
    %v142 = vld [vmem:[%s1 + $0x2c0] sm:$0xf]
    %v143 = vld [vmem:[%s1 + $0x2c4] sm:$0xff]
    %v144 = vld [vmem:[%s1 + $0x2cc] sm:$0xf]
    %v145 = vld [vmem:[%s1 + $0x2d0] sm:$0xff]
    %v146 = vld [vmem:[%s1 + $0x2d8] sm:$0xf]
    %v147 = vld [vmem:[%s1 + $0x2dc] sm:$0xff]
    %v148 = vld [vmem:[%s1 + $0x2e4] sm:$0xf]
    %v149 = vld [vmem:[%s1 + $0x2e8] sm:$0xff]
    %v150 = vld [vmem:[%s1 + $0x2f0] sm:$0xf]
    %v151 = vld [vmem:[%s1 + $0x2f4] sm:$0xff]
    %v152 = vld [vmem:[%s1 + $0x2fc] sm:$0xf]
    %v153 = vld [vmem:[%s1 + $0x300] sm:$0xff]
    %v154 = vld [vmem:[%s1 + $0x308] sm:$0xf]
    %v155 = vld [vmem:[%s1 + $0x30c] sm:$0xff]
    %v156 = vld [vmem:[%s1 + $0x314] sm:$0xf]
    %v157 = vld [vmem:[%s1 + $0x318] sm:$0xff]
    %v158 = vld [vmem:[%s1 + $0x320] sm:$0xf]
    %v159 = vld [vmem:[%s1 + $0x324] sm:$0xff]
    %v160 = vld [vmem:[%s1 + $0x32c] sm:$0xf]
    %v161 = vld [vmem:[%s1 + $0x330] sm:$0xff]
    %v162 = vld [vmem:[%s1 + $0x338] sm:$0xf]
    %v163 = vld [vmem:[%s1 + $0x33c] sm:$0xff]
    %v164 = vld [vmem:[%s1 + $0x344] sm:$0xf]
    %v165 = vld [vmem:[%s1 + $0x348] sm:$0xff]
    %v166 = vld [vmem:[%s1 + $0x350] sm:$0xf]
    %v167 = vld [vmem:[%s1 + $0x354] sm:$0xff]
    %v168 = vld [vmem:[%s1 + $0x35c] sm:$0xf]
    %v169 = vld [vmem:[%s1 + $0x360] sm:$0xff]
    %v170 = vld [vmem:[%s1 + $0x368] sm:$0xf]
    %v171 = vld [vmem:[%s1 + $0x36c] sm:$0xff]
    %v172 = vld [vmem:[%s1 + $0x374] sm:$0xf]
    %v173 = vld [vmem:[%s1 + $0x378] sm:$0xff]
    %v174 = vld [vmem:[%s1 + $0x380] sm:$0xf]
    %v175 = vld [vmem:[%s1 + $0x384] sm:$0xff]
    %v176 = vld [vmem:[%s1 + $0x38c] sm:$0xf]
    %v177 = vld [vmem:[%s1 + $0x390] sm:$0xff]
    %v178 = vld [vmem:[%s1 + $0x398] sm:$0xf]
    %v179 = vld [vmem:[%s1 + $0x39c] sm:$0xff]
    %v180 = vld [vmem:[%s1 + $0x3a4] sm:$0xf]
    %v181 = vld [vmem:[%s1 + $0x3a8] sm:$0xff]
    %v182 = vld [vmem:[%s1 + $0x3b0] sm:$0xf]
    %v183 = vld [vmem:[%s1 + $0x3b4] sm:$0xff]
    %v184 = vld [vmem:[%s1 + $0x3bc] sm:$0xf]
    %v185 = vld [vmem:[%s1 + $0x3c0] sm:$0xff]
    %v186 = vld [vmem:[%s1 + $0x3c8] sm:$0xf]
    %v187 = vld [vmem:[%s1 + $0x3cc] sm:$0xff]
    %v188 = vld [vmem:[%s1 + $0x3d4] sm:$0xf]
    %v189 = vld [vmem:[%s1 + $0x3d8] sm:$0xff]
    %v190 = vld [vmem:[%s1 + $0x3e0] sm:$0xf]
    %v191 = vld [vmem:[%s1 + $0x3e4] sm:$0xff]
    %v192 = vld [vmem:[%s1 + $0x3ec] sm:$0xf]
    %v193 = vld [vmem:[%s1 + $0x3f0] sm:$0xff]
    %v194 = vld [vmem:[%s1 + $0x3f8] sm:$0xf]
    %v195 = vld [vmem:[%s1 + $0x3fc] sm:$0xff]
    %v196 = vld [vmem:[%s1 + $0x404] sm:$0xf]
    %v197 = vld [vmem:[%s1 + $0x408] sm:$0xff]
    %v198 = vld [vmem:[%s1 + $0x410] sm:$0xf]
    %v199 = vld [vmem:[%s1 + $0x414] sm:$0xff]
    %v200 = vld [vmem:[%s1 + $0x41c] sm:$0xf]
    %v201 = vld [vmem:[%s1 + $0x420] sm:$0xff]
    %v202 = vld [vmem:[%s1 + $0x428] sm:$0xf]
    %v203 = vld [vmem:[%s1 + $0x42c] sm:$0xff]
    %v204 = vld [vmem:[%s1 + $0x434] sm:$0xf]
    %v205 = vld [vmem:[%s1 + $0x438] sm:$0xff]
    %v206 = vld [vmem:[%s1 + $0x440] sm:$0xf]
    %v207 = vld [vmem:[%s1 + $0x444] sm:$0xff]
    %v208 = vld [vmem:[%s1 + $0x44c] sm:$0xf]
    %v209 = vld [vmem:[%s1 + $0x450] sm:$0xff]
    %v210 = vld [vmem:[%s1 + $0x458] sm:$0xf]
    %v211 = vld [vmem:[%s1 + $0x45c] sm:$0xff]
    %v212 = vld [vmem:[%s1 + $0x464] sm:$0xf]
    %v213 = vld [vmem:[%s1 + $0x468] sm:$0xff]
    %v214 = vld [vmem:[%s1 + $0x470] sm:$0xf]
    %v215 = vld [vmem:[%s1 + $0x474] sm:$0xff]
    %v216 = vld [vmem:[%s1 + $0x47c] sm:$0xf]
    %v217 = vld [vmem:[%s1 + $0x480] sm:$0xff]
    %v218 = vld [vmem:[%s1 + $0x488] sm:$0xf]
    %v219 = vld [vmem:[%s1 + $0x48c] sm:$0xff]
    %v220 = vld [vmem:[%s1 + $0x494] sm:$0xf]
    %v221 = vld [vmem:[%s1 + $0x498] sm:$0xff]
    %v222 = vld [vmem:[%s1 + $0x4a0] sm:$0xf]
    %v223 = vld [vmem:[%s1 + $0x4a4] sm:$0xff]
    %v224 = vld [vmem:[%s1 + $0x4ac] sm:$0xf]
    %v225 = vld [vmem:[%s1 + $0x4b0] sm:$0xff]
    %v226 = vld [vmem:[%s1 + $0x4b8] sm:$0xf]
    %v227 = vld [vmem:[%s1 + $0x4bc] sm:$0xff]
    %v228 = vld [vmem:[%s1 + $0x4c4] sm:$0xf]
    %v229 = vld [vmem:[%s1 + $0x4c8] sm:$0xff]
    %v230 = vld [vmem:[%s1 + $0x4d0] sm:$0xf]
    %v231 = vld [vmem:[%s1 + $0x4d4] sm:$0xff]
    %v232 = vld [vmem:[%s1 + $0x4dc] sm:$0xf]
    %v233 = vld [vmem:[%s1 + $0x4e0] sm:$0xff]
    %v234 = vld [vmem:[%s1 + $0x4e8] sm:$0xf]
    %v235 = vld [vmem:[%s1 + $0x4ec] sm:$0xff]
    %v236 = vld [vmem:[%s1 + $0x4f4] sm:$0xf]
    %v237 = vld [vmem:[%s1 + $0x4f8] sm:$0xff]
    %v238 = vld [vmem:[%s1 + $0x500] sm:$0xf]
    %v239 = vld [vmem:[%s1 + $0x504] sm:$0xff]
    %v240 = vld [vmem:[%s1 + $0x50c] sm:$0xf]
    %v241 = vld [vmem:[%s1 + $0x510] sm:$0xff]
    %v242 = vld [vmem:[%s1 + $0x518] sm:$0xf]
    %v243 = vld [vmem:[%s1 + $0x51c] sm:$0xff]
    %v244 = vld [vmem:[%s1 + $0x524] sm:$0xf]
    %v245 = vld [vmem:[%s1 + $0x528] sm:$0xff]
    %v246 = vld [vmem:[%s1 + $0x530] sm:$0xf]
    %v247 = vld [vmem:[%s1 + $0x534] sm:$0xff]
    %v248 = vld [vmem:[%s1 + $0x53c] sm:$0xf]
    %v249 = vld [vmem:[%s1 + $0x540] sm:$0xff]
    %v250 = vld [vmem:[%s1 + $0x548] sm:$0xf]
    %v251 = vld [vmem:[%s1 + $0x54c] sm:$0xff]
    %v252 = vld [vmem:[%s1 + $0x554] sm:$0xf]
    %v253 = vld [vmem:[%s1 + $0x558] sm:$0xff]
    %v254 = vld [vmem:[%s1 + $0x560] sm:$0xf]
    %v255 = vld [vmem:[%s1 + $0x564] sm:$0xff]
    %v256 = vld [vmem:[%s1 + $0x56c] sm:$0xf]
    %v257 = vld [vmem:[%s1 + $0x570] sm:$0xff]
    %v258 = vld [vmem:[%s1 + $0x578] sm:$0xf]
    %v259 = vld [vmem:[%s1 + $0x57c] sm:$0xff]
    %v260 = vld [vmem:[%s1 + $0x584] sm:$0xf]
    %v261 = vld [vmem:[%s1 + $0x588] sm:$0xff]
    %v262 = vld [vmem:[%s1 + $0x590] sm:$0xf]
    %v263 = vld [vmem:[%s1 + $0x594] sm:$0xff]
    %v264 = vld [vmem:[%s1 + $0x59c] sm:$0xf]
    %v265 = vld [vmem:[%s1 + $0x5a0] sm:$0xff]
    %v266 = vld [vmem:[%s1 + $0x5a8] sm:$0xf]
    %v267 = vld [vmem:[%s1 + $0x5ac] sm:$0xff]
    %v268 = vld [vmem:[%s1 + $0x5b4] sm:$0xf]
    %v269 = vld [vmem:[%s1 + $0x5b8] sm:$0xff]
    %v270 = vld [vmem:[%s1 + $0x5c0] sm:$0xf]
    %v271 = vld [vmem:[%s1 + $0x5c4] sm:$0xff]
    %v272 = vld [vmem:[%s1 + $0x5cc] sm:$0xf]
    %v273 = vld [vmem:[%s1 + $0x5d0] sm:$0xff]
    %v274 = vld [vmem:[%s1 + $0x5d8] sm:$0xf]
    %v275 = vld [vmem:[%s1 + $0x5dc] sm:$0xff]
    %v276 = vld [vmem:[%s1 + $0x5e4] sm:$0xf]
    %v277 = vld [vmem:[%s1 + $0x5e8] sm:$0xff]
    %v278 = vld [vmem:[%s1 + $0x5f0] sm:$0xf]
    %v279 = vld [vmem:[%s1 + $0x5f4] sm:$0xff]
    %v280 = vld [vmem:[%s1 + $0x5fc] sm:$0xf]
    %v281 = vld [vmem:[%s1 + $0x600] sm:$0xff]
    %v282 = vld [vmem:[%s1 + $0x608] sm:$0xf]
    %v283 = vld [vmem:[%s1 + $0x60c] sm:$0xff]
    %v284 = vld [vmem:[%s1 + $0x614] sm:$0xf]
    %v285 = vld [vmem:[%s1 + $0x618] sm:$0xff]
    %v286 = vld [vmem:[%s1 + $0x620] sm:$0xf]
    %v287 = vld [vmem:[%s1 + $0x624] sm:$0xff]
    %v288 = vld [vmem:[%s1 + $0x62c] sm:$0xf]
    %v289 = vld [vmem:[%s1 + $0x630] sm:$0xff]
    %v290 = vld [vmem:[%s1 + $0x638] sm:$0xf]
    %v291 = vld [vmem:[%s1 + $0x63c] sm:$0xff]
    %v292 = vld [vmem:[%s1 + $0x644] sm:$0xf]
    %v293 = vld [vmem:[%s1 + $0x648] sm:$0xff]
    %v294 = vld [vmem:[%s1 + $0x650] sm:$0xf]
    %v295 = vld [vmem:[%s1 + $0x654] sm:$0xff]
    %v296 = vld [vmem:[%s1 + $0x65c] sm:$0xf]
    %v297 = vld [vmem:[%s1 + $0x660] sm:$0xff]
    %v298 = vld [vmem:[%s1 + $0x668] sm:$0xf]
    %v299 = vld [vmem:[%s1 + $0x66c] sm:$0xff]
    %v300 = vld [vmem:[%s1 + $0x674] sm:$0xf]
    %v301 = vld [vmem:[%s1 + $0x678] sm:$0xff]
    %v302 = vld [vmem:[%s1 + $0x680] sm:$0xf]
    %v303 = vld [vmem:[%s1 + $0x684] sm:$0xff]
    %v304 = vld [vmem:[%s1 + $0x68c] sm:$0xf]
    %v305 = vld [vmem:[%s1 + $0x690] sm:$0xff]
    %v306 = vld [vmem:[%s1 + $0x698] sm:$0xf]
    %v307 = vld [vmem:[%s1 + $0x69c] sm:$0xff]
    %v308 = vld [vmem:[%s1 + $0x6a4] sm:$0xf]
    %v309 = vld [vmem:[%s1 + $0x6a8] sm:$0xff]
    %v310 = vld [vmem:[%s1 + $0x6b0] sm:$0xf]
    %v311 = vld [vmem:[%s1 + $0x6b4] sm:$0xff]
    %v312 = vld [vmem:[%s1 + $0x6bc] sm:$0xf]
    %v313 = vld [vmem:[%s1 + $0x6c0] sm:$0xff]
    %v314 = vld [vmem:[%s1 + $0x6c8] sm:$0xf]
    %v315 = vld [vmem:[%s1 + $0x6cc] sm:$0xff]
    %v316 = vld [vmem:[%s1 + $0x6d4] sm:$0xf]
    %v317 = vld [vmem:[%s1 + $0x6d8] sm:$0xff]
    %v318 = vld [vmem:[%s1 + $0x6e0] sm:$0xf]
    %v319 = vld [vmem:[%s1 + $0x6e4] sm:$0xff]
    %v320 = vld [vmem:[%s1 + $0x6ec] sm:$0xf]
    %v321 = vld [vmem:[%s1 + $0x6f0] sm:$0xff]
    %v322 = vld [vmem:[%s1 + $0x6f8] sm:$0xf]
    %v323 = vld [vmem:[%s1 + $0x6fc] sm:$0xff]
    %v324 = vld [vmem:[%s1 + $0x704] sm:$0xf]
    %v325 = vld [vmem:[%s1 + $0x708] sm:$0xff]
    %v326 = vld [vmem:[%s1 + $0x710] sm:$0xf]
    %v327 = vld [vmem:[%s1 + $0x714] sm:$0xff]
    %v328 = vld [vmem:[%s1 + $0x71c] sm:$0xf]
    %v329 = vld [vmem:[%s1 + $0x720] sm:$0xff]
    %v330 = vld [vmem:[%s1 + $0x728] sm:$0xf]
    %v331 = vld [vmem:[%s1 + $0x72c] sm:$0xff]
    %v332 = vld [vmem:[%s1 + $0x734] sm:$0xf]
    %v333 = vld [vmem:[%s1 + $0x738] sm:$0xff]
    %v334 = vld [vmem:[%s1 + $0x740] sm:$0xf]
    %v335 = vld [vmem:[%s1 + $0x744] sm:$0xff]
    %v336 = vld [vmem:[%s1 + $0x74c] sm:$0xf]
    %v337 = vld [vmem:[%s1 + $0x750] sm:$0xff]
    %v338 = vld [vmem:[%s1 + $0x758] sm:$0xf]
    %v339 = vld [vmem:[%s1 + $0x75c] sm:$0xff]
    %v340 = vld [vmem:[%s1 + $0x764] sm:$0xf]
    %v341 = vld [vmem:[%s1 + $0x768] sm:$0xff]
    %v342 = vld [vmem:[%s1 + $0x770] sm:$0xf]
    %v343 = vld [vmem:[%s1 + $0x774] sm:$0xff]
    %v344 = vld [vmem:[%s1 + $0x77c] sm:$0xf]
    %v345 = vld [vmem:[%s1 + $0x780] sm:$0xff]
    %v346 = vld [vmem:[%s1 + $0x788] sm:$0xf]
    %v347 = vld [vmem:[%s1 + $0x78c] sm:$0xff]
    %v348 = vld [vmem:[%s1 + $0x794] sm:$0xf]
    %v349 = vld [vmem:[%s1 + $0x798] sm:$0xff]
    %v350 = vld [vmem:[%s1 + $0x7a0] sm:$0xf]
    %v351 = vld [vmem:[%s1 + $0x7a4] sm:$0xff]
    %v352 = vld [vmem:[%s1 + $0x7ac] sm:$0xf]
    %v353 = vld [vmem:[%s1 + $0x7b0] sm:$0xff]
    %v354 = vld [vmem:[%s1 + $0x7b8] sm:$0xf]
    %v355 = vld [vmem:[%s1 + $0x7bc] sm:$0xff]
    %v356 = vld [vmem:[%s1 + $0x7c4] sm:$0xf]
    %v357 = vld [vmem:[%s1 + $0x7c8] sm:$0xff]
    %v358 = vld [vmem:[%s1 + $0x7d0] sm:$0xf]
    %v359 = vld [vmem:[%s1 + $0x7d4] sm:$0xff]
    %v360 = vld [vmem:[%s1 + $0x7dc] sm:$0xf]
    %v361 = vld [vmem:[%s1 + $0x7e0] sm:$0xff]
    %v362 = vld [vmem:[%s1 + $0x7e8] sm:$0xf]
    %v363 = vld [vmem:[%s1 + $0x7ec] sm:$0xff]
    %v364 = vld [vmem:[%s1 + $0x7f4] sm:$0xf]
    %v365 = vld [vmem:[%s1 + $0x7f8] sm:$0xff]
    %v366 = vld [vmem:[%s1 + $0x800] sm:$0xf]
    %v367 = vld [vmem:[%s1 + $0x804] sm:$0xff]
    %v368 = vld [vmem:[%s1 + $0x80c] sm:$0xf]
    %v369 = vld [vmem:[%s1 + $0x810] sm:$0xff]
    %v370 = vld [vmem:[%s1 + $0x818] sm:$0xf]
    %v371 = vld [vmem:[%s1 + $0x81c] sm:$0xff]
    %v372 = vld [vmem:[%s1 + $0x824] sm:$0xf]
    %v373 = vld [vmem:[%s1 + $0x828] sm:$0xff]
    %v374 = vld [vmem:[%s1 + $0x830] sm:$0xf]
    %v375 = vld [vmem:[%s1 + $0x834] sm:$0xff]
    %v376 = vld [vmem:[%s1 + $0x83c] sm:$0xf]
    %v377 = vld [vmem:[%s1 + $0x840] sm:$0xff]
    %v378 = vld [vmem:[%s1 + $0x848] sm:$0xf]
    %v379 = vld [vmem:[%s1 + $0x84c] sm:$0xff]
    %v380 = vld [vmem:[%s1 + $0x854] sm:$0xf]
    %v381 = vld [vmem:[%s1 + $0x858] sm:$0xff]
    %v382 = vld [vmem:[%s1 + $0x860] sm:$0xf]
    %v383 = vld [vmem:[%s1 + $0x864] sm:$0xff]
    %v384 = vld [vmem:[%s1 + $0x86c] sm:$0xf]
    %v385 = vld [vmem:[%s1 + $0x870] sm:$0xff]
    %v386 = vld [vmem:[%s1 + $0x878] sm:$0xf]
    %v387 = vld [vmem:[%s1 + $0x87c] sm:$0xff]
    %v388 = vld [vmem:[%s1 + $0x884] sm:$0xf]
    %v389 = vld [vmem:[%s1 + $0x888] sm:$0xff]
    %v390 = vld [vmem:[%s1 + $0x890] sm:$0xf]
    %v391 = vld [vmem:[%s1 + $0x894] sm:$0xff]
    %v392 = vld [vmem:[%s1 + $0x89c] sm:$0xf]
    %v393 = vld [vmem:[%s1 + $0x8a0] sm:$0xff]
    %v394 = vld [vmem:[%s1 + $0x8a8] sm:$0xf]
    %v395 = vld [vmem:[%s1 + $0x8ac] sm:$0xff]
    %v396 = vld [vmem:[%s1 + $0x8b4] sm:$0xf]
    %v397 = vld [vmem:[%s1 + $0x8b8] sm:$0xff]
    %v398 = vld [vmem:[%s1 + $0x8c0] sm:$0xf]
    %v399 = vld [vmem:[%s1 + $0x8c4] sm:$0xff]
    %v400 = vld [vmem:[%s1 + $0x8cc] sm:$0xf]
    %v401 = vld [vmem:[%s1 + $0x8d0] sm:$0xff]
    %v402 = vld [vmem:[%s1 + $0x8d8] sm:$0xf]
    %v403 = vld [vmem:[%s1 + $0x8dc] sm:$0xff]
    %v404 = vld [vmem:[%s1 + $0x8e4] sm:$0xf]
    %v405 = vld [vmem:[%s1 + $0x8e8] sm:$0xff]
    %v406 = vld [vmem:[%s1 + $0x8f0] sm:$0xf]
    %v407 = vld [vmem:[%s1 + $0x8f4] sm:$0xff]
    %v408 = vld [vmem:[%s1 + $0x8fc] sm:$0xf]
    %v409 = vld [vmem:[%s1 + $0x900] sm:$0xff]
    %v410 = vld [vmem:[%s1 + $0x908] sm:$0xf]
    %v411 = vld [vmem:[%s1 + $0x90c] sm:$0xff]
    %v412 = vld [vmem:[%s1 + $0x914] sm:$0xf]
    %v413 = vld [vmem:[%s1 + $0x918] sm:$0xff]
    %v414 = vld [vmem:[%s1 + $0x920] sm:$0xf]
    %v415 = vld [vmem:[%s1 + $0x924] sm:$0xff]
    %v416 = vld [vmem:[%s1 + $0x92c] sm:$0xf]
    %v417 = vld [vmem:[%s1 + $0x930] sm:$0xff]
    %v418 = vld [vmem:[%s1 + $0x938] sm:$0xf]
    %v419 = vld [vmem:[%s1 + $0x93c] sm:$0xff]
    %v420 = vld [vmem:[%s1 + $0x944] sm:$0xf]
    %v421 = vld [vmem:[%s1 + $0x948] sm:$0xff]
    %v422 = vld [vmem:[%s1 + $0x950] sm:$0xf]
    %v423 = vld [vmem:[%s1 + $0x954] sm:$0xff]
    %v424 = vld [vmem:[%s1 + $0x95c] sm:$0xf]
    %v425 = vld [vmem:[%s1 + $0x960] sm:$0xff]
    %v426 = vld [vmem:[%s1 + $0x968] sm:$0xf]
    %v427 = vld [vmem:[%s1 + $0x96c] sm:$0xff]
    %v428 = vld [vmem:[%s1 + $0x974] sm:$0xf]
    %v429 = vld [vmem:[%s1 + $0x978] sm:$0xff]
    %v430 = vld [vmem:[%s1 + $0x980] sm:$0xf]
    %v431 = vld [vmem:[%s1 + $0x984] sm:$0xff]
    %v432 = vld [vmem:[%s1 + $0x98c] sm:$0xf]
    %v433 = vld [vmem:[%s1 + $0x990] sm:$0xff]
    %v434 = vld [vmem:[%s1 + $0x998] sm:$0xf]
    %v435 = vld [vmem:[%s1 + $0x99c] sm:$0xff]
    %v436 = vld [vmem:[%s1 + $0x9a4] sm:$0xf]
    %v437 = vld [vmem:[%s1 + $0x9a8] sm:$0xff]
    %v438 = vld [vmem:[%s1 + $0x9b0] sm:$0xf]
    %v439 = vld [vmem:[%s1 + $0x9b4] sm:$0xff]
    %v440 = vld [vmem:[%s1 + $0x9bc] sm:$0xf]
    %v441 = vld [vmem:[%s1 + $0x9c0] sm:$0xff]
    %v442 = vld [vmem:[%s1 + $0x9c8] sm:$0xf]
    %v443 = vld [vmem:[%s1 + $0x9cc] sm:$0xff]
    %v444 = vld [vmem:[%s1 + $0x9d4] sm:$0xf]
    %v445 = vld [vmem:[%s1 + $0x9d8] sm:$0xff]
    %v446 = vld [vmem:[%s1 + $0x9e0] sm:$0xf]
    %v447 = vld [vmem:[%s1 + $0x9e4] sm:$0xff]
    %v448 = vld [vmem:[%s1 + $0x9ec] sm:$0xf]
    %v449 = vld [vmem:[%s1 + $0x9f0] sm:$0xff]
    %v450 = vld [vmem:[%s1 + $0x9f8] sm:$0xf]
    %v451 = vld [vmem:[%s1 + $0x9fc] sm:$0xff]
    %v452 = vld [vmem:[%s1 + $0xa04] sm:$0xf]
    %v453 = vld [vmem:[%s1 + $0xa08] sm:$0xff]
    %v454 = vld [vmem:[%s1 + $0xa10] sm:$0xf]
    %v455 = vld [vmem:[%s1 + $0xa14] sm:$0xff]
    %v456 = vld [vmem:[%s1 + $0xa1c] sm:$0xf]
    %v457 = vld [vmem:[%s2] sm:$0x7]
    %v459 = vperm.slane %v457, 0
    %v460 = vperm.slane %v457, 1
    %v461 = vperm.slane %v457, 2
    %v472 = vunpack.c.l.b16 %v18
    %v473 = vunpack.c.h.b16 %v18
    %v474 = vunpack.c.l.b16 %v19
    %v475 = vunpack.c.h.b16 %v19
    %v476 = vunpack.c.l.b16 %v20
    %v477 = vunpack.c.h.b16 %v20
    %v478 = vunpack.c.l.b16 %v21
    %v479 = vunpack.c.h.b16 %v21
    %v480 = vunpack.c.l.b16 %v22
    %v481 = vunpack.c.h.b16 %v22
    %v482 = vunpack.c.l.b16 %v23
    %v483 = vunpack.c.h.b16 %v23
    %v484 = vunpack.c.l.b16 %v24
    %v485 = vunpack.c.h.b16 %v24
    %v486 = vpack.c.b16 %v472, %v472
    %v487 = vpack.c.b16 %v473, %v473
    %v488 = vpack.c.b16 %v474, %v474
    %v489 = vpack.c.b16 %v475, %v475
    %v490 = vpack.c.b16 %v476, %v476
    %v491 = vpack.c.b16 %v477, %v477
    %v492 = vpack.c.b16 %v478, %v478
    %v493 = vpack.c.b16 %v479, %v479
    %v494 = vpack.c.b16 %v480, %v480
    %v495 = vpack.c.b16 %v481, %v481
    %v496 = vpack.c.b16 %v482, %v482
    %v497 = vpack.c.b16 %v483, %v483
    %v498 = vpack.c.b16 %v484, %v484
    %v499 = vpack.c.b16 %v485, %v485
    %v945 = vunpack.c.l.b16 %v25
    %v946 = vunpack.c.h.b16 %v25
    %v947 = vunpack.c.l.b16 %v26
    %v948 = vunpack.c.l.b16 %v27
    %v949 = vunpack.c.h.b16 %v27
    %v950 = vunpack.c.l.b16 %v28
    %v951 = vunpack.c.l.b16 %v29
    %v952 = vunpack.c.h.b16 %v29
    %v953 = vunpack.c.l.b16 %v30
    %v954 = vunpack.c.l.b16 %v31
    %v955 = vunpack.c.h.b16 %v31
    %v956 = vunpack.c.l.b16 %v32
    %v957 = vunpack.c.l.b16 %v33
    %v958 = vunpack.c.h.b16 %v33
    %v959 = vunpack.c.l.b16 %v34
    %v960 = vunpack.c.l.b16 %v35
    %v961 = vunpack.c.h.b16 %v35
    %v962 = vunpack.c.l.b16 %v36
    %v963 = vunpack.c.l.b16 %v37
    %v964 = vunpack.c.h.b16 %v37
    %v965 = vunpack.c.l.b16 %v38
    %v966 = vunpack.c.l.b16 %v39
    %v967 = vunpack.c.h.b16 %v39
    %v968 = vunpack.c.l.b16 %v40
    %v969 = vunpack.c.l.b16 %v41
    %v970 = vunpack.c.h.b16 %v41
    %v971 = vunpack.c.l.b16 %v42
    %v972 = vunpack.c.l.b16 %v43
    %v973 = vunpack.c.h.b16 %v43
    %v974 = vunpack.c.l.b16 %v44
    %v975 = vunpack.c.l.b16 %v45
    %v976 = vunpack.c.h.b16 %v45
    %v977 = vunpack.c.l.b16 %v46
    %v978 = vunpack.c.l.b16 %v47
    %v979 = vunpack.c.h.b16 %v47
    %v980 = vunpack.c.l.b16 %v48
    %v981 = vunpack.c.l.b16 %v49
    %v982 = vunpack.c.h.b16 %v49
    %v983 = vunpack.c.l.b16 %v50
    %v984 = vunpack.c.l.b16 %v51
    %v985 = vunpack.c.h.b16 %v51
    %v986 = vunpack.c.l.b16 %v52
    %v987 = vunpack.c.l.b16 %v53
    %v988 = vunpack.c.h.b16 %v53
    %v989 = vunpack.c.l.b16 %v54
    %v990 = vunpack.c.l.b16 %v55
    %v991 = vunpack.c.h.b16 %v55
    %v992 = vunpack.c.l.b16 %v56
    %v993 = vunpack.c.l.b16 %v57
    %v994 = vunpack.c.h.b16 %v57
    %v995 = vunpack.c.l.b16 %v58
    %v996 = vunpack.c.l.b16 %v59
    %v997 = vunpack.c.h.b16 %v59
    %v998 = vunpack.c.l.b16 %v60
    %v999 = vunpack.c.l.b16 %v61
    %v1000 = vunpack.c.h.b16 %v61
    %v1001 = vunpack.c.l.b16 %v62
    %v1002 = vunpack.c.l.b16 %v63
    %v1003 = vunpack.c.h.b16 %v63
    %v1004 = vunpack.c.l.b16 %v64
    %v1005 = vunpack.c.l.b16 %v65
    %v1006 = vunpack.c.h.b16 %v65
    %v1007 = vunpack.c.l.b16 %v66
    %v1008 = vunpack.c.l.b16 %v67
    %v1009 = vunpack.c.h.b16 %v67
    %v1010 = vunpack.c.l.b16 %v68
    %v1011 = vunpack.c.l.b16 %v69
    %v1012 = vunpack.c.h.b16 %v69
    %v1013 = vunpack.c.l.b16 %v70
    %v1014 = vunpack.c.l.b16 %v71
    %v1015 = vunpack.c.h.b16 %v71
    %v1016 = vunpack.c.l.b16 %v72
    %v1017 = vunpack.c.l.b16 %v73
    %v1018 = vunpack.c.h.b16 %v73
    %v1019 = vunpack.c.l.b16 %v74
    %v1020 = vunpack.c.l.b16 %v75
    %v1021 = vunpack.c.h.b16 %v75
    %v1022 = vunpack.c.l.b16 %v76
    %v1023 = vunpack.c.l.b16 %v77
    %v1024 = vunpack.c.h.b16 %v77
    %v1025 = vunpack.c.l.b16 %v78
    %v1026 = vunpack.c.l.b16 %v79
    %v1027 = vunpack.c.h.b16 %v79
    %v1028 = vunpack.c.l.b16 %v80
    %v1029 = vunpack.c.l.b16 %v81
    %v1030 = vunpack.c.h.b16 %v81
    %v1031 = vunpack.c.l.b16 %v82
    %v1032 = vunpack.c.l.b16 %v83
    %v1033 = vunpack.c.h.b16 %v83
    %v1034 = vunpack.c.l.b16 %v84
    %v1035 = vunpack.c.l.b16 %v85
    %v1036 = vunpack.c.h.b16 %v85
    %v1037 = vunpack.c.l.b16 %v86
    %v1038 = vunpack.c.l.b16 %v87
    %v1039 = vunpack.c.h.b16 %v87
    %v1040 = vunpack.c.l.b16 %v88
    %v1041 = vunpack.c.l.b16 %v89
    %v1042 = vunpack.c.h.b16 %v89
    %v1043 = vunpack.c.l.b16 %v90
    %v1044 = vunpack.c.l.b16 %v91
    %v1045 = vunpack.c.h.b16 %v91
    %v1046 = vunpack.c.l.b16 %v92
    %v1047 = vunpack.c.l.b16 %v93
    %v1048 = vunpack.c.h.b16 %v93
    %v1049 = vunpack.c.l.b16 %v94
    %v1050 = vunpack.c.l.b16 %v95
    %v1051 = vunpack.c.h.b16 %v95
    %v1052 = vunpack.c.l.b16 %v96
    %v1053 = vunpack.c.l.b16 %v97
    %v1054 = vunpack.c.h.b16 %v97
    %v1055 = vunpack.c.l.b16 %v98
    %v1056 = vunpack.c.l.b16 %v99
    %v1057 = vunpack.c.h.b16 %v99
    %v1058 = vunpack.c.l.b16 %v100
    %v1059 = vunpack.c.l.b16 %v101
    %v1060 = vunpack.c.h.b16 %v101
    %v1061 = vunpack.c.l.b16 %v102
    %v1062 = vunpack.c.l.b16 %v103
    %v1063 = vunpack.c.h.b16 %v103
    %v1064 = vunpack.c.l.b16 %v104
    %v1065 = vunpack.c.l.b16 %v105
    %v1066 = vunpack.c.h.b16 %v105
    %v1067 = vunpack.c.l.b16 %v106
    %v1068 = vunpack.c.l.b16 %v107
    %v1069 = vunpack.c.h.b16 %v107
    %v1070 = vunpack.c.l.b16 %v108
    %v1071 = vunpack.c.l.b16 %v109
    %v1072 = vunpack.c.h.b16 %v109
    %v1073 = vunpack.c.l.b16 %v110
    %v1074 = vunpack.c.l.b16 %v111
    %v1075 = vunpack.c.h.b16 %v111
    %v1076 = vunpack.c.l.b16 %v112
    %v1077 = vunpack.c.l.b16 %v113
    %v1078 = vunpack.c.h.b16 %v113
    %v1079 = vunpack.c.l.b16 %v114
    %v1080 = vunpack.c.l.b16 %v115
    %v1081 = vunpack.c.h.b16 %v115
    %v1082 = vunpack.c.l.b16 %v116
    %v1083 = vunpack.c.l.b16 %v117
    %v1084 = vunpack.c.h.b16 %v117
    %v1085 = vunpack.c.l.b16 %v118
    %v1086 = vunpack.c.l.b16 %v119
    %v1087 = vunpack.c.h.b16 %v119
    %v1088 = vunpack.c.l.b16 %v120
    %v1089 = vunpack.c.l.b16 %v121
    %v1090 = vunpack.c.h.b16 %v121
    %v1091 = vunpack.c.l.b16 %v122
    %v1092 = vunpack.c.l.b16 %v123
    %v1093 = vunpack.c.h.b16 %v123
    %v1094 = vunpack.c.l.b16 %v124
    %v1095 = vunpack.c.l.b16 %v125
    %v1096 = vunpack.c.h.b16 %v125
    %v1097 = vunpack.c.l.b16 %v126
    %v1098 = vunpack.c.l.b16 %v127
    %v1099 = vunpack.c.h.b16 %v127
    %v1100 = vunpack.c.l.b16 %v128
    %v1101 = vunpack.c.l.b16 %v129
    %v1102 = vunpack.c.h.b16 %v129
    %v1103 = vunpack.c.l.b16 %v130
    %v1104 = vunpack.c.l.b16 %v131
    %v1105 = vunpack.c.h.b16 %v131
    %v1106 = vunpack.c.l.b16 %v132
    %v1107 = vunpack.c.l.b16 %v133
    %v1108 = vunpack.c.h.b16 %v133
    %v1109 = vunpack.c.l.b16 %v134
    %v1110 = vunpack.c.l.b16 %v135
    %v1111 = vunpack.c.h.b16 %v135
    %v1112 = vunpack.c.l.b16 %v136
    %v1113 = vunpack.c.l.b16 %v137
    %v1114 = vunpack.c.h.b16 %v137
    %v1115 = vunpack.c.l.b16 %v138
    %v1116 = vunpack.c.l.b16 %v139
    %v1117 = vunpack.c.h.b16 %v139
    %v1118 = vunpack.c.l.b16 %v140
    %v1119 = vunpack.c.l.b16 %v141
    %v1120 = vunpack.c.h.b16 %v141
    %v1121 = vunpack.c.l.b16 %v142
    %v1122 = vunpack.c.l.b16 %v143
    %v1123 = vunpack.c.h.b16 %v143
    %v1124 = vunpack.c.l.b16 %v144
    %v1125 = vunpack.c.l.b16 %v145
    %v1126 = vunpack.c.h.b16 %v145
    %v1127 = vunpack.c.l.b16 %v146
    %v1128 = vunpack.c.l.b16 %v147
    %v1129 = vunpack.c.h.b16 %v147
    %v1130 = vunpack.c.l.b16 %v148
    %v1131 = vunpack.c.l.b16 %v149
    %v1132 = vunpack.c.h.b16 %v149
    %v1133 = vunpack.c.l.b16 %v150
    %v1134 = vunpack.c.l.b16 %v151
    %v1135 = vunpack.c.h.b16 %v151
    %v1136 = vunpack.c.l.b16 %v152
    %v1137 = vunpack.c.l.b16 %v153
    %v1138 = vunpack.c.h.b16 %v153
    %v1139 = vunpack.c.l.b16 %v154
    %v1140 = vunpack.c.l.b16 %v155
    %v1141 = vunpack.c.h.b16 %v155
    %v1142 = vunpack.c.l.b16 %v156
    %v1143 = vunpack.c.l.b16 %v157
    %v1144 = vunpack.c.h.b16 %v157
    %v1145 = vunpack.c.l.b16 %v158
    %v1146 = vunpack.c.l.b16 %v159
    %v1147 = vunpack.c.h.b16 %v159
    %v1148 = vunpack.c.l.b16 %v160
    %v1149 = vunpack.c.l.b16 %v161
    %v1150 = vunpack.c.h.b16 %v161
    %v1151 = vunpack.c.l.b16 %v162
    %v1152 = vunpack.c.l.b16 %v163
    %v1153 = vunpack.c.h.b16 %v163
    %v1154 = vunpack.c.l.b16 %v164
    %v1155 = vunpack.c.l.b16 %v165
    %v1156 = vunpack.c.h.b16 %v165
    %v1157 = vunpack.c.l.b16 %v166
    %v1158 = vunpack.c.l.b16 %v167
    %v1159 = vunpack.c.h.b16 %v167
    %v1160 = vunpack.c.l.b16 %v168
    %v1161 = vunpack.c.l.b16 %v169
    %v1162 = vunpack.c.h.b16 %v169
    %v1163 = vunpack.c.l.b16 %v170
    %v1164 = vunpack.c.l.b16 %v171
    %v1165 = vunpack.c.h.b16 %v171
    %v1166 = vunpack.c.l.b16 %v172
    %v1167 = vunpack.c.l.b16 %v173
    %v1168 = vunpack.c.h.b16 %v173
    %v1169 = vunpack.c.l.b16 %v174
    %v1170 = vunpack.c.l.b16 %v175
    %v1171 = vunpack.c.h.b16 %v175
    %v1172 = vunpack.c.l.b16 %v176
    %v1173 = vunpack.c.l.b16 %v177
    %v1174 = vunpack.c.h.b16 %v177
    %v1175 = vunpack.c.l.b16 %v178
    %v1176 = vunpack.c.l.b16 %v179
    %v1177 = vunpack.c.h.b16 %v179
    %v1178 = vunpack.c.l.b16 %v180
    %v1179 = vunpack.c.l.b16 %v181
    %v1180 = vunpack.c.h.b16 %v181
    %v1181 = vunpack.c.l.b16 %v182
    %v1182 = vunpack.c.l.b16 %v183
    %v1183 = vunpack.c.h.b16 %v183
    %v1184 = vunpack.c.l.b16 %v184
    %v1185 = vunpack.c.l.b16 %v185
    %v1186 = vunpack.c.h.b16 %v185
    %v1187 = vunpack.c.l.b16 %v186
    %v1188 = vunpack.c.l.b16 %v187
    %v1189 = vunpack.c.h.b16 %v187
    %v1190 = vunpack.c.l.b16 %v188
    %v1191 = vunpack.c.l.b16 %v189
    %v1192 = vunpack.c.h.b16 %v189
    %v1193 = vunpack.c.l.b16 %v190
    %v1194 = vunpack.c.l.b16 %v191
    %v1195 = vunpack.c.h.b16 %v191
    %v1196 = vunpack.c.l.b16 %v192
    %v1197 = vunpack.c.l.b16 %v193
    %v1198 = vunpack.c.h.b16 %v193
    %v1199 = vunpack.c.l.b16 %v194
    %v1200 = vunpack.c.l.b16 %v195
    %v1201 = vunpack.c.h.b16 %v195
    %v1202 = vunpack.c.l.b16 %v196
    %v1203 = vunpack.c.l.b16 %v197
    %v1204 = vunpack.c.h.b16 %v197
    %v1205 = vunpack.c.l.b16 %v198
    %v1206 = vunpack.c.l.b16 %v199
    %v1207 = vunpack.c.h.b16 %v199
    %v1208 = vunpack.c.l.b16 %v200
    %v1209 = vunpack.c.l.b16 %v201
    %v1210 = vunpack.c.h.b16 %v201
    %v1211 = vunpack.c.l.b16 %v202
    %v1212 = vunpack.c.l.b16 %v203
    %v1213 = vunpack.c.h.b16 %v203
    %v1214 = vunpack.c.l.b16 %v204
    %v1215 = vunpack.c.l.b16 %v205
    %v1216 = vunpack.c.h.b16 %v205
    %v1217 = vunpack.c.l.b16 %v206
    %v1218 = vunpack.c.l.b16 %v207
    %v1219 = vunpack.c.h.b16 %v207
    %v1220 = vunpack.c.l.b16 %v208
    %v1221 = vunpack.c.l.b16 %v209
    %v1222 = vunpack.c.h.b16 %v209
    %v1223 = vunpack.c.l.b16 %v210
    %v1224 = vunpack.c.l.b16 %v211
    %v1225 = vunpack.c.h.b16 %v211
    %v1226 = vunpack.c.l.b16 %v212
    %v1227 = vunpack.c.l.b16 %v213
    %v1228 = vunpack.c.h.b16 %v213
    %v1229 = vunpack.c.l.b16 %v214
    %v1230 = vunpack.c.l.b16 %v215
    %v1231 = vunpack.c.h.b16 %v215
    %v1232 = vunpack.c.l.b16 %v216
    %v1233 = vunpack.c.l.b16 %v217
    %v1234 = vunpack.c.h.b16 %v217
    %v1235 = vunpack.c.l.b16 %v218
    %v1236 = vunpack.c.l.b16 %v219
    %v1237 = vunpack.c.h.b16 %v219
    %v1238 = vunpack.c.l.b16 %v220
    %v1239 = vunpack.c.l.b16 %v221
    %v1240 = vunpack.c.h.b16 %v221
    %v1241 = vunpack.c.l.b16 %v222
    %v1242 = vunpack.c.l.b16 %v223
    %v1243 = vunpack.c.h.b16 %v223
    %v1244 = vunpack.c.l.b16 %v224
    %v1245 = vunpack.c.l.b16 %v225
    %v1246 = vunpack.c.h.b16 %v225
    %v1247 = vunpack.c.l.b16 %v226
    %v1248 = vunpack.c.l.b16 %v227
    %v1249 = vunpack.c.h.b16 %v227
    %v1250 = vunpack.c.l.b16 %v228
    %v1251 = vunpack.c.l.b16 %v229
    %v1252 = vunpack.c.h.b16 %v229
    %v1253 = vunpack.c.l.b16 %v230
    %v1254 = vunpack.c.l.b16 %v231
    %v1255 = vunpack.c.h.b16 %v231
    %v1256 = vunpack.c.l.b16 %v232
    %v1257 = vunpack.c.l.b16 %v233
    %v1258 = vunpack.c.h.b16 %v233
    %v1259 = vunpack.c.l.b16 %v234
    %v1260 = vunpack.c.l.b16 %v235
    %v1261 = vunpack.c.h.b16 %v235
    %v1262 = vunpack.c.l.b16 %v236
    %v1263 = vunpack.c.l.b16 %v237
    %v1264 = vunpack.c.h.b16 %v237
    %v1265 = vunpack.c.l.b16 %v238
    %v1266 = vunpack.c.l.b16 %v239
    %v1267 = vunpack.c.h.b16 %v239
    %v1268 = vunpack.c.l.b16 %v240
    %v1269 = vunpack.c.l.b16 %v241
    %v1270 = vunpack.c.h.b16 %v241
    %v1271 = vunpack.c.l.b16 %v242
    %v1272 = vunpack.c.l.b16 %v243
    %v1273 = vunpack.c.h.b16 %v243
    %v1274 = vunpack.c.l.b16 %v244
    %v1275 = vunpack.c.l.b16 %v245
    %v1276 = vunpack.c.h.b16 %v245
    %v1277 = vunpack.c.l.b16 %v246
    %v1278 = vunpack.c.l.b16 %v247
    %v1279 = vunpack.c.h.b16 %v247
    %v1280 = vunpack.c.l.b16 %v248
    %v1281 = vunpack.c.l.b16 %v249
    %v1282 = vunpack.c.h.b16 %v249
    %v1283 = vunpack.c.l.b16 %v250
    %v1284 = vunpack.c.l.b16 %v251
    %v1285 = vunpack.c.h.b16 %v251
    %v1286 = vunpack.c.l.b16 %v252
    %v1287 = vunpack.c.l.b16 %v253
    %v1288 = vunpack.c.h.b16 %v253
    %v1289 = vunpack.c.l.b16 %v254
    %v1290 = vunpack.c.l.b16 %v255
    %v1291 = vunpack.c.h.b16 %v255
    %v1292 = vunpack.c.l.b16 %v256
    %v1293 = vunpack.c.l.b16 %v257
    %v1294 = vunpack.c.h.b16 %v257
    %v1295 = vunpack.c.l.b16 %v258
    %v1296 = vunpack.c.l.b16 %v259
    %v1297 = vunpack.c.h.b16 %v259
    %v1298 = vunpack.c.l.b16 %v260
    %v1299 = vunpack.c.l.b16 %v261
    %v1300 = vunpack.c.h.b16 %v261
    %v1301 = vunpack.c.l.b16 %v262
    %v1302 = vunpack.c.l.b16 %v263
    %v1303 = vunpack.c.h.b16 %v263
    %v1304 = vunpack.c.l.b16 %v264
    %v1305 = vunpack.c.l.b16 %v265
    %v1306 = vunpack.c.h.b16 %v265
    %v1307 = vunpack.c.l.b16 %v266
    %v1308 = vunpack.c.l.b16 %v267
    %v1309 = vunpack.c.h.b16 %v267
    %v1310 = vunpack.c.l.b16 %v268
    %v1311 = vunpack.c.l.b16 %v269
    %v1312 = vunpack.c.h.b16 %v269
    %v1313 = vunpack.c.l.b16 %v270
    %v1314 = vunpack.c.l.b16 %v271
    %v1315 = vunpack.c.h.b16 %v271
    %v1316 = vunpack.c.l.b16 %v272
    %v1317 = vunpack.c.l.b16 %v273
    %v1318 = vunpack.c.h.b16 %v273
    %v1319 = vunpack.c.l.b16 %v274
    %v1320 = vunpack.c.l.b16 %v275
    %v1321 = vunpack.c.h.b16 %v275
    %v1322 = vunpack.c.l.b16 %v276
    %v1323 = vunpack.c.l.b16 %v277
    %v1324 = vunpack.c.h.b16 %v277
    %v1325 = vunpack.c.l.b16 %v278
    %v1326 = vunpack.c.l.b16 %v279
    %v1327 = vunpack.c.h.b16 %v279
    %v1328 = vunpack.c.l.b16 %v280
    %v1329 = vunpack.c.l.b16 %v281
    %v1330 = vunpack.c.h.b16 %v281
    %v1331 = vunpack.c.l.b16 %v282
    %v1332 = vunpack.c.l.b16 %v283
    %v1333 = vunpack.c.h.b16 %v283
    %v1334 = vunpack.c.l.b16 %v284
    %v1335 = vunpack.c.l.b16 %v285
    %v1336 = vunpack.c.h.b16 %v285
    %v1337 = vunpack.c.l.b16 %v286
    %v1338 = vunpack.c.l.b16 %v287
    %v1339 = vunpack.c.h.b16 %v287
    %v1340 = vunpack.c.l.b16 %v288
    %v1341 = vunpack.c.l.b16 %v289
    %v1342 = vunpack.c.h.b16 %v289
    %v1343 = vunpack.c.l.b16 %v290
    %v1344 = vunpack.c.l.b16 %v291
    %v1345 = vunpack.c.h.b16 %v291
    %v1346 = vunpack.c.l.b16 %v292
    %v1347 = vunpack.c.l.b16 %v293
    %v1348 = vunpack.c.h.b16 %v293
    %v1349 = vunpack.c.l.b16 %v294
    %v1350 = vunpack.c.l.b16 %v295
    %v1351 = vunpack.c.h.b16 %v295
    %v1352 = vunpack.c.l.b16 %v296
    %v1353 = vunpack.c.l.b16 %v297
    %v1354 = vunpack.c.h.b16 %v297
    %v1355 = vunpack.c.l.b16 %v298
    %v1356 = vunpack.c.l.b16 %v299
    %v1357 = vunpack.c.h.b16 %v299
    %v1358 = vunpack.c.l.b16 %v300
    %v1359 = vunpack.c.l.b16 %v301
    %v1360 = vunpack.c.h.b16 %v301
    %v1361 = vunpack.c.l.b16 %v302
    %v1362 = vunpack.c.l.b16 %v303
    %v1363 = vunpack.c.h.b16 %v303
    %v1364 = vunpack.c.l.b16 %v304
    %v1365 = vunpack.c.l.b16 %v305
    %v1366 = vunpack.c.h.b16 %v305
    %v1367 = vunpack.c.l.b16 %v306
    %v1368 = vunpack.c.l.b16 %v307
    %v1369 = vunpack.c.h.b16 %v307
    %v1370 = vunpack.c.l.b16 %v308
    %v1371 = vunpack.c.l.b16 %v309
    %v1372 = vunpack.c.h.b16 %v309
    %v1373 = vunpack.c.l.b16 %v310
    %v1374 = vunpack.c.l.b16 %v311
    %v1375 = vunpack.c.h.b16 %v311
    %v1376 = vunpack.c.l.b16 %v312
    %v1377 = vunpack.c.l.b16 %v313
    %v1378 = vunpack.c.h.b16 %v313
    %v1379 = vunpack.c.l.b16 %v314
    %v1380 = vunpack.c.l.b16 %v315
    %v1381 = vunpack.c.h.b16 %v315
    %v1382 = vunpack.c.l.b16 %v316
    %v1383 = vunpack.c.l.b16 %v317
    %v1384 = vunpack.c.h.b16 %v317
    %v1385 = vunpack.c.l.b16 %v318
    %v1386 = vunpack.c.l.b16 %v319
    %v1387 = vunpack.c.h.b16 %v319
    %v1388 = vunpack.c.l.b16 %v320
    %v1389 = vunpack.c.l.b16 %v321
    %v1390 = vunpack.c.h.b16 %v321
    %v1391 = vunpack.c.l.b16 %v322
    %v1392 = vunpack.c.l.b16 %v323
    %v1393 = vunpack.c.h.b16 %v323
    %v1394 = vunpack.c.l.b16 %v324
    %v1395 = vunpack.c.l.b16 %v325
    %v1396 = vunpack.c.h.b16 %v325
    %v1397 = vunpack.c.l.b16 %v326
    %v1398 = vunpack.c.l.b16 %v327
    %v1399 = vunpack.c.h.b16 %v327
    %v1400 = vunpack.c.l.b16 %v328
    %v1401 = vunpack.c.l.b16 %v329
    %v1402 = vunpack.c.h.b16 %v329
    %v1403 = vunpack.c.l.b16 %v330
    %v1404 = vunpack.c.l.b16 %v331
    %v1405 = vunpack.c.h.b16 %v331
    %v1406 = vunpack.c.l.b16 %v332
    %v1407 = vunpack.c.l.b16 %v333
    %v1408 = vunpack.c.h.b16 %v333
    %v1409 = vunpack.c.l.b16 %v334
    %v1410 = vunpack.c.l.b16 %v335
    %v1411 = vunpack.c.h.b16 %v335
    %v1412 = vunpack.c.l.b16 %v336
    %v1413 = vunpack.c.l.b16 %v337
    %v1414 = vunpack.c.h.b16 %v337
    %v1415 = vunpack.c.l.b16 %v338
    %v1416 = vunpack.c.l.b16 %v339
    %v1417 = vunpack.c.h.b16 %v339
    %v1418 = vunpack.c.l.b16 %v340
    %v1419 = vunpack.c.l.b16 %v341
    %v1420 = vunpack.c.h.b16 %v341
    %v1421 = vunpack.c.l.b16 %v342
    %v1422 = vunpack.c.l.b16 %v343
    %v1423 = vunpack.c.h.b16 %v343
    %v1424 = vunpack.c.l.b16 %v344
    %v1425 = vunpack.c.l.b16 %v345
    %v1426 = vunpack.c.h.b16 %v345
    %v1427 = vunpack.c.l.b16 %v346
    %v1428 = vunpack.c.l.b16 %v347
    %v1429 = vunpack.c.h.b16 %v347
    %v1430 = vunpack.c.l.b16 %v348
    %v1431 = vunpack.c.l.b16 %v349
    %v1432 = vunpack.c.h.b16 %v349
    %v1433 = vunpack.c.l.b16 %v350
    %v1434 = vunpack.c.l.b16 %v351
    %v1435 = vunpack.c.h.b16 %v351
    %v1436 = vunpack.c.l.b16 %v352
    %v1437 = vunpack.c.l.b16 %v353
    %v1438 = vunpack.c.h.b16 %v353
    %v1439 = vunpack.c.l.b16 %v354
    %v1440 = vunpack.c.l.b16 %v355
    %v1441 = vunpack.c.h.b16 %v355
    %v1442 = vunpack.c.l.b16 %v356
    %v1443 = vunpack.c.l.b16 %v357
    %v1444 = vunpack.c.h.b16 %v357
    %v1445 = vunpack.c.l.b16 %v358
    %v1446 = vunpack.c.l.b16 %v359
    %v1447 = vunpack.c.h.b16 %v359
    %v1448 = vunpack.c.l.b16 %v360
    %v1449 = vunpack.c.l.b16 %v361
    %v1450 = vunpack.c.h.b16 %v361
    %v1451 = vunpack.c.l.b16 %v362
    %v1452 = vunpack.c.l.b16 %v363
    %v1453 = vunpack.c.h.b16 %v363
    %v1454 = vunpack.c.l.b16 %v364
    %v1455 = vunpack.c.l.b16 %v365
    %v1456 = vunpack.c.h.b16 %v365
    %v1457 = vunpack.c.l.b16 %v366
    %v1458 = vunpack.c.l.b16 %v367
    %v1459 = vunpack.c.h.b16 %v367
    %v1460 = vunpack.c.l.b16 %v368
    %v1461 = vunpack.c.l.b16 %v369
    %v1462 = vunpack.c.h.b16 %v369
    %v1463 = vunpack.c.l.b16 %v370
    %v1464 = vunpack.c.l.b16 %v371
    %v1465 = vunpack.c.h.b16 %v371
    %v1466 = vunpack.c.l.b16 %v372
    %v1467 = vunpack.c.l.b16 %v373
    %v1468 = vunpack.c.h.b16 %v373
    %v1469 = vunpack.c.l.b16 %v374
    %v1470 = vunpack.c.l.b16 %v375
    %v1471 = vunpack.c.h.b16 %v375
    %v1472 = vunpack.c.l.b16 %v376
    %v1473 = vunpack.c.l.b16 %v377
    %v1474 = vunpack.c.h.b16 %v377
    %v1475 = vunpack.c.l.b16 %v378
    %v1476 = vunpack.c.l.b16 %v379
    %v1477 = vunpack.c.h.b16 %v379
    %v1478 = vunpack.c.l.b16 %v380
    %v1479 = vunpack.c.l.b16 %v381
    %v1480 = vunpack.c.h.b16 %v381
    %v1481 = vunpack.c.l.b16 %v382
    %v1482 = vunpack.c.l.b16 %v383
    %v1483 = vunpack.c.h.b16 %v383
    %v1484 = vunpack.c.l.b16 %v384
    %v1485 = vunpack.c.l.b16 %v385
    %v1486 = vunpack.c.h.b16 %v385
    %v1487 = vunpack.c.l.b16 %v386
    %v1488 = vunpack.c.l.b16 %v387
    %v1489 = vunpack.c.h.b16 %v387
    %v1490 = vunpack.c.l.b16 %v388
    %v1491 = vunpack.c.l.b16 %v389
    %v1492 = vunpack.c.h.b16 %v389
    %v1493 = vunpack.c.l.b16 %v390
    %v1494 = vunpack.c.l.b16 %v391
    %v1495 = vunpack.c.h.b16 %v391
    %v1496 = vunpack.c.l.b16 %v392
    %v1497 = vunpack.c.l.b16 %v393
    %v1498 = vunpack.c.h.b16 %v393
    %v1499 = vunpack.c.l.b16 %v394
    %v1500 = vunpack.c.l.b16 %v395
    %v1501 = vunpack.c.h.b16 %v395
    %v1502 = vunpack.c.l.b16 %v396
    %v1503 = vunpack.c.l.b16 %v397
    %v1504 = vunpack.c.h.b16 %v397
    %v1505 = vunpack.c.l.b16 %v398
    %v1506 = vunpack.c.l.b16 %v399
    %v1507 = vunpack.c.h.b16 %v399
    %v1508 = vunpack.c.l.b16 %v400
    %v1509 = vunpack.c.l.b16 %v401
    %v1510 = vunpack.c.h.b16 %v401
    %v1511 = vunpack.c.l.b16 %v402
    %v1512 = vunpack.c.l.b16 %v403
    %v1513 = vunpack.c.h.b16 %v403
    %v1514 = vunpack.c.l.b16 %v404
    %v1515 = vunpack.c.l.b16 %v405
    %v1516 = vunpack.c.h.b16 %v405
    %v1517 = vunpack.c.l.b16 %v406
    %v1518 = vunpack.c.l.b16 %v407
    %v1519 = vunpack.c.h.b16 %v407
    %v1520 = vunpack.c.l.b16 %v408
    %v1521 = vunpack.c.l.b16 %v409
    %v1522 = vunpack.c.h.b16 %v409
    %v1523 = vunpack.c.l.b16 %v410
    %v1524 = vunpack.c.l.b16 %v411
    %v1525 = vunpack.c.h.b16 %v411
    %v1526 = vunpack.c.l.b16 %v412
    %v1527 = vunpack.c.l.b16 %v413
    %v1528 = vunpack.c.h.b16 %v413
    %v1529 = vunpack.c.l.b16 %v414
    %v1530 = vunpack.c.l.b16 %v415
    %v1531 = vunpack.c.h.b16 %v415
    %v1532 = vunpack.c.l.b16 %v416
    %v1533 = vunpack.c.l.b16 %v417
    %v1534 = vunpack.c.h.b16 %v417
    %v1535 = vunpack.c.l.b16 %v418
    %v1536 = vunpack.c.l.b16 %v419
    %v1537 = vunpack.c.h.b16 %v419
    %v1538 = vunpack.c.l.b16 %v420
    %v1539 = vunpack.c.l.b16 %v421
    %v1540 = vunpack.c.h.b16 %v421
    %v1541 = vunpack.c.l.b16 %v422
    %v1542 = vunpack.c.l.b16 %v423
    %v1543 = vunpack.c.h.b16 %v423
    %v1544 = vunpack.c.l.b16 %v424
    %v1545 = vunpack.c.l.b16 %v425
    %v1546 = vunpack.c.h.b16 %v425
    %v1547 = vunpack.c.l.b16 %v426
    %v1548 = vunpack.c.l.b16 %v427
    %v1549 = vunpack.c.h.b16 %v427
    %v1550 = vunpack.c.l.b16 %v428
    %v1551 = vunpack.c.l.b16 %v429
    %v1552 = vunpack.c.h.b16 %v429
    %v1553 = vunpack.c.l.b16 %v430
    %v1554 = vunpack.c.l.b16 %v431
    %v1555 = vunpack.c.h.b16 %v431
    %v1556 = vunpack.c.l.b16 %v432
    %v1557 = vunpack.c.l.b16 %v433
    %v1558 = vunpack.c.h.b16 %v433
    %v1559 = vunpack.c.l.b16 %v434
    %v1560 = vunpack.c.l.b16 %v435
    %v1561 = vunpack.c.h.b16 %v435
    %v1562 = vunpack.c.l.b16 %v436
    %v1563 = vunpack.c.l.b16 %v437
    %v1564 = vunpack.c.h.b16 %v437
    %v1565 = vunpack.c.l.b16 %v438
    %v1566 = vunpack.c.l.b16 %v439
    %v1567 = vunpack.c.h.b16 %v439
    %v1568 = vunpack.c.l.b16 %v440
    %v1569 = vunpack.c.l.b16 %v441
    %v1570 = vunpack.c.h.b16 %v441
    %v1571 = vunpack.c.l.b16 %v442
    %v1572 = vunpack.c.l.b16 %v443
    %v1573 = vunpack.c.h.b16 %v443
    %v1574 = vunpack.c.l.b16 %v444
    %v1575 = vunpack.c.l.b16 %v445
    %v1576 = vunpack.c.h.b16 %v445
    %v1577 = vunpack.c.l.b16 %v446
    %v1578 = vunpack.c.l.b16 %v447
    %v1579 = vunpack.c.h.b16 %v447
    %v1580 = vunpack.c.l.b16 %v448
    %v1581 = vunpack.c.l.b16 %v449
    %v1582 = vunpack.c.h.b16 %v449
    %v1583 = vunpack.c.l.b16 %v450
    %v1584 = vunpack.c.l.b16 %v451
    %v1585 = vunpack.c.h.b16 %v451
    %v1586 = vunpack.c.l.b16 %v452
    %v1587 = vunpack.c.l.b16 %v453
    %v1588 = vunpack.c.h.b16 %v453
    %v1589 = vunpack.c.l.b16 %v454
    %v1590 = vunpack.c.l.b16 %v455
    %v1591 = vunpack.c.h.b16 %v455
    %v1592 = vunpack.c.l.b16 %v456
    %v1593 = vpack.c.b16 %v948, %v945
    %v1594 = vpack.c.b16 %v949, %v946
    %v1595 = vpack.c.b16 %v950, %v947
    %v1596 = vpack.c.b16 %v954, %v951
    %v1597 = vpack.c.b16 %v955, %v952
    %v1598 = vpack.c.b16 %v956, %v953
    %v1599 = vpack.c.b16 %v960, %v957
    %v1600 = vpack.c.b16 %v961, %v958
    %v1601 = vpack.c.b16 %v962, %v959
    %v1602 = vpack.c.b16 %v966, %v963
    %v1603 = vpack.c.b16 %v967, %v964
    %v1604 = vpack.c.b16 %v968, %v965
    %v1605 = vpack.c.b16 %v972, %v969
    %v1606 = vpack.c.b16 %v973, %v970
    %v1607 = vpack.c.b16 %v974, %v971
    %v1608 = vpack.c.b16 %v978, %v975
    %v1609 = vpack.c.b16 %v979, %v976
    %v1610 = vpack.c.b16 %v980, %v977
    %v1611 = vpack.c.b16 %v984, %v981
    %v1612 = vpack.c.b16 %v985, %v982
    %v1613 = vpack.c.b16 %v986, %v983
    %v1614 = vpack.c.b16 %v990, %v987
    %v1615 = vpack.c.b16 %v991, %v988
    %v1616 = vpack.c.b16 %v992, %v989
    %v1617 = vpack.c.b16 %v996, %v993
    %v1618 = vpack.c.b16 %v997, %v994
    %v1619 = vpack.c.b16 %v998, %v995
    %v1620 = vpack.c.b16 %v1002, %v999
    %v1621 = vpack.c.b16 %v1003, %v1000
    %v1622 = vpack.c.b16 %v1004, %v1001
    %v1623 = vpack.c.b16 %v1008, %v1005
    %v1624 = vpack.c.b16 %v1009, %v1006
    %v1625 = vpack.c.b16 %v1010, %v1007
    %v1626 = vpack.c.b16 %v1014, %v1011
    %v1627 = vpack.c.b16 %v1015, %v1012
    %v1628 = vpack.c.b16 %v1016, %v1013
    %v1629 = vpack.c.b16 %v1020, %v1017
    %v1630 = vpack.c.b16 %v1021, %v1018
    %v1631 = vpack.c.b16 %v1022, %v1019
    %v1632 = vpack.c.b16 %v1026, %v1023
    %v1633 = vpack.c.b16 %v1027, %v1024
    %v1634 = vpack.c.b16 %v1028, %v1025
    %v1635 = vpack.c.b16 %v1032, %v1029
    %v1636 = vpack.c.b16 %v1033, %v1030
    %v1637 = vpack.c.b16 %v1034, %v1031
    %v1638 = vpack.c.b16 %v1038, %v1035
    %v1639 = vpack.c.b16 %v1039, %v1036
    %v1640 = vpack.c.b16 %v1040, %v1037
    %v1641 = vpack.c.b16 %v1044, %v1041
    %v1642 = vpack.c.b16 %v1045, %v1042
    %v1643 = vpack.c.b16 %v1046, %v1043
    %v1644 = vpack.c.b16 %v1050, %v1047
    %v1645 = vpack.c.b16 %v1051, %v1048
    %v1646 = vpack.c.b16 %v1052, %v1049
    %v1647 = vpack.c.b16 %v1056, %v1053
    %v1648 = vpack.c.b16 %v1057, %v1054
    %v1649 = vpack.c.b16 %v1058, %v1055
    %v1650 = vpack.c.b16 %v1062, %v1059
    %v1651 = vpack.c.b16 %v1063, %v1060
    %v1652 = vpack.c.b16 %v1064, %v1061
    %v1653 = vpack.c.b16 %v1068, %v1065
    %v1654 = vpack.c.b16 %v1069, %v1066
    %v1655 = vpack.c.b16 %v1070, %v1067
    %v1656 = vpack.c.b16 %v1074, %v1071
    %v1657 = vpack.c.b16 %v1075, %v1072
    %v1658 = vpack.c.b16 %v1076, %v1073
    %v1659 = vpack.c.b16 %v1080, %v1077
    %v1660 = vpack.c.b16 %v1081, %v1078
    %v1661 = vpack.c.b16 %v1082, %v1079
    %v1662 = vpack.c.b16 %v1086, %v1083
    %v1663 = vpack.c.b16 %v1087, %v1084
    %v1664 = vpack.c.b16 %v1088, %v1085
    %v1665 = vpack.c.b16 %v1092, %v1089
    %v1666 = vpack.c.b16 %v1093, %v1090
    %v1667 = vpack.c.b16 %v1094, %v1091
    %v1668 = vpack.c.b16 %v1098, %v1095
    %v1669 = vpack.c.b16 %v1099, %v1096
    %v1670 = vpack.c.b16 %v1100, %v1097
    %v1671 = vpack.c.b16 %v1104, %v1101
    %v1672 = vpack.c.b16 %v1105, %v1102
    %v1673 = vpack.c.b16 %v1106, %v1103
    %v1674 = vpack.c.b16 %v1110, %v1107
    %v1675 = vpack.c.b16 %v1111, %v1108
    %v1676 = vpack.c.b16 %v1112, %v1109
    %v1677 = vpack.c.b16 %v1116, %v1113
    %v1678 = vpack.c.b16 %v1117, %v1114
    %v1679 = vpack.c.b16 %v1118, %v1115
    %v1680 = vpack.c.b16 %v1122, %v1119
    %v1681 = vpack.c.b16 %v1123, %v1120
    %v1682 = vpack.c.b16 %v1124, %v1121
    %v1683 = vpack.c.b16 %v1128, %v1125
    %v1684 = vpack.c.b16 %v1129, %v1126
    %v1685 = vpack.c.b16 %v1130, %v1127
    %v1686 = vpack.c.b16 %v1134, %v1131
    %v1687 = vpack.c.b16 %v1135, %v1132
    %v1688 = vpack.c.b16 %v1136, %v1133
    %v1689 = vpack.c.b16 %v1140, %v1137
    %v1690 = vpack.c.b16 %v1141, %v1138
    %v1691 = vpack.c.b16 %v1142, %v1139
    %v1692 = vpack.c.b16 %v1146, %v1143
    %v1693 = vpack.c.b16 %v1147, %v1144
    %v1694 = vpack.c.b16 %v1148, %v1145
    %v1695 = vpack.c.b16 %v1152, %v1149
    %v1696 = vpack.c.b16 %v1153, %v1150
    %v1697 = vpack.c.b16 %v1154, %v1151
    %v1698 = vpack.c.b16 %v1158, %v1155
    %v1699 = vpack.c.b16 %v1159, %v1156
    %v1700 = vpack.c.b16 %v1160, %v1157
    %v1701 = vpack.c.b16 %v1164, %v1161
    %v1702 = vpack.c.b16 %v1165, %v1162
    %v1703 = vpack.c.b16 %v1166, %v1163
    %v1704 = vpack.c.b16 %v1170, %v1167
    %v1705 = vpack.c.b16 %v1171, %v1168
    %v1706 = vpack.c.b16 %v1172, %v1169
    %v1707 = vpack.c.b16 %v1176, %v1173
    %v1708 = vpack.c.b16 %v1177, %v1174
    %v1709 = vpack.c.b16 %v1178, %v1175
    %v1710 = vpack.c.b16 %v1182, %v1179
    %v1711 = vpack.c.b16 %v1183, %v1180
    %v1712 = vpack.c.b16 %v1184, %v1181
    %v1713 = vpack.c.b16 %v1188, %v1185
    %v1714 = vpack.c.b16 %v1189, %v1186
    %v1715 = vpack.c.b16 %v1190, %v1187
    %v1716 = vpack.c.b16 %v1194, %v1191
    %v1717 = vpack.c.b16 %v1195, %v1192
    %v1718 = vpack.c.b16 %v1196, %v1193
    %v1719 = vpack.c.b16 %v1200, %v1197
    %v1720 = vpack.c.b16 %v1201, %v1198
    %v1721 = vpack.c.b16 %v1202, %v1199
    %v1722 = vpack.c.b16 %v1206, %v1203
    %v1723 = vpack.c.b16 %v1207, %v1204
    %v1724 = vpack.c.b16 %v1208, %v1205
    %v1725 = vpack.c.b16 %v1212, %v1209
    %v1726 = vpack.c.b16 %v1213, %v1210
    %v1727 = vpack.c.b16 %v1214, %v1211
    %v1728 = vpack.c.b16 %v1218, %v1215
    %v1729 = vpack.c.b16 %v1219, %v1216
    %v1730 = vpack.c.b16 %v1220, %v1217
    %v1731 = vpack.c.b16 %v1224, %v1221
    %v1732 = vpack.c.b16 %v1225, %v1222
    %v1733 = vpack.c.b16 %v1226, %v1223
    %v1734 = vpack.c.b16 %v1230, %v1227
    %v1735 = vpack.c.b16 %v1231, %v1228
    %v1736 = vpack.c.b16 %v1232, %v1229
    %v1737 = vpack.c.b16 %v1236, %v1233
    %v1738 = vpack.c.b16 %v1237, %v1234
    %v1739 = vpack.c.b16 %v1238, %v1235
    %v1740 = vpack.c.b16 %v1242, %v1239
    %v1741 = vpack.c.b16 %v1243, %v1240
    %v1742 = vpack.c.b16 %v1244, %v1241
    %v1743 = vpack.c.b16 %v1248, %v1245
    %v1744 = vpack.c.b16 %v1249, %v1246
    %v1745 = vpack.c.b16 %v1250, %v1247
    %v1746 = vpack.c.b16 %v1254, %v1251
    %v1747 = vpack.c.b16 %v1255, %v1252
    %v1748 = vpack.c.b16 %v1256, %v1253
    %v1749 = vpack.c.b16 %v1260, %v1257
    %v1750 = vpack.c.b16 %v1261, %v1258
    %v1751 = vpack.c.b16 %v1262, %v1259
    %v1752 = vpack.c.b16 %v1266, %v1263
    %v1753 = vpack.c.b16 %v1267, %v1264
    %v1754 = vpack.c.b16 %v1268, %v1265
    %v1755 = vpack.c.b16 %v1272, %v1269
    %v1756 = vpack.c.b16 %v1273, %v1270
    %v1757 = vpack.c.b16 %v1274, %v1271
    %v1758 = vpack.c.b16 %v1278, %v1275
    %v1759 = vpack.c.b16 %v1279, %v1276
    %v1760 = vpack.c.b16 %v1280, %v1277
    %v1761 = vpack.c.b16 %v1284, %v1281
    %v1762 = vpack.c.b16 %v1285, %v1282
    %v1763 = vpack.c.b16 %v1286, %v1283
    %v1764 = vpack.c.b16 %v1290, %v1287
    %v1765 = vpack.c.b16 %v1291, %v1288
    %v1766 = vpack.c.b16 %v1292, %v1289
    %v1767 = vpack.c.b16 %v1296, %v1293
    %v1768 = vpack.c.b16 %v1297, %v1294
    %v1769 = vpack.c.b16 %v1298, %v1295
    %v1770 = vpack.c.b16 %v1302, %v1299
    %v1771 = vpack.c.b16 %v1303, %v1300
    %v1772 = vpack.c.b16 %v1304, %v1301
    %v1773 = vpack.c.b16 %v1308, %v1305
    %v1774 = vpack.c.b16 %v1309, %v1306
    %v1775 = vpack.c.b16 %v1310, %v1307
    %v1776 = vpack.c.b16 %v1314, %v1311
    %v1777 = vpack.c.b16 %v1315, %v1312
    %v1778 = vpack.c.b16 %v1316, %v1313
    %v1779 = vpack.c.b16 %v1320, %v1317
    %v1780 = vpack.c.b16 %v1321, %v1318
    %v1781 = vpack.c.b16 %v1322, %v1319
    %v1782 = vpack.c.b16 %v1326, %v1323
    %v1783 = vpack.c.b16 %v1327, %v1324
    %v1784 = vpack.c.b16 %v1328, %v1325
    %v1785 = vpack.c.b16 %v1332, %v1329
    %v1786 = vpack.c.b16 %v1333, %v1330
    %v1787 = vpack.c.b16 %v1334, %v1331
    %v1788 = vpack.c.b16 %v1338, %v1335
    %v1789 = vpack.c.b16 %v1339, %v1336
    %v1790 = vpack.c.b16 %v1340, %v1337
    %v1791 = vpack.c.b16 %v1344, %v1341
    %v1792 = vpack.c.b16 %v1345, %v1342
    %v1793 = vpack.c.b16 %v1346, %v1343
    %v1794 = vpack.c.b16 %v1350, %v1347
    %v1795 = vpack.c.b16 %v1351, %v1348
    %v1796 = vpack.c.b16 %v1352, %v1349
    %v1797 = vpack.c.b16 %v1356, %v1353
    %v1798 = vpack.c.b16 %v1357, %v1354
    %v1799 = vpack.c.b16 %v1358, %v1355
    %v1800 = vpack.c.b16 %v1362, %v1359
    %v1801 = vpack.c.b16 %v1363, %v1360
    %v1802 = vpack.c.b16 %v1364, %v1361
    %v1803 = vpack.c.b16 %v1368, %v1365
    %v1804 = vpack.c.b16 %v1369, %v1366
    %v1805 = vpack.c.b16 %v1370, %v1367
    %v1806 = vpack.c.b16 %v1374, %v1371
    %v1807 = vpack.c.b16 %v1375, %v1372
    %v1808 = vpack.c.b16 %v1376, %v1373
    %v1809 = vpack.c.b16 %v1380, %v1377
    %v1810 = vpack.c.b16 %v1381, %v1378
    %v1811 = vpack.c.b16 %v1382, %v1379
    %v1812 = vpack.c.b16 %v1386, %v1383
    %v1813 = vpack.c.b16 %v1387, %v1384
    %v1814 = vpack.c.b16 %v1388, %v1385
    %v1815 = vpack.c.b16 %v1392, %v1389
    %v1816 = vpack.c.b16 %v1393, %v1390
    %v1817 = vpack.c.b16 %v1394, %v1391
    %v1818 = vpack.c.b16 %v1398, %v1395
    %v1819 = vpack.c.b16 %v1399, %v1396
    %v1820 = vpack.c.b16 %v1400, %v1397
    %v1821 = vpack.c.b16 %v1404, %v1401
    %v1822 = vpack.c.b16 %v1405, %v1402
    %v1823 = vpack.c.b16 %v1406, %v1403
    %v1824 = vpack.c.b16 %v1410, %v1407
    %v1825 = vpack.c.b16 %v1411, %v1408
    %v1826 = vpack.c.b16 %v1412, %v1409
    %v1827 = vpack.c.b16 %v1416, %v1413
    %v1828 = vpack.c.b16 %v1417, %v1414
    %v1829 = vpack.c.b16 %v1418, %v1415
    %v1830 = vpack.c.b16 %v1422, %v1419
    %v1831 = vpack.c.b16 %v1423, %v1420
    %v1832 = vpack.c.b16 %v1424, %v1421
    %v1833 = vpack.c.b16 %v1428, %v1425
    %v1834 = vpack.c.b16 %v1429, %v1426
    %v1835 = vpack.c.b16 %v1430, %v1427
    %v1836 = vpack.c.b16 %v1434, %v1431
    %v1837 = vpack.c.b16 %v1435, %v1432
    %v1838 = vpack.c.b16 %v1436, %v1433
    %v1839 = vpack.c.b16 %v1440, %v1437
    %v1840 = vpack.c.b16 %v1441, %v1438
    %v1841 = vpack.c.b16 %v1442, %v1439
    %v1842 = vpack.c.b16 %v1446, %v1443
    %v1843 = vpack.c.b16 %v1447, %v1444
    %v1844 = vpack.c.b16 %v1448, %v1445
    %v1845 = vpack.c.b16 %v1452, %v1449
    %v1846 = vpack.c.b16 %v1453, %v1450
    %v1847 = vpack.c.b16 %v1454, %v1451
    %v1848 = vpack.c.b16 %v1458, %v1455
    %v1849 = vpack.c.b16 %v1459, %v1456
    %v1850 = vpack.c.b16 %v1460, %v1457
    %v1851 = vpack.c.b16 %v1464, %v1461
    %v1852 = vpack.c.b16 %v1465, %v1462
    %v1853 = vpack.c.b16 %v1466, %v1463
    %v1854 = vpack.c.b16 %v1470, %v1467
    %v1855 = vpack.c.b16 %v1471, %v1468
    %v1856 = vpack.c.b16 %v1472, %v1469
    %v1857 = vpack.c.b16 %v1476, %v1473
    %v1858 = vpack.c.b16 %v1477, %v1474
    %v1859 = vpack.c.b16 %v1478, %v1475
    %v1860 = vpack.c.b16 %v1482, %v1479
    %v1861 = vpack.c.b16 %v1483, %v1480
    %v1862 = vpack.c.b16 %v1484, %v1481
    %v1863 = vpack.c.b16 %v1488, %v1485
    %v1864 = vpack.c.b16 %v1489, %v1486
    %v1865 = vpack.c.b16 %v1490, %v1487
    %v1866 = vpack.c.b16 %v1494, %v1491
    %v1867 = vpack.c.b16 %v1495, %v1492
    %v1868 = vpack.c.b16 %v1496, %v1493
    %v1869 = vpack.c.b16 %v1500, %v1497
    %v1870 = vpack.c.b16 %v1501, %v1498
    %v1871 = vpack.c.b16 %v1502, %v1499
    %v1872 = vpack.c.b16 %v1506, %v1503
    %v1873 = vpack.c.b16 %v1507, %v1504
    %v1874 = vpack.c.b16 %v1508, %v1505
    %v1875 = vpack.c.b16 %v1512, %v1509
    %v1876 = vpack.c.b16 %v1513, %v1510
    %v1877 = vpack.c.b16 %v1514, %v1511
    %v1878 = vpack.c.b16 %v1518, %v1515
    %v1879 = vpack.c.b16 %v1519, %v1516
    %v1880 = vpack.c.b16 %v1520, %v1517
    %v1881 = vpack.c.b16 %v1524, %v1521
    %v1882 = vpack.c.b16 %v1525, %v1522
    %v1883 = vpack.c.b16 %v1526, %v1523
    %v1884 = vpack.c.b16 %v1530, %v1527
    %v1885 = vpack.c.b16 %v1531, %v1528
    %v1886 = vpack.c.b16 %v1532, %v1529
    %v1887 = vpack.c.b16 %v1536, %v1533
    %v1888 = vpack.c.b16 %v1537, %v1534
    %v1889 = vpack.c.b16 %v1538, %v1535
    %v1890 = vpack.c.b16 %v1542, %v1539
    %v1891 = vpack.c.b16 %v1543, %v1540
    %v1892 = vpack.c.b16 %v1544, %v1541
    %v1893 = vpack.c.b16 %v1548, %v1545
    %v1894 = vpack.c.b16 %v1549, %v1546
    %v1895 = vpack.c.b16 %v1550, %v1547
    %v1896 = vpack.c.b16 %v1554, %v1551
    %v1897 = vpack.c.b16 %v1555, %v1552
    %v1898 = vpack.c.b16 %v1556, %v1553
    %v1899 = vpack.c.b16 %v1560, %v1557
    %v1900 = vpack.c.b16 %v1561, %v1558
    %v1901 = vpack.c.b16 %v1562, %v1559
    %v1902 = vpack.c.b16 %v1566, %v1563
    %v1903 = vpack.c.b16 %v1567, %v1564
    %v1904 = vpack.c.b16 %v1568, %v1565
    %v1905 = vpack.c.b16 %v1572, %v1569
    %v1906 = vpack.c.b16 %v1573, %v1570
    %v1907 = vpack.c.b16 %v1574, %v1571
    %v1908 = vpack.c.b16 %v1578, %v1575
    %v1909 = vpack.c.b16 %v1579, %v1576
    %v1910 = vpack.c.b16 %v1580, %v1577
    %v1911 = vpack.c.b16 %v1584, %v1581
    %v1912 = vpack.c.b16 %v1585, %v1582
    %v1913 = vpack.c.b16 %v1586, %v1583
    %v1914 = vpack.c.b16 %v1590, %v1587
    %v1915 = vpack.c.b16 %v1591, %v1588
    %v1916 = vpack.c.b16 %v1592, %v1589
    %vm2241 = vcmask 523264
    %v2243 = vsel %vm2241, %v499, 0
    %2245 = vmatpush.bf16.msra.mxu0 %v1614
    %2246 = vmatpush.bf16.msra.mxu0 %v1611
    %2247 = vmatpush.bf16.msra.mxu0 %v1608
    %2248 = vmatpush.bf16.msra.mxu0 %v1605
    %2249 = vmatpush.bf16.msra.mxu0 %v1602
    %2250 = vmatpush.bf16.msra.mxu0 %v1599
    %2251 = vmatpush.bf16.msra.mxu0 %v1596
    %2252 = vmatpush.bf16.msra.mxu0 %v1593
    %2253 = vmatmul.bf16.gmra.mxu0 %v486
    %v2254 = vpop.f32.mrf.mxu0
    %v2255 = vadd.f32 %v459, %v2254
    %v2256 = vpop.f32.mrf.mxu0
    %2257 = vdwg.mxu0
    %2258 = vmatpush.bf16.msra.mxu0 %v1638
    %2259 = vmatpush.bf16.msra.mxu0 %v1635
    %2260 = vmatpush.bf16.msra.mxu0 %v1632
    %2261 = vmatpush.bf16.msra.mxu0 %v1629
    %2262 = vmatpush.bf16.msra.mxu0 %v1626
    %2263 = vmatpush.bf16.msra.mxu0 %v1623
    %2264 = vmatpush.bf16.msra.mxu0 %v1620
    %2265 = vmatpush.bf16.msra.mxu0 %v1617
    %2266 = vmatmul.bf16.gmra.mxu0 %v487
    %v2267 = vpop.f32.mrf.mxu0
    %v2268 = vadd.f32 %v2255, %v2267
    %v2269 = vpop.f32.mrf.mxu0
    %2270 = vdwg.mxu0
    %2271 = vmatpush.bf16.msra.mxu0 %v1662
    %2272 = vmatpush.bf16.msra.mxu0 %v1659
    %2273 = vmatpush.bf16.msra.mxu0 %v1656
    %2274 = vmatpush.bf16.msra.mxu0 %v1653
    %2275 = vmatpush.bf16.msra.mxu0 %v1650
    %2276 = vmatpush.bf16.msra.mxu0 %v1647
    %2277 = vmatpush.bf16.msra.mxu0 %v1644
    %2278 = vmatpush.bf16.msra.mxu0 %v1641
    %2279 = vmatmul.bf16.gmra.mxu0 %v488
    %v2280 = vpop.f32.mrf.mxu0
    %v2281 = vadd.f32 %v2268, %v2280
    %v2282 = vpop.f32.mrf.mxu0
    %2283 = vdwg.mxu0
    %2284 = vmatpush.bf16.msra.mxu0 %v1686
    %2285 = vmatpush.bf16.msra.mxu0 %v1683
    %2286 = vmatpush.bf16.msra.mxu0 %v1680
    %2287 = vmatpush.bf16.msra.mxu0 %v1677
    %2288 = vmatpush.bf16.msra.mxu0 %v1674
    %2289 = vmatpush.bf16.msra.mxu0 %v1671
    %2290 = vmatpush.bf16.msra.mxu0 %v1668
    %2291 = vmatpush.bf16.msra.mxu0 %v1665
    %2292 = vmatmul.bf16.gmra.mxu0 %v489
    %v2293 = vpop.f32.mrf.mxu0
    %v2294 = vadd.f32 %v2281, %v2293
    %v2295 = vpop.f32.mrf.mxu0
    %2296 = vdwg.mxu0
    %2297 = vmatpush.bf16.msra.mxu0 %v1710
    %2298 = vmatpush.bf16.msra.mxu0 %v1707
    %2299 = vmatpush.bf16.msra.mxu0 %v1704
    %2300 = vmatpush.bf16.msra.mxu0 %v1701
    %2301 = vmatpush.bf16.msra.mxu0 %v1698
    %2302 = vmatpush.bf16.msra.mxu0 %v1695
    %2303 = vmatpush.bf16.msra.mxu0 %v1692
    %2304 = vmatpush.bf16.msra.mxu0 %v1689
    %2305 = vmatmul.bf16.gmra.mxu0 %v490
    %v2306 = vpop.f32.mrf.mxu0
    %v2307 = vadd.f32 %v2294, %v2306
    %v2308 = vpop.f32.mrf.mxu0
    %2309 = vdwg.mxu0
    %2310 = vmatpush.bf16.msra.mxu0 %v1734
    %2311 = vmatpush.bf16.msra.mxu0 %v1731
    %2312 = vmatpush.bf16.msra.mxu0 %v1728
    %2313 = vmatpush.bf16.msra.mxu0 %v1725
    %2314 = vmatpush.bf16.msra.mxu0 %v1722
    %2315 = vmatpush.bf16.msra.mxu0 %v1719
    %2316 = vmatpush.bf16.msra.mxu0 %v1716
    %2317 = vmatpush.bf16.msra.mxu0 %v1713
    %2318 = vmatmul.bf16.gmra.mxu0 %v491
    %v2319 = vpop.f32.mrf.mxu0
    %v2320 = vadd.f32 %v2307, %v2319
    %v2321 = vpop.f32.mrf.mxu0
    %2322 = vdwg.mxu0
    %2323 = vmatpush.bf16.msra.mxu0 %v1758
    %2324 = vmatpush.bf16.msra.mxu0 %v1755
    %2325 = vmatpush.bf16.msra.mxu0 %v1752
    %2326 = vmatpush.bf16.msra.mxu0 %v1749
    %2327 = vmatpush.bf16.msra.mxu0 %v1746
    %2328 = vmatpush.bf16.msra.mxu0 %v1743
    %2329 = vmatpush.bf16.msra.mxu0 %v1740
    %2330 = vmatpush.bf16.msra.mxu0 %v1737
    %2331 = vmatmul.bf16.gmra.mxu0 %v492
    %v2332 = vpop.f32.mrf.mxu0
    %v2333 = vadd.f32 %v2320, %v2332
    %v2334 = vpop.f32.mrf.mxu0
    %2335 = vdwg.mxu0
    %2336 = vmatpush.bf16.msra.mxu0 %v1782
    %2337 = vmatpush.bf16.msra.mxu0 %v1779
    %2338 = vmatpush.bf16.msra.mxu0 %v1776
    %2339 = vmatpush.bf16.msra.mxu0 %v1773
    %2340 = vmatpush.bf16.msra.mxu0 %v1770
    %2341 = vmatpush.bf16.msra.mxu0 %v1767
    %2342 = vmatpush.bf16.msra.mxu0 %v1764
    %2343 = vmatpush.bf16.msra.mxu0 %v1761
    %2344 = vmatmul.bf16.gmra.mxu0 %v493
    %v2345 = vpop.f32.mrf.mxu0
    %v2346 = vadd.f32 %v2333, %v2345
    %v2347 = vpop.f32.mrf.mxu0
    %2348 = vdwg.mxu0
    %2349 = vmatpush.bf16.msra.mxu0 %v1806
    %2350 = vmatpush.bf16.msra.mxu0 %v1803
    %2351 = vmatpush.bf16.msra.mxu0 %v1800
    %2352 = vmatpush.bf16.msra.mxu0 %v1797
    %2353 = vmatpush.bf16.msra.mxu0 %v1794
    %2354 = vmatpush.bf16.msra.mxu0 %v1791
    %2355 = vmatpush.bf16.msra.mxu0 %v1788
    %2356 = vmatpush.bf16.msra.mxu0 %v1785
    %2357 = vmatmul.bf16.gmra.mxu0 %v494
    %v2358 = vpop.f32.mrf.mxu0
    %v2359 = vadd.f32 %v2346, %v2358
    %v2360 = vpop.f32.mrf.mxu0
    %2361 = vdwg.mxu0
    %2362 = vmatpush.bf16.msra.mxu0 %v1830
    %2363 = vmatpush.bf16.msra.mxu0 %v1827
    %2364 = vmatpush.bf16.msra.mxu0 %v1824
    %2365 = vmatpush.bf16.msra.mxu0 %v1821
    %2366 = vmatpush.bf16.msra.mxu0 %v1818
    %2367 = vmatpush.bf16.msra.mxu0 %v1815
    %2368 = vmatpush.bf16.msra.mxu0 %v1812
    %2369 = vmatpush.bf16.msra.mxu0 %v1809
    %2370 = vmatmul.bf16.gmra.mxu0 %v495
    %v2371 = vpop.f32.mrf.mxu0
    %v2372 = vadd.f32 %v2359, %v2371
    %v2373 = vpop.f32.mrf.mxu0
    %2374 = vdwg.mxu0
    %2375 = vmatpush.bf16.msra.mxu0 %v1854
    %2376 = vmatpush.bf16.msra.mxu0 %v1851
    %2377 = vmatpush.bf16.msra.mxu0 %v1848
    %2378 = vmatpush.bf16.msra.mxu0 %v1845
    %2379 = vmatpush.bf16.msra.mxu0 %v1842
    %2380 = vmatpush.bf16.msra.mxu0 %v1839
    %2381 = vmatpush.bf16.msra.mxu0 %v1836
    %2382 = vmatpush.bf16.msra.mxu0 %v1833
    %2383 = vmatmul.bf16.gmra.mxu0 %v496
    %v2384 = vpop.f32.mrf.mxu0
    %v2385 = vadd.f32 %v2372, %v2384
    %v2386 = vpop.f32.mrf.mxu0
    %2387 = vdwg.mxu0
    %2388 = vmatpush.bf16.msra.mxu0 %v1878
    %2389 = vmatpush.bf16.msra.mxu0 %v1875
    %2390 = vmatpush.bf16.msra.mxu0 %v1872
    %2391 = vmatpush.bf16.msra.mxu0 %v1869
    %2392 = vmatpush.bf16.msra.mxu0 %v1866
    %2393 = vmatpush.bf16.msra.mxu0 %v1863
    %2394 = vmatpush.bf16.msra.mxu0 %v1860
    %2395 = vmatpush.bf16.msra.mxu0 %v1857
    %2396 = vmatmul.bf16.gmra.mxu0 %v497
    %v2397 = vpop.f32.mrf.mxu0
    %v2398 = vadd.f32 %v2385, %v2397
    %v2399 = vpop.f32.mrf.mxu0
    %2400 = vdwg.mxu0
    %2401 = vmatpush.bf16.msra.mxu0 %v1902
    %2402 = vmatpush.bf16.msra.mxu0 %v1899
    %2403 = vmatpush.bf16.msra.mxu0 %v1896
    %2404 = vmatpush.bf16.msra.mxu0 %v1893
    %2405 = vmatpush.bf16.msra.mxu0 %v1890
    %2406 = vmatpush.bf16.msra.mxu0 %v1887
    %2407 = vmatpush.bf16.msra.mxu0 %v1884
    %2408 = vmatpush.bf16.msra.mxu0 %v1881
    %2409 = vmatmul.bf16.gmra.mxu0 %v498
    %v2410 = vpop.f32.mrf.mxu0
    %v2411 = vadd.f32 %v2398, %v2410
    %v2412 = vpop.f32.mrf.mxu0
    %2413 = vdwg.mxu0
    %2414 = vmatpush.bf16.msra.mxu0 0
    %2415 = vmatpush.bf16.msra.mxu0 0
    %2416 = vmatpush.bf16.msra.mxu0 0
    %2417 = vmatpush.bf16.msra.mxu0 0
    %2418 = vmatpush.bf16.msra.mxu0 %v1914
    %2419 = vmatpush.bf16.msra.mxu0 %v1911
    %2420 = vmatpush.bf16.msra.mxu0 %v1908
    %2421 = vmatpush.bf16.msra.mxu0 %v1905
    %2422 = vmatmul.bf16.gmra.mxu0 %v2243
    %v2423 = vpop.f32.mrf.mxu0
    %v2424 = vadd.f32 %v2411, %v2423
    %v2425 = vpop.f32.mrf.mxu0
    %2426 = vdwg.mxu0
    %2427 = vmatpush.bf16.msra.mxu0 %v1615
    %2428 = vmatpush.bf16.msra.mxu0 %v1612
    %2429 = vmatpush.bf16.msra.mxu0 %v1609
    %2430 = vmatpush.bf16.msra.mxu0 %v1606
    %2431 = vmatpush.bf16.msra.mxu0 %v1603
    %2432 = vmatpush.bf16.msra.mxu0 %v1600
    %2433 = vmatpush.bf16.msra.mxu0 %v1597
    %2434 = vmatpush.bf16.msra.mxu0 %v1594
    %2435 = vmatmul.bf16.gmra.mxu0 %v486
    %v2436 = vpop.f32.mrf.mxu0
    %v2437 = vadd.f32 %v460, %v2436
    %v2438 = vpop.f32.mrf.mxu0
    %2439 = vdwg.mxu0
    %2440 = vmatpush.bf16.msra.mxu0 %v1639
    %2441 = vmatpush.bf16.msra.mxu0 %v1636
    %2442 = vmatpush.bf16.msra.mxu0 %v1633
    %2443 = vmatpush.bf16.msra.mxu0 %v1630
    %2444 = vmatpush.bf16.msra.mxu0 %v1627
    %2445 = vmatpush.bf16.msra.mxu0 %v1624
    %2446 = vmatpush.bf16.msra.mxu0 %v1621
    %2447 = vmatpush.bf16.msra.mxu0 %v1618
    %2448 = vmatmul.bf16.gmra.mxu0 %v487
    %v2449 = vpop.f32.mrf.mxu0
    %v2450 = vadd.f32 %v2437, %v2449
    %v2451 = vpop.f32.mrf.mxu0
    %2452 = vdwg.mxu0
    %2453 = vmatpush.bf16.msra.mxu0 %v1663
    %2454 = vmatpush.bf16.msra.mxu0 %v1660
    %2455 = vmatpush.bf16.msra.mxu0 %v1657
    %2456 = vmatpush.bf16.msra.mxu0 %v1654
    %2457 = vmatpush.bf16.msra.mxu0 %v1651
    %2458 = vmatpush.bf16.msra.mxu0 %v1648
    %2459 = vmatpush.bf16.msra.mxu0 %v1645
    %2460 = vmatpush.bf16.msra.mxu0 %v1642
    %2461 = vmatmul.bf16.gmra.mxu0 %v488
    %v2462 = vpop.f32.mrf.mxu0
    %v2463 = vadd.f32 %v2450, %v2462
    %v2464 = vpop.f32.mrf.mxu0
    %2465 = vdwg.mxu0
    %2466 = vmatpush.bf16.msra.mxu0 %v1687
    %2467 = vmatpush.bf16.msra.mxu0 %v1684
    %2468 = vmatpush.bf16.msra.mxu0 %v1681
    %2469 = vmatpush.bf16.msra.mxu0 %v1678
    %2470 = vmatpush.bf16.msra.mxu0 %v1675
    %2471 = vmatpush.bf16.msra.mxu0 %v1672
    %2472 = vmatpush.bf16.msra.mxu0 %v1669
    %2473 = vmatpush.bf16.msra.mxu0 %v1666
    %2474 = vmatmul.bf16.gmra.mxu0 %v489
    %v2475 = vpop.f32.mrf.mxu0
    %v2476 = vadd.f32 %v2463, %v2475
    %v2477 = vpop.f32.mrf.mxu0
    %2478 = vdwg.mxu0
    %2479 = vmatpush.bf16.msra.mxu0 %v1711
    %2480 = vmatpush.bf16.msra.mxu0 %v1708
    %2481 = vmatpush.bf16.msra.mxu0 %v1705
    %2482 = vmatpush.bf16.msra.mxu0 %v1702
    %2483 = vmatpush.bf16.msra.mxu0 %v1699
    %2484 = vmatpush.bf16.msra.mxu0 %v1696
    %2485 = vmatpush.bf16.msra.mxu0 %v1693
    %2486 = vmatpush.bf16.msra.mxu0 %v1690
    %2487 = vmatmul.bf16.gmra.mxu0 %v490
    %v2488 = vpop.f32.mrf.mxu0
    %v2489 = vadd.f32 %v2476, %v2488
    %v2490 = vpop.f32.mrf.mxu0
    %2491 = vdwg.mxu0
    %2492 = vmatpush.bf16.msra.mxu0 %v1735
    %2493 = vmatpush.bf16.msra.mxu0 %v1732
    %2494 = vmatpush.bf16.msra.mxu0 %v1729
    %2495 = vmatpush.bf16.msra.mxu0 %v1726
    %2496 = vmatpush.bf16.msra.mxu0 %v1723
    %2497 = vmatpush.bf16.msra.mxu0 %v1720
    %2498 = vmatpush.bf16.msra.mxu0 %v1717
    %2499 = vmatpush.bf16.msra.mxu0 %v1714
    %2500 = vmatmul.bf16.gmra.mxu0 %v491
    %v2501 = vpop.f32.mrf.mxu0
    %v2502 = vadd.f32 %v2489, %v2501
    %v2503 = vpop.f32.mrf.mxu0
    %2504 = vdwg.mxu0
    %2505 = vmatpush.bf16.msra.mxu0 %v1759
    %2506 = vmatpush.bf16.msra.mxu0 %v1756
    %2507 = vmatpush.bf16.msra.mxu0 %v1753
    %2508 = vmatpush.bf16.msra.mxu0 %v1750
    %2509 = vmatpush.bf16.msra.mxu0 %v1747
    %2510 = vmatpush.bf16.msra.mxu0 %v1744
    %2511 = vmatpush.bf16.msra.mxu0 %v1741
    %2512 = vmatpush.bf16.msra.mxu0 %v1738
    %2513 = vmatmul.bf16.gmra.mxu0 %v492
    %v2514 = vpop.f32.mrf.mxu0
    %v2515 = vadd.f32 %v2502, %v2514
    %v2516 = vpop.f32.mrf.mxu0
    %2517 = vdwg.mxu0
    %2518 = vmatpush.bf16.msra.mxu0 %v1783
    %2519 = vmatpush.bf16.msra.mxu0 %v1780
    %2520 = vmatpush.bf16.msra.mxu0 %v1777
    %2521 = vmatpush.bf16.msra.mxu0 %v1774
    %2522 = vmatpush.bf16.msra.mxu0 %v1771
    %2523 = vmatpush.bf16.msra.mxu0 %v1768
    %2524 = vmatpush.bf16.msra.mxu0 %v1765
    %2525 = vmatpush.bf16.msra.mxu0 %v1762
    %2526 = vmatmul.bf16.gmra.mxu0 %v493
    %v2527 = vpop.f32.mrf.mxu0
    %v2528 = vadd.f32 %v2515, %v2527
    %v2529 = vpop.f32.mrf.mxu0
    %2530 = vdwg.mxu0
    %2531 = vmatpush.bf16.msra.mxu0 %v1807
    %2532 = vmatpush.bf16.msra.mxu0 %v1804
    %2533 = vmatpush.bf16.msra.mxu0 %v1801
    %2534 = vmatpush.bf16.msra.mxu0 %v1798
    %2535 = vmatpush.bf16.msra.mxu0 %v1795
    %2536 = vmatpush.bf16.msra.mxu0 %v1792
    %2537 = vmatpush.bf16.msra.mxu0 %v1789
    %2538 = vmatpush.bf16.msra.mxu0 %v1786
    %2539 = vmatmul.bf16.gmra.mxu0 %v494
    %v2540 = vpop.f32.mrf.mxu0
    %v2541 = vadd.f32 %v2528, %v2540
    %v2542 = vpop.f32.mrf.mxu0
    %2543 = vdwg.mxu0
    %2544 = vmatpush.bf16.msra.mxu0 %v1831
    %2545 = vmatpush.bf16.msra.mxu0 %v1828
    %2546 = vmatpush.bf16.msra.mxu0 %v1825
    %2547 = vmatpush.bf16.msra.mxu0 %v1822
    %2548 = vmatpush.bf16.msra.mxu0 %v1819
    %2549 = vmatpush.bf16.msra.mxu0 %v1816
    %2550 = vmatpush.bf16.msra.mxu0 %v1813
    %2551 = vmatpush.bf16.msra.mxu0 %v1810
    %2552 = vmatmul.bf16.gmra.mxu0 %v495
    %v2553 = vpop.f32.mrf.mxu0
    %v2554 = vadd.f32 %v2541, %v2553
    %v2555 = vpop.f32.mrf.mxu0
    %2556 = vdwg.mxu0
    %2557 = vmatpush.bf16.msra.mxu0 %v1855
    %2558 = vmatpush.bf16.msra.mxu0 %v1852
    %2559 = vmatpush.bf16.msra.mxu0 %v1849
    %2560 = vmatpush.bf16.msra.mxu0 %v1846
    %2561 = vmatpush.bf16.msra.mxu0 %v1843
    %2562 = vmatpush.bf16.msra.mxu0 %v1840
    %2563 = vmatpush.bf16.msra.mxu0 %v1837
    %2564 = vmatpush.bf16.msra.mxu0 %v1834
    %2565 = vmatmul.bf16.gmra.mxu0 %v496
    %v2566 = vpop.f32.mrf.mxu0
    %v2567 = vadd.f32 %v2554, %v2566
    %v2568 = vpop.f32.mrf.mxu0
    %2569 = vdwg.mxu0
    %2570 = vmatpush.bf16.msra.mxu0 %v1879
    %2571 = vmatpush.bf16.msra.mxu0 %v1876
    %2572 = vmatpush.bf16.msra.mxu0 %v1873
    %2573 = vmatpush.bf16.msra.mxu0 %v1870
    %2574 = vmatpush.bf16.msra.mxu0 %v1867
    %2575 = vmatpush.bf16.msra.mxu0 %v1864
    %2576 = vmatpush.bf16.msra.mxu0 %v1861
    %2577 = vmatpush.bf16.msra.mxu0 %v1858
    %2578 = vmatmul.bf16.gmra.mxu0 %v497
    %v2579 = vpop.f32.mrf.mxu0
    %v2580 = vadd.f32 %v2567, %v2579
    %v2581 = vpop.f32.mrf.mxu0
    %2582 = vdwg.mxu0
    %2583 = vmatpush.bf16.msra.mxu0 %v1903
    %2584 = vmatpush.bf16.msra.mxu0 %v1900
    %2585 = vmatpush.bf16.msra.mxu0 %v1897
    %2586 = vmatpush.bf16.msra.mxu0 %v1894
    %2587 = vmatpush.bf16.msra.mxu0 %v1891
    %2588 = vmatpush.bf16.msra.mxu0 %v1888
    %2589 = vmatpush.bf16.msra.mxu0 %v1885
    %2590 = vmatpush.bf16.msra.mxu0 %v1882
    %2591 = vmatmul.bf16.gmra.mxu0 %v498
    %v2592 = vpop.f32.mrf.mxu0
    %v2593 = vadd.f32 %v2580, %v2592
    %v2594 = vpop.f32.mrf.mxu0
    %2595 = vdwg.mxu0
    %2596 = vmatpush.bf16.msra.mxu0 0
    %2597 = vmatpush.bf16.msra.mxu0 0
    %2598 = vmatpush.bf16.msra.mxu0 0
    %2599 = vmatpush.bf16.msra.mxu0 0
    %2600 = vmatpush.bf16.msra.mxu0 %v1915
    %2601 = vmatpush.bf16.msra.mxu0 %v1912
    %2602 = vmatpush.bf16.msra.mxu0 %v1909
    %2603 = vmatpush.bf16.msra.mxu0 %v1906
    %2604 = vmatmul.bf16.gmra.mxu0 %v2243
    %v2605 = vpop.f32.mrf.mxu0
    %v2606 = vadd.f32 %v2593, %v2605
    %v2607 = vpop.f32.mrf.mxu0
    %2608 = vdwg.mxu0
    %2609 = vmatpush.bf16.msra.mxu0 %v1616
    %2610 = vmatpush.bf16.msra.mxu0 %v1613
    %2611 = vmatpush.bf16.msra.mxu0 %v1610
    %2612 = vmatpush.bf16.msra.mxu0 %v1607
    %2613 = vmatpush.bf16.msra.mxu0 %v1604
    %2614 = vmatpush.bf16.msra.mxu0 %v1601
    %2615 = vmatpush.bf16.msra.mxu0 %v1598
    %2616 = vmatpush.bf16.msra.mxu0 %v1595
    %2617 = vmatmul.bf16.gmra.mxu0 %v486
    %v2618 = vpop.f32.mrf.mxu0
    %v2619 = vadd.f32 %v461, %v2618
    %v2620 = vpop.f32.mrf.mxu0
    %2621 = vdwg.mxu0
    %2622 = vmatpush.bf16.msra.mxu0 %v1640
    %2623 = vmatpush.bf16.msra.mxu0 %v1637
    %2624 = vmatpush.bf16.msra.mxu0 %v1634
    %2625 = vmatpush.bf16.msra.mxu0 %v1631
    %2626 = vmatpush.bf16.msra.mxu0 %v1628
    %2627 = vmatpush.bf16.msra.mxu0 %v1625
    %2628 = vmatpush.bf16.msra.mxu0 %v1622
    %2629 = vmatpush.bf16.msra.mxu0 %v1619
    %2630 = vmatmul.bf16.gmra.mxu0 %v487
    %v2631 = vpop.f32.mrf.mxu0
    %v2632 = vadd.f32 %v2619, %v2631
    %v2633 = vpop.f32.mrf.mxu0
    %2634 = vdwg.mxu0
    %2635 = vmatpush.bf16.msra.mxu0 %v1664
    %2636 = vmatpush.bf16.msra.mxu0 %v1661
    %2637 = vmatpush.bf16.msra.mxu0 %v1658
    %2638 = vmatpush.bf16.msra.mxu0 %v1655
    %2639 = vmatpush.bf16.msra.mxu0 %v1652
    %2640 = vmatpush.bf16.msra.mxu0 %v1649
    %2641 = vmatpush.bf16.msra.mxu0 %v1646
    %2642 = vmatpush.bf16.msra.mxu0 %v1643
    %2643 = vmatmul.bf16.gmra.mxu0 %v488
    %v2644 = vpop.f32.mrf.mxu0
    %v2645 = vadd.f32 %v2632, %v2644
    %v2646 = vpop.f32.mrf.mxu0
    %2647 = vdwg.mxu0
    %2648 = vmatpush.bf16.msra.mxu0 %v1688
    %2649 = vmatpush.bf16.msra.mxu0 %v1685
    %2650 = vmatpush.bf16.msra.mxu0 %v1682
    %2651 = vmatpush.bf16.msra.mxu0 %v1679
    %2652 = vmatpush.bf16.msra.mxu0 %v1676
    %2653 = vmatpush.bf16.msra.mxu0 %v1673
    %2654 = vmatpush.bf16.msra.mxu0 %v1670
    %2655 = vmatpush.bf16.msra.mxu0 %v1667
    %2656 = vmatmul.bf16.gmra.mxu0 %v489
    %v2657 = vpop.f32.mrf.mxu0
    %v2658 = vadd.f32 %v2645, %v2657
    %v2659 = vpop.f32.mrf.mxu0
    %2660 = vdwg.mxu0
    %2661 = vmatpush.bf16.msra.mxu0 %v1712
    %2662 = vmatpush.bf16.msra.mxu0 %v1709
    %2663 = vmatpush.bf16.msra.mxu0 %v1706
    %2664 = vmatpush.bf16.msra.mxu0 %v1703
    %2665 = vmatpush.bf16.msra.mxu0 %v1700
    %2666 = vmatpush.bf16.msra.mxu0 %v1697
    %2667 = vmatpush.bf16.msra.mxu0 %v1694
    %2668 = vmatpush.bf16.msra.mxu0 %v1691
    %2669 = vmatmul.bf16.gmra.mxu0 %v490
    %v2670 = vpop.f32.mrf.mxu0
    %v2671 = vadd.f32 %v2658, %v2670
    %v2672 = vpop.f32.mrf.mxu0
    %2673 = vdwg.mxu0
    %2674 = vmatpush.bf16.msra.mxu0 %v1736
    %2675 = vmatpush.bf16.msra.mxu0 %v1733
    %2676 = vmatpush.bf16.msra.mxu0 %v1730
    %2677 = vmatpush.bf16.msra.mxu0 %v1727
    %2678 = vmatpush.bf16.msra.mxu0 %v1724
    %2679 = vmatpush.bf16.msra.mxu0 %v1721
    %2680 = vmatpush.bf16.msra.mxu0 %v1718
    %2681 = vmatpush.bf16.msra.mxu0 %v1715
    %2682 = vmatmul.bf16.gmra.mxu0 %v491
    %v2683 = vpop.f32.mrf.mxu0
    %v2684 = vadd.f32 %v2671, %v2683
    %v2685 = vpop.f32.mrf.mxu0
    %2686 = vdwg.mxu0
    %2687 = vmatpush.bf16.msra.mxu0 %v1760
    %2688 = vmatpush.bf16.msra.mxu0 %v1757
    %2689 = vmatpush.bf16.msra.mxu0 %v1754
    %2690 = vmatpush.bf16.msra.mxu0 %v1751
    %2691 = vmatpush.bf16.msra.mxu0 %v1748
    %2692 = vmatpush.bf16.msra.mxu0 %v1745
    %2693 = vmatpush.bf16.msra.mxu0 %v1742
    %2694 = vmatpush.bf16.msra.mxu0 %v1739
    %2695 = vmatmul.bf16.gmra.mxu0 %v492
    %v2696 = vpop.f32.mrf.mxu0
    %v2697 = vadd.f32 %v2684, %v2696
    %v2698 = vpop.f32.mrf.mxu0
    %2699 = vdwg.mxu0
    %2700 = vmatpush.bf16.msra.mxu0 %v1784
    %2701 = vmatpush.bf16.msra.mxu0 %v1781
    %2702 = vmatpush.bf16.msra.mxu0 %v1778
    %2703 = vmatpush.bf16.msra.mxu0 %v1775
    %2704 = vmatpush.bf16.msra.mxu0 %v1772
    %2705 = vmatpush.bf16.msra.mxu0 %v1769
    %2706 = vmatpush.bf16.msra.mxu0 %v1766
    %2707 = vmatpush.bf16.msra.mxu0 %v1763
    %2708 = vmatmul.bf16.gmra.mxu0 %v493
    %v2709 = vpop.f32.mrf.mxu0
    %v2710 = vadd.f32 %v2697, %v2709
    %v2711 = vpop.f32.mrf.mxu0
    %2712 = vdwg.mxu0
    %2713 = vmatpush.bf16.msra.mxu0 %v1808
    %2714 = vmatpush.bf16.msra.mxu0 %v1805
    %2715 = vmatpush.bf16.msra.mxu0 %v1802
    %2716 = vmatpush.bf16.msra.mxu0 %v1799
    %2717 = vmatpush.bf16.msra.mxu0 %v1796
    %2718 = vmatpush.bf16.msra.mxu0 %v1793
    %2719 = vmatpush.bf16.msra.mxu0 %v1790
    %2720 = vmatpush.bf16.msra.mxu0 %v1787
    %2721 = vmatmul.bf16.gmra.mxu0 %v494
    %v2722 = vpop.f32.mrf.mxu0
    %v2723 = vadd.f32 %v2710, %v2722
    %v2724 = vpop.f32.mrf.mxu0
    %2725 = vdwg.mxu0
    %2726 = vmatpush.bf16.msra.mxu0 %v1832
    %2727 = vmatpush.bf16.msra.mxu0 %v1829
    %2728 = vmatpush.bf16.msra.mxu0 %v1826
    %2729 = vmatpush.bf16.msra.mxu0 %v1823
    %2730 = vmatpush.bf16.msra.mxu0 %v1820
    %2731 = vmatpush.bf16.msra.mxu0 %v1817
    %2732 = vmatpush.bf16.msra.mxu0 %v1814
    %2733 = vmatpush.bf16.msra.mxu0 %v1811
    %2734 = vmatmul.bf16.gmra.mxu0 %v495
    %v2735 = vpop.f32.mrf.mxu0
    %v2736 = vadd.f32 %v2723, %v2735
    %v2737 = vpop.f32.mrf.mxu0
    %2738 = vdwg.mxu0
    %2739 = vmatpush.bf16.msra.mxu0 %v1856
    %2740 = vmatpush.bf16.msra.mxu0 %v1853
    %2741 = vmatpush.bf16.msra.mxu0 %v1850
    %2742 = vmatpush.bf16.msra.mxu0 %v1847
    %2743 = vmatpush.bf16.msra.mxu0 %v1844
    %2744 = vmatpush.bf16.msra.mxu0 %v1841
    %2745 = vmatpush.bf16.msra.mxu0 %v1838
    %2746 = vmatpush.bf16.msra.mxu0 %v1835
    %2747 = vmatmul.bf16.gmra.mxu0 %v496
    %v2748 = vpop.f32.mrf.mxu0
    %v2749 = vadd.f32 %v2736, %v2748
    %v2750 = vpop.f32.mrf.mxu0
    %2751 = vdwg.mxu0
    %2752 = vmatpush.bf16.msra.mxu0 %v1880
    %2753 = vmatpush.bf16.msra.mxu0 %v1877
    %2754 = vmatpush.bf16.msra.mxu0 %v1874
    %2755 = vmatpush.bf16.msra.mxu0 %v1871
    %2756 = vmatpush.bf16.msra.mxu0 %v1868
    %2757 = vmatpush.bf16.msra.mxu0 %v1865
    %2758 = vmatpush.bf16.msra.mxu0 %v1862
    %2759 = vmatpush.bf16.msra.mxu0 %v1859
    %2760 = vmatmul.bf16.gmra.mxu0 %v497
    %v2761 = vpop.f32.mrf.mxu0
    %v2762 = vadd.f32 %v2749, %v2761
    %v2763 = vpop.f32.mrf.mxu0
    %2764 = vdwg.mxu0
    %2765 = vmatpush.bf16.msra.mxu0 %v1904
    %2766 = vmatpush.bf16.msra.mxu0 %v1901
    %2767 = vmatpush.bf16.msra.mxu0 %v1898
    %2768 = vmatpush.bf16.msra.mxu0 %v1895
    %2769 = vmatpush.bf16.msra.mxu0 %v1892
    %2770 = vmatpush.bf16.msra.mxu0 %v1889
    %2771 = vmatpush.bf16.msra.mxu0 %v1886
    %2772 = vmatpush.bf16.msra.mxu0 %v1883
    %2773 = vmatmul.bf16.gmra.mxu0 %v498
    %v2774 = vpop.f32.mrf.mxu0
    %v2775 = vadd.f32 %v2762, %v2774
    %v2776 = vpop.f32.mrf.mxu0
    %2777 = vdwg.mxu0
    %2778 = vmatpush.bf16.msra.mxu0 0
    %2779 = vmatpush.bf16.msra.mxu0 0
    %2780 = vmatpush.bf16.msra.mxu0 0
    %2781 = vmatpush.bf16.msra.mxu0 0
    %2782 = vmatpush.bf16.msra.mxu0 %v1916
    %2783 = vmatpush.bf16.msra.mxu0 %v1913
    %2784 = vmatpush.bf16.msra.mxu0 %v1910
    %2785 = vmatpush.bf16.msra.mxu0 %v1907
    %2786 = vmatmul.bf16.gmra.mxu0 %v2243
    %v2787 = vpop.f32.mrf.mxu0
    %v2788 = vadd.f32 %v2775, %v2787
    %v2789 = vpop.f32.mrf.mxu0
    %2790 = vdwg.mxu0
    %v2791 = vmax.f32 %v2424, 0.0
    %v2792 = vmax.f32 %v2606, 0.0
    %v2793 = vmax.f32 %v2788, 0.0
    %2794 = vst [vmem:[%s3] sm:$0xff] %v2791
    %2795 = vst [vmem:[%s3 + $0x8] sm:$0xff] %v2792
    %2796 = vst [vmem:[%s3 + $0x10] sm:$0xff] %v2793
    %v2797 = vpack.c.bf16 %v2792, %v2791
    %v2798 = vpack.c.bf16 %v2793, %v2793
    %2799 = vst [vmem:[#allocation2] sm:$0xff] %v2797
    %2800 = vst [vmem:[#allocation2 + $0x8] sm:$0xf] %v2798
    // Predicated region
    $region14: #{conv_stream_forward.7} parent=1 // pred_check
      _
    $region15: #{conv_stream_forward.7} parent=1 // pred_check_branch
      %2802 = sbr.rel (0) target = $region17
    $region16: #{conv_stream_forward.7} parent=1 // pred_region
      _
    $region17: #{conv_stream_forward.7} parent=1 // pred_fallthru
      _
    // Predicated region
    $region18: #{conv_stream_forward.7} parent=1 // pred_check
      _
    $region19: #{conv_stream_forward.7} parent=1 // pred_check_branch
      %2804 = sbr.rel (0) target = $region21
    $region20: #{conv_stream_forward.7} parent=1 // pred_region
      %2806 = vsyncadd [#allocation3], 0
      %s2808 = sshll.u32 [#allocation2], 4
      %s2809 = int_to_ptr.vmem [resolvable:$true] %s2808
      %s2810 = sshll.u32 %s4, 4
      %s2811 = int_to_ptr.hbm [resolvable:$true] %s2810
      %2813 = dma.vmem_to_hbm [thread:$0]  %s2809, 192, %s2811, [#allocation3]
    $region21: #{conv_stream_forward.7} parent=1 // pred_fallthru
      _
    // Predicated region
    $region22: #{conv_stream_forward.7} parent=1 // pred_check
      _
    $region23: #{conv_stream_forward.7} parent=1 // pred_check_branch
      %2815 = sbr.rel (0) target = $region25
    $region24: #{conv_stream_forward.7} parent=1 // pred_region
      _
    $region25: #{conv_stream_forward.7} parent=1 // pred_fallthru
      _
    // Predicated region
    $region26: #{conv_stream_forward.7} parent=1 // pred_check
      _
    $region27: #{conv_stream_forward.7} parent=1 // pred_check_branch
      %2817 = sbr.rel (0) target = $region29
    $region28: #{conv_stream_forward.7} parent=1 // pred_region
      %2819 = dma.done [#allocation3], 192
    $region29: #{conv_stream_forward.7} parent=1 // pred_fallthru
      _
    %2820 = vsyncpa [#allocation3], 1

</llo_original>
